<compile_context>
chip_gen: v7x
topology: tpu7x:2x2x1
jax: 0.10.0
libtpu: 0.0.40
codegen_flags: <defaults>
</compile_context>

<pallas_src>
import functools

import jax
import jax.numpy as jnp
from jax.experimental import pallas as pl
from jax.experimental.pallas import tpu as pltpu


def _round_up(x, m):
    return ((x + m - 1) // m) * m


# --------------------------------------------------------------------------- #
# Kernel 1: objectness prob = mean_c(sigmoid(logits)), tiled over proposals.
# --------------------------------------------------------------------------- #
def _sigmoid_mean_kernel(logit_ref, out_ref):
    x = logit_ref[...].astype(jnp.float32)                    # (1, TILE_N, C)
    out_ref[...] = jnp.mean(jax.nn.sigmoid(x), axis=-1, keepdims=True)


def sigmoid_mean(logits, *, tile_n=1024):
    """logits: (B, N, C) -> (B, N) f32. Natural layout, tiled/pipelined over N."""
    B, N, C = logits.shape
    tn = N if N <= tile_n else tile_n
    out = pl.pallas_call(
        _sigmoid_mean_kernel,
        grid=(B, pl.cdiv(N, tn)),
        in_specs=[pl.BlockSpec((1, tn, C), lambda b, n: (b, n, 0))],
        out_specs=pl.BlockSpec((1, tn, 1), lambda b, n: (b, n, 0)),
        out_shape=jax.ShapeDtypeStruct((B, N, 1), jnp.float32),
        compiler_params=pltpu.CompilerParams(
            dimension_semantics=("parallel", "parallel")),
    )(logits)
    return out[..., 0]


# --------------------------------------------------------------------------- #
# Kernel 2: GT vs proposal matching.  Fuses cxcywh->xyxy decode + pixel scaling
# with IoU and a streaming max/argmax over proposal tiles (no IoU matrix output).
# --------------------------------------------------------------------------- #
def _gt_iou_kernel(hw_ref, gt_ref, boxt_ref, max_ref, idx_ref, *, n_total, tile_n):
    b = pl.program_id(0)
    n = pl.program_id(1)

    @pl.when(n == 0)
    def _():
        max_ref[...] = jnp.full_like(max_ref, -1.0)
        idx_ref[...] = jnp.zeros_like(idx_ref)

    sw = hw_ref[b, 1]                                           # W
    sh = hw_ref[b, 0]                                           # H

    bx = boxt_ref[0].astype(jnp.float32)                        # (4, TILE_N) cxcywh
    cx, cy = bx[0:1, :], bx[1:2, :]
    w, h = bx[2:3, :], bx[3:4, :]
    px1 = (cx - 0.5 * w) * sw
    py1 = (cy - 0.5 * h) * sh
    px2 = (cx + 0.5 * w) * sw
    py2 = (cy + 0.5 * h) * sh

    gt = gt_ref[0].astype(jnp.float32)                          # (G, 4) xyxy px
    gx1, gy1, gx2, gy2 = gt[:, 0:1], gt[:, 1:2], gt[:, 2:3], gt[:, 3:4]

    ix1 = jnp.maximum(gx1, px1)
    iy1 = jnp.maximum(gy1, py1)
    ix2 = jnp.minimum(gx2, px2)
    iy2 = jnp.minimum(gy2, py2)
    inter = jnp.maximum(ix2 - ix1, 0.0) * jnp.maximum(iy2 - iy1, 0.0)
    area_g = (gx2 - gx1) * (gy2 - gy1)
    area_p = (px2 - px1) * (py2 - py1)
    union = jnp.maximum(area_g + area_p - inter, 1e-9)
    iou = inter * pl.reciprocal(union, approx=True)             # (G, TILE_N)

    gid = jax.lax.broadcasted_iota(jnp.int32, iou.shape, 1) + n * tile_n
    iou = jnp.where(gid < n_total, iou, -1.0)                   # mask padded tail

    tile_max = jnp.max(iou, axis=-1, keepdims=True)             # (G, 1)
    sentinel = jnp.full_like(gid, n_total)
    tile_arg = jnp.min(jnp.where(iou == tile_max, gid, sentinel),
                       axis=-1, keepdims=True)                  # first-max tie-break

    better = tile_max > max_ref[0]                              # strict: keeps earliest max
    max_ref[0] = jnp.where(better, tile_max, max_ref[0])
    idx_ref[0] = jnp.where(better, tile_arg, idx_ref[0])


def gt_proposal_iou(gt_boxes, raw_boxes_last, hw, *, tile_n=1024):
    """gt_boxes: (B,G,4) xyxy px; raw_boxes_last: (B,N,4) cxcywh in [0,1]; hw: (B,2)=(H,W).
    Returns (max_iou (B,G) f32, argmax (B,G) int32)."""
    B, G, _ = gt_boxes.shape
    N = raw_boxes_last.shape[1]
    tn = N if N <= tile_n else tile_n
    boxes_t = jnp.transpose(raw_boxes_last, (0, 2, 1)).astype(jnp.float32)  # (B,4,N), tiny
    kernel = functools.partial(_gt_iou_kernel, n_total=N, tile_n=tn)
    max_iou, arg = pl.pallas_call(
        kernel,
        grid=(B, pl.cdiv(N, tn)),
        in_specs=[pl.BlockSpec(memory_space=pltpu.MemorySpace.SMEM),
                  pl.BlockSpec((1, G, 4), lambda b, n: (b, 0, 0)),
                  pl.BlockSpec((1, 4, tn), lambda b, n: (b, 0, n))],
        out_specs=(pl.BlockSpec((1, G, 1), lambda b, n: (b, 0, 0)),
                   pl.BlockSpec((1, G, 1), lambda b, n: (b, 0, 0))),
        out_shape=(jax.ShapeDtypeStruct((B, G, 1), jnp.float32),
                   jax.ShapeDtypeStruct((B, G, 1), jnp.int32)),
        compiler_params=pltpu.CompilerParams(
            dimension_semantics=("parallel", "arbitrary")),
    )(hw.astype(jnp.float32), gt_boxes.astype(jnp.float32), boxes_t)
    return max_iou[..., 0], arg[..., 0]


# --------------------------------------------------------------------------- #
# Kernel 3: post-top-k decode: cxcywh->xyxy, pixel scale, clip, min-size mask,
# per-level offset (batched-NMS trick).  Scales are SMEM scalars; outputs are
# single full-block lane-dense stores.
# --------------------------------------------------------------------------- #
def _decode_clip_kernel(hw_ref, raw_ref, lvloff_ref, clip_ref, off_ref, valid_ref,
                        *, min_box_size):
    b = pl.program_id(0)
    H = hw_ref[b, 0]
    W = hw_ref[b, 1]

    bx = raw_ref[0].astype(jnp.float32)                         # (4, M) cxcywh
    cx, cy = bx[0:1, :], bx[1:2, :]
    w, h = bx[2:3, :], bx[3:4, :]
    x1 = jnp.clip((cx - 0.5 * w) * W, 0.0, W)
    y1 = jnp.clip((cy - 0.5 * h) * H, 0.0, H)
    x2 = jnp.clip((cx + 0.5 * w) * W, 0.0, W)
    y2 = jnp.clip((cy + 0.5 * h) * H, 0.0, H)

    clip = jnp.concatenate([x1, y1, x2, y2], axis=0)            # (4, M)
    clip_ref[0] = clip                                          # one full-block store
    off_ref[0] = clip + lvloff_ref[0]                           # + level offset
    valid_ref[0] = jnp.where(((x2 - x1) > min_box_size) & ((y2 - y1) > min_box_size),
                             1.0, 0.0)


def decode_clip_boxes(raw_boxes, lvl_offsets, hw, *, min_box_size):
    """raw_boxes: (B, M, 4) cxcywh in [0,1] (M multiple of 128); lvl_offsets: (B, M);
    hw: (B, 2)=(H, W).  Returns (boxes_clip (B,M,4), boxes_off (B,M,4),
    boxes_off_t (B,4,M), valid (B,M) f32)."""
    B, M, _ = raw_boxes.shape
    raw_t = jnp.transpose(raw_boxes, (0, 2, 1)).astype(jnp.float32)   # (B,4,M), tiny
    kernel = functools.partial(_decode_clip_kernel, min_box_size=float(min_box_size))
    clip_t, off_t, valid = pl.pallas_call(
        kernel,
        grid=(B,),
        in_specs=[pl.BlockSpec(memory_space=pltpu.MemorySpace.SMEM),
                  pl.BlockSpec((1, 4, M), lambda b: (b, 0, 0)),
                  pl.BlockSpec((1, 1, M), lambda b: (b, 0, 0))],
        out_specs=(pl.BlockSpec((1, 4, M), lambda b: (b, 0, 0)),
                   pl.BlockSpec((1, 4, M), lambda b: (b, 0, 0)),
                   pl.BlockSpec((1, 1, M), lambda b: (b, 0, 0))),
        out_shape=(jax.ShapeDtypeStruct((B, 4, M), jnp.float32),
                   jax.ShapeDtypeStruct((B, 4, M), jnp.float32),
                   jax.ShapeDtypeStruct((B, 1, M), jnp.float32)),
        compiler_params=pltpu.CompilerParams(dimension_semantics=("parallel",)),
    )(hw.astype(jnp.float32), raw_t, lvl_offsets[:, None, :].astype(jnp.float32))
    boxes_clip = jnp.transpose(clip_t, (0, 2, 1))
    boxes_off = jnp.transpose(off_t, (0, 2, 1))
    return boxes_clip, boxes_off, off_t, valid[:, 0, :]


# --------------------------------------------------------------------------- #
# Kernel 4: proposal-vs-proposal pairwise IoU, row-tiled, lane-dense output.
# --------------------------------------------------------------------------- #
def _pairwise_iou_kernel(rows_ref, colst_ref, iou_ref):
    rows = rows_ref[0]                                          # (TILE_R, 4)
    cols = colst_ref[0]                                         # (4, M)
    rx1, ry1, rx2, ry2 = rows[:, 0:1], rows[:, 1:2], rows[:, 2:3], rows[:, 3:4]
    cx1, cy1, cx2, cy2 = cols[0:1, :], cols[1:2, :], cols[2:3, :], cols[3:4, :]
    ix1 = jnp.maximum(rx1, cx1)
    iy1 = jnp.maximum(ry1, cy1)
    ix2 = jnp.minimum(rx2, cx2)
    iy2 = jnp.minimum(ry2, cy2)
    inter = jnp.maximum(ix2 - ix1, 0.0) * jnp.maximum(iy2 - iy1, 0.0)
    area_r = (rx2 - rx1) * (ry2 - ry1)
    area_c = (cx2 - cx1) * (cy2 - cy1)
    union = jnp.maximum(area_r + area_c - inter, 1e-9)
    iou_ref[0] = inter * pl.reciprocal(union, approx=True)


def pairwise_iou(boxes, boxes_t, *, tile_r=256):
    """boxes: (B, M, 4) xyxy; boxes_t: (B, 4, M) (same data).  Returns (B, M, M)."""
    B, M, _ = boxes.shape
    tr = min(tile_r, M)
    return pl.pallas_call(
        _pairwise_iou_kernel,
        grid=(B, pl.cdiv(M, tr)),
        in_specs=[pl.BlockSpec((1, tr, 4), lambda b, r: (b, r, 0)),
                  pl.BlockSpec((1, 4, M), lambda b, r: (b, 0, 0))],
        out_specs=pl.BlockSpec((1, tr, M), lambda b, r: (b, r, 0)),
        out_shape=jax.ShapeDtypeStruct((B, M, M), jnp.float32),
        compiler_params=pltpu.CompilerParams(
            dimension_semantics=("parallel", "parallel")),
    )(boxes.astype(jnp.float32), boxes_t.astype(jnp.float32))


# --------------------------------------------------------------------------- #
# JAX glue: find_top_rpn_proposals + forward
# --------------------------------------------------------------------------- #
def _find_top_rpn_proposals(pred_boxes, probs, hw, *, nms_iou_thresh, pre_nms_topk,
                            post_nms_topk, min_box_size):
    B = probs[0].shape[0]
    all_s, all_braw, all_i, all_l = [], [], [], []
    offset = 0
    for lvl, (raw_l, p) in enumerate(zip(pred_boxes, probs)):
        N = p.shape[1]
        k = min(pre_nms_topk, N)
        # TODO(synk): data-dependent top-k + gather stays in plain JAX.
        top_s, top_i = jax.lax.top_k(p, k)                                 # (B, k)
        top_raw = jnp.take_along_axis(raw_l, top_i[:, :, None], axis=1)    # (B, k, 4) cxcywh
        all_s.append(top_s)
        all_braw.append(top_raw)
        all_i.append(top_i + offset)
        all_l.append(jnp.full((B, k), lvl, jnp.int32))
        offset += N

    scores = jnp.concatenate(all_s, axis=1)
    raw = jnp.concatenate(all_braw, axis=1)
    idxs = jnp.concatenate(all_i, axis=1)
    lvls = jnp.concatenate(all_l, axis=1)

    # Pad M to a multiple of 128 so the (B, M, M) IoU output is lane-dense.
    M0 = scores.shape[1]
    M = max(128, _round_up(M0, 128))
    pad = M - M0
    n_levels = len(pred_boxes)
    if pad:
        scores = jnp.pad(scores, ((0, 0), (0, pad)), constant_values=0.0)
        raw = jnp.pad(raw, ((0, 0), (0, pad), (0, 0)), constant_values=0.0)
        idxs = jnp.pad(idxs, ((0, 0), (0, pad)), constant_values=-1)
        lvls = jnp.pad(lvls, ((0, 0), (0, pad)), constant_values=n_levels)

    # batched_nms trick: per-level offsets make cross-level IoU == 0
    max_coord = jnp.max(hw) + 1.0
    lvl_off = lvls.astype(jnp.float32) * (2.0 * max_coord)

    # decode + clip + min-size mask (Pallas; only top-k boxes, not full N)
    boxes, boxes_off, boxes_off_t, valid = decode_clip_boxes(
        raw, lvl_off, hw, min_box_size=min_box_size)

    masked = jnp.where(valid > 0.5, scores, -jnp.inf)

    # pairwise IoU matrix (Pallas, row-tiled)
    # TODO(synk): an in-VMEM fused greedy-NMS kernel (O(K*M)) would avoid materializing
    # this O(M^2) matrix entirely; kept as matrix + JAX selection for robustness.
    iou_mat = pairwise_iou(boxes_off, boxes_off_t)

    K = post_nms_topk
    thresh = nms_iou_thresh

    def nms_one(scores_b, iou_b, idxs_b, boxes_b):
        def body(k_, state):
            cur, keep_i, keep_s = state
            i = jnp.argmax(cur)
            s = cur[i]
            ok = s > -jnp.inf
            keep_i = keep_i.at[k_].set(jnp.where(ok, i.astype(jnp.int32), jnp.int32(-1)))
            keep_s = keep_s.at[k_].set(jnp.where(ok, s, jnp.float32(-1.0)))
            cur = jnp.where(iou_b[i] > thresh, -jnp.inf, cur)
            cur = cur.at[i].set(-jnp.inf)
            return cur, keep_i, keep_s

        init = (scores_b,
                jnp.full((K,), -1, jnp.int32),
                jnp.full((K,), -1.0, jnp.float32))
        _, keep_i, keep_s = jax.lax.fori_loop(0, K, body, init)
        sel = jnp.maximum(keep_i, 0)
        out_boxes = jnp.where((keep_i >= 0)[:, None], boxes_b[sel], 0.0)
        out_index = jnp.where(keep_i >= 0, idxs_b[sel], jnp.int32(-1))
        return keep_s, out_boxes, out_index

    return jax.vmap(nms_one)(masked, iou_mat, idxs, boxes)


def _forward_impl(pred_logits, pred_boxes, gt_boxes, gt_classes, gt_valid, hw, *,
                  nms_iou_thresh, gt_iou_thresh, pre_nms_topk, post_nms_topk,
                  min_box_size):
    B = pred_logits[0].shape[0]
    G = gt_boxes.shape[1]
    scales = jnp.stack([hw[:, 1], hw[:, 0], hw[:, 1], hw[:, 0]], axis=1)  # (B,4)=(W,H,W,H)

    # 1) per-scale objectness prob = mean_c sigmoid(logits)         [Pallas, tiled]
    multiscale_prob = [sigmoid_mean(l) for l in pred_logits]

    # 2) GT matching vs last-scale proposals (decode fused in-kernel) [Pallas]
    max_iou, max_idx = gt_proposal_iou(gt_boxes, pred_boxes[-1], hw)      # (B,G)

    # statistics (device-side; host state folded outside the jit)
    n_valid = jnp.sum(gt_valid.astype(jnp.int32))
    iou_sum = jnp.sum(jnp.where(gt_valid, max_iou, 0.0))
    n_discard = jnp.sum((gt_valid & (max_iou <= gt_iou_thresh)).astype(jnp.int32))

    # 3) boost matched proposals' scores to gt_class + 100 (vectorized scatter)
    N_last = multiscale_prob[-1].shape[1]
    boost = gt_valid & (max_iou > gt_iou_thresh)
    tgt = jnp.where(boost, max_idx, N_last)                               # dummy slot
    vals = gt_classes.astype(jnp.float32) + 100.0
    prob_ext = jnp.concatenate(
        [multiscale_prob[-1], jnp.zeros((B, 1), jnp.float32)], axis=1)
    b_ids = jnp.broadcast_to(jnp.arange(B)[:, None], (B, G))
    prob_ext = prob_ext.at[b_ids, tgt].set(vals)
    multiscale_prob[-1] = prob_ext[:, :N_last]

    # 4) find_top_rpn_proposals (top-k, decode/clip, per-level NMS, post top-k)
    nms_prob, nms_boxes, nms_index = _find_top_rpn_proposals(
        pred_boxes, multiscale_prob, hw,
        nms_iou_thresh=nms_iou_thresh, pre_nms_topk=pre_nms_topk,
        post_nms_topk=post_nms_topk, min_box_size=min_box_size)

    # 5) normalize NMS boxes back by (W, H, W, H)
    nms_boxes = nms_boxes / scales[:, None, :]

    # 6) gt_labels: class for boosted (>=100) proposals, else -1
    gt_labels = jnp.where(nms_prob >= 100.0,
                          (nms_prob - 100.0).astype(jnp.int32), jnp.int32(-1))

    out = {'nms_prob': nms_prob, 'nms_boxes': nms_boxes,
           'nms_index': nms_index, 'gt_labels': gt_labels}
    return out, (iou_sum, n_valid, n_discard)


class RegionQueryGeneratorPallas:
    def __init__(self, nms_iou_thresh=0.1, gt_iou_thresh=0.5,
                 pre_nms_topk=256, post_nms_topk=256, min_box_size=10.0):
        self.nms_iou_thresh = float(nms_iou_thresh)
        self.gt_iou_thresh = float(gt_iou_thresh)
        self.pre_nms_topk = int(pre_nms_topk)
        self.post_nms_topk = int(post_nms_topk)
        self.min_box_size = float(min_box_size)
        # running statistics live on device (no host syncs)
        self.gt_prop_iou_mean = jnp.zeros((), jnp.float32)
        self.gt_count = jnp.zeros((), jnp.int32)
        self.discard_gt_count = jnp.zeros((), jnp.int32)
        # TODO(synk): self.rpn (full GeneralizedRCNN built from a yaml) is not instantiated;
        # the reference defaults to rpn=None and consumes precomputed multiscale outputs.
        self._forward = jax.jit(functools.partial(
            _forward_impl,
            nms_iou_thresh=self.nms_iou_thresh,
            gt_iou_thresh=self.gt_iou_thresh,
            pre_nms_topk=self.pre_nms_topk,
            post_nms_topk=self.post_nms_topk,
            min_box_size=self.min_box_size))

    def __call__(self, dict_input):
        pred_logits = tuple(dict_input['multiscale_pred_logits'])   # list of (B, N_l, C)
        pred_boxes = tuple(dict_input['multiscale_pred_boxes'])     # list of (B, N_l, 4)
        gt_boxes = dict_input['gt_boxes']                            # (B, G, 4) xyxy px
        gt_classes = dict_input['gt_classes']                        # (B, G) int32
        gt_valid = dict_input['gt_valid']                            # (B, G) bool
        hw = jnp.asarray(dict_input['image_sizes'], jnp.float32)     # (B, 2) = (H, W)

        out, (iou_sum, n_valid, n_discard) = self._forward(
            pred_logits, pred_boxes, gt_boxes, gt_classes, gt_valid, hw)

        # running IoU bookkeeping (mirrors the torch module's statistics), device-side
        new_count = self.gt_count + n_valid
        self.gt_prop_iou_mean = jnp.where(
            n_valid > 0,
            (self.gt_prop_iou_mean * self.gt_count.astype(jnp.float32) + iou_sum)
            / jnp.maximum(new_count, 1).astype(jnp.float32),
            self.gt_prop_iou_mean)
        self.gt_count = new_count
        self.discard_gt_count = self.discard_gt_count + n_discard
        return out


# --------------------------------------------------------------------------- #
# main
# --------------------------------------------------------------------------- #
if __name__ == "__main__":
    key = jax.random.PRNGKey(0)
    B = 2
    C = 4                       # logits per proposal (sigmoid + mean over this dim)
    N_levels = [64, 128]        # proposals per feature level
    image_sizes = [(64.0, 48.0), (56.0, 72.0)]   # (H, W) per image
    G = 4                       # padded GT slots per image
    gt_counts = [2, 3]
    num_classes = 10

    keys = jax.random.split(key, 2 * len(N_levels) + 2)
    pred_logits, pred_boxes = [], []
    for i, N in enumerate(N_levels):
        kl, kb = keys[2 * i], keys[2 * i + 1]
        pred_logits.append(jax.random.normal(kl, (B, N, C), jnp.float32))
        kc, kw = jax.random.split(kb)
        cxcy = jax.random.uniform(kc, (B, N, 2), minval=0.25, maxval=0.75)
        wh = jax.random.uniform(kw, (B, N, 2), minval=0.05, maxval=0.45)
        pred_boxes.append(jnp.concatenate([cxcy, wh], axis=-1).astype(jnp.float32))

    kg = keys[-2]
    ktest = keys[-1]
    gt_boxes = jnp.zeros((B, G, 4), jnp.float32)
    gt_classes = jnp.zeros((B, G), jnp.int32)
    gt_valid = jnp.zeros((B, G), bool)
    for b in range(B):
        Hb, Wb = image_sizes[b]
        k1, k2, k3, kg = jax.random.split(kg, 4)
        xy1 = jax.random.uniform(k1, (G, 2)) * jnp.array([Wb * 0.5, Hb * 0.5])
        whg = jax.random.uniform(k2, (G, 2), minval=8.0, maxval=24.0)
        xy2 = jnp.minimum(xy1 + whg, jnp.array([Wb, Hb]))
        gt_boxes = gt_boxes.at[b].set(jnp.concatenate([xy1, xy2], axis=-1))
        gt_classes = gt_classes.at[b].set(jax.random.randint(k3, (G,), 0, num_classes))
        gt_valid = gt_valid.at[b, :gt_counts[b]].set(True)

    model = RegionQueryGeneratorPallas(nms_iou_thresh=0.1, gt_iou_thresh=0.5,
                                       pre_nms_topk=32, post_nms_topk=16,
                                       min_box_size=2.0)
    out = model({'multiscale_pred_logits': pred_logits,
                 'multiscale_pred_boxes': pred_boxes,
                 'gt_boxes': gt_boxes, 'gt_classes': gt_classes,
                 'gt_valid': gt_valid, 'image_sizes': image_sizes})
    jax.block_until_ready(out)

    hw = jnp.asarray(image_sizes, jnp.float32)
    Wv = hw[:, 1][:, None]
    Hv = hw[:, 0][:, None]

    # --- sanity: sigmoid-mean kernel vs jnp ---
    p_ref = jnp.mean(jax.nn.sigmoid(pred_logits[0]), axis=-1)
    assert jnp.allclose(sigmoid_mean(pred_logits[0]), p_ref, atol=1e-5)

    # --- sanity: fused decode + GT IoU max/argmax vs jnp ---
    raw_last = pred_boxes[-1]
    props_ref = jnp.stack(
        [(raw_last[..., 0] - 0.5 * raw_last[..., 2]) * Wv,
         (raw_last[..., 1] - 0.5 * raw_last[..., 3]) * Hv,
         (raw_last[..., 0] + 0.5 * raw_last[..., 2]) * Wv,
         (raw_last[..., 1] + 0.5 * raw_last[..., 3]) * Hv], axis=-1)      # (B, N, 4)
    gx1, gy1 = gt_boxes[..., 0:1], gt_boxes[..., 1:2]
    gx2, gy2 = gt_boxes[..., 2:3], gt_boxes[..., 3:4]
    px1, py1 = props_ref[..., 0][:, None, :], props_ref[..., 1][:, None, :]
    px2, py2 = props_ref[..., 2][:, None, :], props_ref[..., 3][:, None, :]
    inter = (jnp.maximum(jnp.minimum(gx2, px2) - jnp.maximum(gx1, px1), 0.0) *
             jnp.maximum(jnp.minimum(gy2, py2) - jnp.maximum(gy1, py1), 0.0))
    union = (gx2 - gx1) * (gy2 - gy1) + (px2 - px1) * (py2 - py1) - inter
    iou_full = inter / jnp.maximum(union, 1e-9)                           # (B, G, N)
    max_pal, arg_pal = gt_proposal_iou(gt_boxes, raw_last, hw)
    assert jnp.allclose(max_pal, iou_full.max(-1), atol=3e-3)
    iou_at_arg = jnp.take_along_axis(iou_full, arg_pal[..., None], axis=-1)[..., 0]
    assert jnp.all(iou_at_arg >= iou_full.max(-1) - 3e-3)

    # --- sanity: pairwise IoU kernel vs jnp ---
    k1, k2, k3, k4 = jax.random.split(ktest, 4)
    Mt = 128
    tx1 = jax.random.uniform(k1, (B, Mt, 1)) * 50.0
    ty1 = jax.random.uniform(k2, (B, Mt, 1)) * 50.0
    tw = jax.random.uniform(k3, (B, Mt, 1), minval=1.0, maxval=30.0)
    th = jax.random.uniform(k4, (B, Mt, 1), minval=1.0, maxval=30.0)
    btest = jnp.concatenate([tx1, ty1, tx1 + tw, ty1 + th], axis=-1)
    iou_pal = pairwise_iou(btest, jnp.transpose(btest, (0, 2, 1)))
    bx1, by1, bx2, by2 = btest[..., 0], btest[..., 1], btest[..., 2], btest[..., 3]
    ii = (jnp.maximum(jnp.minimum(bx2[:, :, None], bx2[:, None, :]) -
                      jnp.maximum(bx1[:, :, None], bx1[:, None, :]), 0.0) *
          jnp.maximum(jnp.minimum(by2[:, :, None], by2[:, None, :]) -
                      jnp.maximum(by1[:, :, None], by1[:, None, :]), 0.0))
    aa = (bx2 - bx1) * (by2 - by1)
    uu = aa[:, :, None] + aa[:, None, :] - ii
    iou_ref_mat = ii / jnp.maximum(uu, 1e-9)
    assert jnp.allclose(iou_pal, iou_ref_mat, atol=5e-3)

    # --- sanity: decode/clip kernel vs jnp ---
    raw_t = jax.random.uniform(k1, (B, Mt, 4), minval=0.1, maxval=0.6)
    clip_pal, _, _, _ = decode_clip_boxes(raw_t, jnp.zeros((B, Mt)), hw, min_box_size=2.0)
    x1r = jnp.clip((raw_t[..., 0] - 0.5 * raw_t[..., 2]) * Wv, 0.0, Wv)
    y1r = jnp.clip((raw_t[..., 1] - 0.5 * raw_t[..., 3]) * Hv, 0.0, Hv)
    x2r = jnp.clip((raw_t[..., 0] + 0.5 * raw_t[..., 2]) * Wv, 0.0, Wv)
    y2r = jnp.clip((raw_t[..., 1] + 0.5 * raw_t[..., 3]) * Hv, 0.0, Hv)
    clip_ref = jnp.stack([x1r, y1r, x2r, y2r], axis=-1)
    assert jnp.allclose(clip_pal, clip_ref, atol=1e-4)

    K = model.post_nms_topk
    assert out['nms_prob'].shape == (B, K)
    assert out['nms_boxes'].shape == (B, K, 4)
    assert out['nms_index'].shape == (B, K)
    assert out['gt_labels'].shape == (B, K)

    print("KERNEL_OK")
</pallas_src>

<mosaic_0001>
module attributes {stable_mosaic.version = 11 : i64} {
  func.func @_gt_iou_kernel(%arg0: i32, %arg1: i32, %arg2: memref<2x2xf32, #tpu.memory_space<smem>>, %arg3: memref<1x4x4xf32, #tpu.memory_space<vmem>>, %arg4: memref<1x4x128xf32, #tpu.memory_space<vmem>>, %arg5: memref<1x4x1xf32, #tpu.memory_space<vmem>>, %arg6: memref<1x4x1xi32, #tpu.memory_space<vmem>>) attributes {dimension_semantics = [#tpu.dimension_semantics<parallel>, #tpu.dimension_semantics<arbitrary>], iteration_bounds = array<i64: 2, 1>, scalar_prefetch = 0 : i64, scratch_operands = 0 : i64, tpu.core_type = #tpu.core_type<tc>, window_params = [{transform_indices = @transform_0, window_bounds = array<i64: 2, 2>}, {transform_indices = @transform_1, window_bounds = array<i64: 1, 4, 4>}, {transform_indices = @transform_2, window_bounds = array<i64: 1, 4, 128>}, {transform_indices = @transform_3, window_bounds = array<i64: 1, 4, 1>}, {transform_indices = @transform_4, window_bounds = array<i64: 1, 4, 1>}]} {
    %c0_i32 = arith.constant 0 : i32
    %0 = arith.cmpi eq, %arg1, %c0_i32 : i32
    %1 = arith.extui %0 : i1 to i32
    %c0_i32_0 = arith.constant 0 : i32
    %2 = arith.cmpi ne, %1, %c0_i32_0 : i32
    scf.if %2 {
      %cst_33 = arith.constant -1.000000e+00 : f32
      %103 = vector.broadcast %cst_33 : f32 to vector<1x4x1xf32>
      %c0_34 = arith.constant 0 : index
      %c0_35 = arith.constant 0 : index
      %c0_36 = arith.constant 0 : index
      %104 = vector.load %arg5[%c0_34, %c0_35, %c0_36] : memref<1x4x1xf32, #tpu.memory_space<vmem>>, vector<1x4x1xf32>
      tpu.vector_store %arg5[%c0_34, %c0_35, %c0_36], %103 {strides = array<i32>} : memref<1x4x1xf32, #tpu.memory_space<vmem>>, vector<1x4x1xf32>,
      %c0_i32_37 = arith.constant 0 : i32
      %105 = vector.broadcast %c0_i32_37 : i32 to vector<1x4x1xi32>
      %c0_38 = arith.constant 0 : index
      %c0_39 = arith.constant 0 : index
      %c0_40 = arith.constant 0 : index
      %106 = vector.load %arg6[%c0_38, %c0_39, %c0_40] : memref<1x4x1xi32, #tpu.memory_space<vmem>>, vector<1x4x1xi32>
      tpu.vector_store %arg6[%c0_38, %c0_39, %c0_40], %105 {strides = array<i32>} : memref<1x4x1xi32, #tpu.memory_space<vmem>>, vector<1x4x1xi32>,
    } else {
    }
    %3 = arith.index_cast %arg0 : i32 to index
    %c1 = arith.constant 1 : index
    %4 = memref.load %arg2[%3, %c1] : memref<2x2xf32, #tpu.memory_space<smem>>
    %5 = arith.index_cast %arg0 : i32 to index
    %c0 = arith.constant 0 : index
    %6 = memref.load %arg2[%5, %c0] : memref<2x2xf32, #tpu.memory_space<smem>>
    %c0_1 = arith.constant 0 : index
    %c0_2 = arith.constant 0 : index
    %c0_3 = arith.constant 0 : index
    %7 = vector.load %arg4[%c0_1, %c0_2, %c0_3] : memref<1x4x128xf32, #tpu.memory_space<vmem>>, vector<1x4x128xf32>
    %8 = vector.shape_cast %7 : vector<1x4x128xf32> to vector<4x128xf32>
    %9 = vector.extract_strided_slice %8 {offsets = [0, 0], sizes = [1, 128], strides = [1, 1]} : vector<4x128xf32> to vector<1x128xf32>
    %10 = vector.extract_strided_slice %8 {offsets = [1, 0], sizes = [1, 128], strides = [1, 1]} : vector<4x128xf32> to vector<1x128xf32>
    %11 = vector.extract_strided_slice %8 {offsets = [2, 0], sizes = [1, 128], strides = [1, 1]} : vector<4x128xf32> to vector<1x128xf32>
    %12 = vector.extract_strided_slice %8 {offsets = [3, 0], sizes = [1, 128], strides = [1, 1]} : vector<4x128xf32> to vector<1x128xf32>
    %cst = arith.constant 5.000000e-01 : f32
    %13 = vector.broadcast %cst : f32 to vector<1x128xf32>
    %14 = arith.mulf %13, %11 : vector<1x128xf32>
    %15 = arith.subf %9, %14 : vector<1x128xf32>
    %16 = vector.broadcast %4 : f32 to vector<1x128xf32>
    %17 = arith.mulf %15, %16 : vector<1x128xf32>
    %cst_4 = arith.constant 5.000000e-01 : f32
    %18 = vector.broadcast %cst_4 : f32 to vector<1x128xf32>
    %19 = arith.mulf %18, %12 : vector<1x128xf32>
    %20 = arith.subf %10, %19 : vector<1x128xf32>
    %21 = vector.broadcast %6 : f32 to vector<1x128xf32>
    %22 = arith.mulf %20, %21 : vector<1x128xf32>
    %cst_5 = arith.constant 5.000000e-01 : f32
    %23 = vector.broadcast %cst_5 : f32 to vector<1x128xf32>
    %24 = arith.mulf %23, %11 : vector<1x128xf32>
    %25 = arith.addf %9, %24 : vector<1x128xf32>
    %26 = vector.broadcast %4 : f32 to vector<1x128xf32>
    %27 = arith.mulf %25, %26 : vector<1x128xf32>
    %cst_6 = arith.constant 5.000000e-01 : f32
    %28 = vector.broadcast %cst_6 : f32 to vector<1x128xf32>
    %29 = arith.mulf %28, %12 : vector<1x128xf32>
    %30 = arith.addf %10, %29 : vector<1x128xf32>
    %31 = vector.broadcast %6 : f32 to vector<1x128xf32>
    %32 = arith.mulf %30, %31 : vector<1x128xf32>
    %c0_7 = arith.constant 0 : index
    %c0_8 = arith.constant 0 : index
    %c0_9 = arith.constant 0 : index
    %33 = vector.load %arg3[%c0_7, %c0_8, %c0_9] : memref<1x4x4xf32, #tpu.memory_space<vmem>>, vector<1x4x4xf32>
    %34 = vector.shape_cast %33 : vector<1x4x4xf32> to vector<4x4xf32>
    %35 = vector.extract_strided_slice %34 {offsets = [0, 0], sizes = [4, 1], strides = [1, 1]} : vector<4x4xf32> to vector<4x1xf32>
    %36 = vector.extract_strided_slice %34 {offsets = [0, 1], sizes = [4, 1], strides = [1, 1]} : vector<4x4xf32> to vector<4x1xf32>
    %37 = vector.extract_strided_slice %34 {offsets = [0, 2], sizes = [4, 1], strides = [1, 1]} : vector<4x4xf32> to vector<4x1xf32>
    %38 = vector.extract_strided_slice %34 {offsets = [0, 3], sizes = [4, 1], strides = [1, 1]} : vector<4x4xf32> to vector<4x1xf32>
    %39 = vector.broadcast %35 : vector<4x1xf32> to vector<4x128xf32>
    %40 = vector.broadcast %17 : vector<1x128xf32> to vector<4x128xf32>
    %41 = arith.maximumf %39, %40 : vector<4x128xf32>
    %42 = vector.broadcast %36 : vector<4x1xf32> to vector<4x128xf32>
    %43 = vector.broadcast %22 : vector<1x128xf32> to vector<4x128xf32>
    %44 = arith.maximumf %42, %43 : vector<4x128xf32>
    %45 = vector.broadcast %37 : vector<4x1xf32> to vector<4x128xf32>
    %46 = vector.broadcast %27 : vector<1x128xf32> to vector<4x128xf32>
    %47 = arith.minimumf %45, %46 : vector<4x128xf32>
    %48 = vector.broadcast %38 : vector<4x1xf32> to vector<4x128xf32>
    %49 = vector.broadcast %32 : vector<1x128xf32> to vector<4x128xf32>
    %50 = arith.minimumf %48, %49 : vector<4x128xf32>
    %51 = arith.subf %47, %41 : vector<4x128xf32>
    %cst_10 = arith.constant 0.000000e+00 : f32
    %52 = vector.broadcast %cst_10 : f32 to vector<4x128xf32>
    %53 = arith.maximumf %51, %52 : vector<4x128xf32>
    %54 = arith.subf %50, %44 : vector<4x128xf32>
    %cst_11 = arith.constant 0.000000e+00 : f32
    %55 = vector.broadcast %cst_11 : f32 to vector<4x128xf32>
    %56 = arith.maximumf %54, %55 : vector<4x128xf32>
    %57 = arith.mulf %53, %56 : vector<4x128xf32>
    %58 = arith.subf %37, %35 : vector<4x1xf32>
    %59 = arith.subf %38, %36 : vector<4x1xf32>
    %60 = arith.mulf %58, %59 : vector<4x1xf32>
    %61 = arith.subf %27, %17 : vector<1x128xf32>
    %62 = arith.subf %32, %22 : vector<1x128xf32>
    %63 = arith.mulf %61, %62 : vector<1x128xf32>
    %64 = vector.broadcast %60 : vector<4x1xf32> to vector<4x128xf32>
    %65 = vector.broadcast %63 : vector<1x128xf32> to vector<4x128xf32>
    %66 = arith.addf %64, %65 : vector<4x128xf32>
    %67 = arith.subf %66, %57 : vector<4x128xf32>
    %cst_12 = arith.constant 9.99999971E-10 : f32
    %68 = vector.broadcast %cst_12 : f32 to vector<4x128xf32>
    %69 = arith.maximumf %67, %68 : vector<4x128xf32>
    %70 = tpu.reciprocal %69 {approx = true} : vector<4x128xf32> -> vector<4x128xf32>
    %71 = arith.mulf %57, %70 : vector<4x128xf32>
    %72 = tpu.iota {dimensions = array<i32: 1>} : vector<4x128xi32>
    %c128_i32 = arith.constant 128 : i32
    %73 = arith.muli %arg1, %c128_i32 : i32
    %74 = vector.broadcast %73 : i32 to vector<4x128xi32>
    %75 = arith.addi %72, %74 : vector<4x128xi32>
    %c128_i32_13 = arith.constant 128 : i32
    %76 = vector.broadcast %c128_i32_13 : i32 to vector<4x128xi32>
    %77 = arith.cmpi slt, %75, %76 : vector<4x128xi32>
    %cst_14 = arith.constant -1.000000e+00 : f32
    %78 = vector.broadcast %cst_14 : f32 to vector<4x128xf32>
    %79 = arith.select %77, %71, %78 : vector<4x128xi1>, vector<4x128xf32>
    %cst_15 = arith.constant dense<0xFF800000> : vector<4xf32>
    %80 = vector.multi_reduction <maximumf>, %79, %cst_15 [1] : vector<4x128xf32> to vector<4xf32>
    %81 = vector.shape_cast %80 : vector<4xf32> to vector<4x1xf32>
    %c128_i32_16 = arith.constant 128 : i32
    %82 = vector.broadcast %c128_i32_16 : i32 to vector<4x128xi32>
    %83 = vector.broadcast %81 : vector<4x1xf32> to vector<4x128xf32>
    %84 = arith.cmpf oeq, %79, %83 : vector<4x128xf32>
    %85 = arith.select %84, %75, %82 : vector<4x128xi1>, vector<4x128xi32>
    %cst_17 = arith.constant dense<2147483647> : vector<4xi32>
    %86 = vector.multi_reduction <minsi>, %85, %cst_17 [1] : vector<4x128xi32> to vector<4xi32>
    %87 = vector.shape_cast %86 : vector<4xi32> to vector<4x1xi32>
    %c0_18 = arith.constant 0 : index
    %c0_19 = arith.constant 0 : index
    %c0_20 = arith.constant 0 : index
    %88 = vector.load %arg5[%c0_18, %c0_19, %c0_20] : memref<1x4x1xf32, #tpu.memory_space<vmem>>, vector<1x4x1xf32>
    %89 = vector.shape_cast %88 : vector<1x4x1xf32> to vector<4x1xf32>
    %90 = arith.cmpf ogt, %81, %89 : vector<4x1xf32>
    %c0_21 = arith.constant 0 : index
    %c0_22 = arith.constant 0 : index
    %c0_23 = arith.constant 0 : index
    %91 = vector.load %arg5[%c0_21, %c0_22, %c0_23] : memref<1x4x1xf32, #tpu.memory_space<vmem>>, vector<1x4x1xf32>
    %92 = vector.shape_cast %91 : vector<1x4x1xf32> to vector<4x1xf32>
    %93 = arith.select %90, %81, %92 : vector<4x1xi1>, vector<4x1xf32>
    %c0_24 = arith.constant 0 : index
    %c0_25 = arith.constant 0 : index
    %c0_26 = arith.constant 0 : index
    %94 = vector.load %arg5[%c0_24, %c0_25, %c0_26] : memref<1x4x1xf32, #tpu.memory_space<vmem>>, vector<1x4x1xf32>
    %95 = vector.shape_cast %94 : vector<1x4x1xf32> to vector<4x1xf32>
    %96 = vector.shape_cast %93 : vector<4x1xf32> to vector<1x4x1xf32>
    tpu.vector_store %arg5[%c0_24, %c0_25, %c0_26], %96 {strides = array<i32>} : memref<1x4x1xf32, #tpu.memory_space<vmem>>, vector<1x4x1xf32>,
    %c0_27 = arith.constant 0 : index
    %c0_28 = arith.constant 0 : index
    %c0_29 = arith.constant 0 : index
    %97 = vector.load %arg6[%c0_27, %c0_28, %c0_29] : memref<1x4x1xi32, #tpu.memory_space<vmem>>, vector<1x4x1xi32>
    %98 = vector.shape_cast %97 : vector<1x4x1xi32> to vector<4x1xi32>
    %99 = arith.select %90, %87, %98 : vector<4x1xi1>, vector<4x1xi32>
    %c0_30 = arith.constant 0 : index
    %c0_31 = arith.constant 0 : index
    %c0_32 = arith.constant 0 : index
    %100 = vector.load %arg6[%c0_30, %c0_31, %c0_32] : memref<1x4x1xi32, #tpu.memory_space<vmem>>, vector<1x4x1xi32>
    %101 = vector.shape_cast %100 : vector<1x4x1xi32> to vector<4x1xi32>
    %102 = vector.shape_cast %99 : vector<4x1xi32> to vector<1x4x1xi32>
    tpu.vector_store %arg6[%c0_30, %c0_31, %c0_32], %102 {strides = array<i32>} : memref<1x4x1xi32, #tpu.memory_space<vmem>>, vector<1x4x1xi32>,
    return
  }
  func.func @transform_0(%arg0: i32, %arg1: i32) -> (i32, i32) {
    %c0_i32 = arith.constant 0 : i32
    %c0_i32_0 = arith.constant 0 : i32
    %c0_i32_1 = arith.constant 0 : i32
    return %c0_i32, %c0_i32_0 : i32, i32
  }
  func.func @transform_1(%arg0: i32, %arg1: i32) -> (i32, i32, i32) {
    %c0_i32 = arith.constant 0 : i32
    %c0_i32_0 = arith.constant 0 : i32
    %c0_i32_1 = arith.constant 0 : i32
    return %arg0, %c0_i32, %c0_i32_0 : i32, i32, i32
  }
  func.func @transform_2(%arg0: i32, %arg1: i32) -> (i32, i32, i32) {
    %c0_i32 = arith.constant 0 : i32
    %c0_i32_0 = arith.constant 0 : i32
    return %arg0, %c0_i32, %arg1 : i32, i32, i32
  }
  func.func @transform_3(%arg0: i32, %arg1: i32) -> (i32, i32, i32) {
    %c0_i32 = arith.constant 0 : i32
    %c0_i32_0 = arith.constant 0 : i32
    %c0_i32_1 = arith.constant 0 : i32
    return %arg0, %c0_i32, %c0_i32_0 : i32, i32, i32
  }
  func.func @transform_4(%arg0: i32, %arg1: i32) -> (i32, i32, i32) {
    %c0_i32 = arith.constant 0 : i32
    %c0_i32_0 = arith.constant 0 : i32
    %c0_i32_1 = arith.constant 0 : i32
    return %arg0, %c0_i32, %c0_i32_0 : i32, i32, i32
  }
}

module attributes {stable_mosaic.version = 11 : i64} {
  func.func @_sigmoid_mean_kernel(%arg0: i32, %arg1: i32, %arg2: memref<1x128x4xf32, #tpu.memory_space<vmem>>, %arg3: memref<1x128x1xf32, #tpu.memory_space<vmem>>) attributes {dimension_semantics = [#tpu.dimension_semantics<parallel>, #tpu.dimension_semantics<parallel>], iteration_bounds = array<i64: 2, 1>, scalar_prefetch = 0 : i64, scratch_operands = 0 : i64, tpu.core_type = #tpu.core_type<tc>, window_params = [{transform_indices = @transform_0, window_bounds = array<i64: 1, 128, 4>}, {transform_indices = @transform_1, window_bounds = array<i64: 1, 128, 1>}]} {
    %c0 = arith.constant 0 : index
    %c0_0 = arith.constant 0 : index
    %c0_1 = arith.constant 0 : index
    %0 = vector.load %arg2[%c0, %c0_0, %c0_1] : memref<1x128x4xf32, #tpu.memory_space<vmem>>, vector<1x128x4xf32>
    %1 = arith.negf %0 : vector<1x128x4xf32>
    %2 = math.exp %1 : vector<1x128x4xf32>
    %cst = arith.constant 1.000000e+00 : f32
    %3 = vector.broadcast %cst : f32 to vector<1x128x4xf32>
    %4 = arith.addf %3, %2 : vector<1x128x4xf32>
    %5 = arith.divf %3, %4 : vector<1x128x4xf32>
    %cst_2 = arith.constant dense<0.000000e+00> : vector<1x128xf32>
    %6 = vector.multi_reduction <add>, %5, %cst_2 [2] : vector<1x128x4xf32> to vector<1x128xf32>
    %7 = vector.shape_cast %6 : vector<1x128xf32> to vector<1x128x1xf32>
    %cst_3 = arith.constant 4.000000e+00 : f32
    %8 = vector.broadcast %cst_3 : f32 to vector<1x128x1xf32>
    %9 = arith.divf %7, %8 : vector<1x128x1xf32>
    %c0_4 = arith.constant 0 : index
    %c0_5 = arith.constant 0 : index
    %c0_6 = arith.constant 0 : index
    %10 = vector.load %arg3[%c0_4, %c0_5, %c0_6] : memref<1x128x1xf32, #tpu.memory_space<vmem>>, vector<1x128x1xf32>
    tpu.vector_store %arg3[%c0_4, %c0_5, %c0_6], %9 {strides = array<i32>} : memref<1x128x1xf32, #tpu.memory_space<vmem>>, vector<1x128x1xf32>,
    return
  }
  func.func @transform_0(%arg0: i32, %arg1: i32) -> (i32, i32, i32) {
    %c0_i32 = arith.constant 0 : i32
    %c0_i32_0 = arith.constant 0 : i32
    return %arg0, %arg1, %c0_i32 : i32, i32, i32
  }
  func.func @transform_1(%arg0: i32, %arg1: i32) -> (i32, i32, i32) {
    %c0_i32 = arith.constant 0 : i32
    %c0_i32_0 = arith.constant 0 : i32
    return %arg0, %arg1, %c0_i32 : i32, i32, i32
  }
}

module attributes {stable_mosaic.version = 11 : i64} {
  func.func @_sigmoid_mean_kernel(%arg0: i32, %arg1: i32, %arg2: memref<1x64x4xf32, #tpu.memory_space<vmem>>, %arg3: memref<1x64x1xf32, #tpu.memory_space<vmem>>) attributes {dimension_semantics = [#tpu.dimension_semantics<parallel>, #tpu.dimension_semantics<parallel>], iteration_bounds = array<i64: 2, 1>, scalar_prefetch = 0 : i64, scratch_operands = 0 : i64, tpu.core_type = #tpu.core_type<tc>, window_params = [{transform_indices = @transform_0, window_bounds = array<i64: 1, 64, 4>}, {transform_indices = @transform_1, window_bounds = array<i64: 1, 64, 1>}]} {
    %c0 = arith.constant 0 : index
    %c0_0 = arith.constant 0 : index
    %c0_1 = arith.constant 0 : index
    %0 = vector.load %arg2[%c0, %c0_0, %c0_1] : memref<1x64x4xf32, #tpu.memory_space<vmem>>, vector<1x64x4xf32>
    %1 = arith.negf %0 : vector<1x64x4xf32>
    %2 = math.exp %1 : vector<1x64x4xf32>
    %cst = arith.constant 1.000000e+00 : f32
    %3 = vector.broadcast %cst : f32 to vector<1x64x4xf32>
    %4 = arith.addf %3, %2 : vector<1x64x4xf32>
    %5 = arith.divf %3, %4 : vector<1x64x4xf32>
    %cst_2 = arith.constant dense<0.000000e+00> : vector<1x64xf32>
    %6 = vector.multi_reduction <add>, %5, %cst_2 [2] : vector<1x64x4xf32> to vector<1x64xf32>
    %7 = vector.shape_cast %6 : vector<1x64xf32> to vector<1x64x1xf32>
    %cst_3 = arith.constant 4.000000e+00 : f32
    %8 = vector.broadcast %cst_3 : f32 to vector<1x64x1xf32>
    %9 = arith.divf %7, %8 : vector<1x64x1xf32>
    %c0_4 = arith.constant 0 : index
    %c0_5 = arith.constant 0 : index
    %c0_6 = arith.constant 0 : index
    %10 = vector.load %arg3[%c0_4, %c0_5, %c0_6] : memref<1x64x1xf32, #tpu.memory_space<vmem>>, vector<1x64x1xf32>
    tpu.vector_store %arg3[%c0_4, %c0_5, %c0_6], %9 {strides = array<i32>} : memref<1x64x1xf32, #tpu.memory_space<vmem>>, vector<1x64x1xf32>,
    return
  }
  func.func @transform_0(%arg0: i32, %arg1: i32) -> (i32, i32, i32) {
    %c0_i32 = arith.constant 0 : i32
    %c0_i32_0 = arith.constant 0 : i32
    return %arg0, %arg1, %c0_i32 : i32, i32, i32
  }
  func.func @transform_1(%arg0: i32, %arg1: i32) -> (i32, i32, i32) {
    %c0_i32 = arith.constant 0 : i32
    %c0_i32_0 = arith.constant 0 : i32
    return %arg0, %arg1, %c0_i32 : i32, i32, i32
  }
}

module attributes {stable_mosaic.version = 11 : i64} {
  func.func @_decode_clip_kernel(%arg0: i32, %arg1: memref<2x2xf32, #tpu.memory_space<smem>>, %arg2: memref<1x4x128xf32, #tpu.memory_space<vmem>>, %arg3: memref<1x1x128xf32, #tpu.memory_space<vmem>>, %arg4: memref<1x4x128xf32, #tpu.memory_space<vmem>>, %arg5: memref<1x4x128xf32, #tpu.memory_space<vmem>>, %arg6: memref<1x1x128xf32, #tpu.memory_space<vmem>>) attributes {dimension_semantics = [#tpu.dimension_semantics<parallel>], iteration_bounds = array<i64: 2>, scalar_prefetch = 0 : i64, scratch_operands = 0 : i64, tpu.core_type = #tpu.core_type<tc>, window_params = [{transform_indices = @transform_0, window_bounds = array<i64: 2, 2>}, {transform_indices = @transform_1, window_bounds = array<i64: 1, 4, 128>}, {transform_indices = @transform_2, window_bounds = array<i64: 1, 1, 128>}, {transform_indices = @transform_3, window_bounds = array<i64: 1, 4, 128>}, {transform_indices = @transform_4, window_bounds = array<i64: 1, 4, 128>}, {transform_indices = @transform_5, window_bounds = array<i64: 1, 1, 128>}]} {
    %0 = arith.index_cast %arg0 : i32 to index
    %c0 = arith.constant 0 : index
    %1 = memref.load %arg1[%0, %c0] : memref<2x2xf32, #tpu.memory_space<smem>>
    %2 = arith.index_cast %arg0 : i32 to index
    %c1 = arith.constant 1 : index
    %3 = memref.load %arg1[%2, %c1] : memref<2x2xf32, #tpu.memory_space<smem>>
    %c0_0 = arith.constant 0 : index
    %c0_1 = arith.constant 0 : index
    %c0_2 = arith.constant 0 : index
    %4 = vector.load %arg2[%c0_0, %c0_1, %c0_2] : memref<1x4x128xf32, #tpu.memory_space<vmem>>, vector<1x4x128xf32>
    %5 = vector.shape_cast %4 : vector<1x4x128xf32> to vector<4x128xf32>
    %6 = vector.extract_strided_slice %5 {offsets = [0, 0], sizes = [1, 128], strides = [1, 1]} : vector<4x128xf32> to vector<1x128xf32>
    %7 = vector.extract_strided_slice %5 {offsets = [1, 0], sizes = [1, 128], strides = [1, 1]} : vector<4x128xf32> to vector<1x128xf32>
    %8 = vector.extract_strided_slice %5 {offsets = [2, 0], sizes = [1, 128], strides = [1, 1]} : vector<4x128xf32> to vector<1x128xf32>
    %9 = vector.extract_strided_slice %5 {offsets = [3, 0], sizes = [1, 128], strides = [1, 1]} : vector<4x128xf32> to vector<1x128xf32>
    %cst = arith.constant 5.000000e-01 : f32
    %10 = vector.broadcast %cst : f32 to vector<1x128xf32>
    %11 = arith.mulf %10, %8 : vector<1x128xf32>
    %12 = arith.subf %6, %11 : vector<1x128xf32>
    %13 = vector.broadcast %3 : f32 to vector<1x128xf32>
    %14 = arith.mulf %12, %13 : vector<1x128xf32>
    %cst_3 = arith.constant 0.000000e+00 : f32
    %15 = vector.broadcast %cst_3 : f32 to vector<1x128xf32>
    %16 = arith.maximumf %15, %14 : vector<1x128xf32>
    %17 = vector.broadcast %3 : f32 to vector<1x128xf32>
    %18 = arith.minimumf %17, %16 : vector<1x128xf32>
    %cst_4 = arith.constant 5.000000e-01 : f32
    %19 = vector.broadcast %cst_4 : f32 to vector<1x128xf32>
    %20 = arith.mulf %19, %9 : vector<1x128xf32>
    %21 = arith.subf %7, %20 : vector<1x128xf32>
    %22 = vector.broadcast %1 : f32 to vector<1x128xf32>
    %23 = arith.mulf %21, %22 : vector<1x128xf32>
    %cst_5 = arith.constant 0.000000e+00 : f32
    %24 = vector.broadcast %cst_5 : f32 to vector<1x128xf32>
    %25 = arith.maximumf %24, %23 : vector<1x128xf32>
    %26 = vector.broadcast %1 : f32 to vector<1x128xf32>
    %27 = arith.minimumf %26, %25 : vector<1x128xf32>
    %cst_6 = arith.constant 5.000000e-01 : f32
    %28 = vector.broadcast %cst_6 : f32 to vector<1x128xf32>
    %29 = arith.mulf %28, %8 : vector<1x128xf32>
    %30 = arith.addf %6, %29 : vector<1x128xf32>
    %31 = vector.broadcast %3 : f32 to vector<1x128xf32>
    %32 = arith.mulf %30, %31 : vector<1x128xf32>
    %cst_7 = arith.constant 0.000000e+00 : f32
    %33 = vector.broadcast %cst_7 : f32 to vector<1x128xf32>
    %34 = arith.maximumf %33, %32 : vector<1x128xf32>
    %35 = vector.broadcast %3 : f32 to vector<1x128xf32>
    %36 = arith.minimumf %35, %34 : vector<1x128xf32>
    %cst_8 = arith.constant 5.000000e-01 : f32
    %37 = vector.broadcast %cst_8 : f32 to vector<1x128xf32>
    %38 = arith.mulf %37, %9 : vector<1x128xf32>
    %39 = arith.addf %7, %38 : vector<1x128xf32>
    %40 = vector.broadcast %1 : f32 to vector<1x128xf32>
    %41 = arith.mulf %39, %40 : vector<1x128xf32>
    %cst_9 = arith.constant 0.000000e+00 : f32
    %42 = vector.broadcast %cst_9 : f32 to vector<1x128xf32>
    %43 = arith.maximumf %42, %41 : vector<1x128xf32>
    %44 = vector.broadcast %1 : f32 to vector<1x128xf32>
    %45 = arith.minimumf %44, %43 : vector<1x128xf32>
    %46 = tpu.concatenate %18, %27, %36, %45 in 0 : vector<1x128xf32>, vector<1x128xf32>, vector<1x128xf32>, vector<1x128xf32> -> vector<4x128xf32>
    %c0_10 = arith.constant 0 : index
    %c0_11 = arith.constant 0 : index
    %c0_12 = arith.constant 0 : index
    %47 = vector.load %arg4[%c0_10, %c0_11, %c0_12] : memref<1x4x128xf32, #tpu.memory_space<vmem>>, vector<1x4x128xf32>
    %48 = vector.shape_cast %47 : vector<1x4x128xf32> to vector<4x128xf32>
    %49 = vector.shape_cast %46 : vector<4x128xf32> to vector<1x4x128xf32>
    tpu.vector_store %arg4[%c0_10, %c0_11, %c0_12], %49 {strides = array<i32>} : memref<1x4x128xf32, #tpu.memory_space<vmem>>, vector<1x4x128xf32>,
    %c0_13 = arith.constant 0 : index
    %c0_14 = arith.constant 0 : index
    %c0_15 = arith.constant 0 : index
    %50 = vector.load %arg3[%c0_13, %c0_14, %c0_15] : memref<1x1x128xf32, #tpu.memory_space<vmem>>, vector<1x1x128xf32>
    %51 = vector.shape_cast %50 : vector<1x1x128xf32> to vector<1x128xf32>
    %52 = vector.broadcast %51 : vector<1x128xf32> to vector<4x128xf32>
    %53 = arith.addf %46, %52 : vector<4x128xf32>
    %c0_16 = arith.constant 0 : index
    %c0_17 = arith.constant 0 : index
    %c0_18 = arith.constant 0 : index
    %54 = vector.load %arg5[%c0_16, %c0_17, %c0_18] : memref<1x4x128xf32, #tpu.memory_space<vmem>>, vector<1x4x128xf32>
    %55 = vector.shape_cast %54 : vector<1x4x128xf32> to vector<4x128xf32>
    %56 = vector.shape_cast %53 : vector<4x128xf32> to vector<1x4x128xf32>
    tpu.vector_store %arg5[%c0_16, %c0_17, %c0_18], %56 {strides = array<i32>} : memref<1x4x128xf32, #tpu.memory_space<vmem>>, vector<1x4x128xf32>,
    %57 = arith.subf %36, %18 : vector<1x128xf32>
    %cst_19 = arith.constant 2.000000e+00 : f32
    %58 = vector.broadcast %cst_19 : f32 to vector<1x128xf32>
    %59 = arith.cmpf ogt, %57, %58 : vector<1x128xf32>
    %60 = arith.subf %45, %27 : vector<1x128xf32>
    %cst_20 = arith.constant 2.000000e+00 : f32
    %61 = vector.broadcast %cst_20 : f32 to vector<1x128xf32>
    %62 = arith.cmpf ogt, %60, %61 : vector<1x128xf32>
    %63 = arith.andi %59, %62 : vector<1x128xi1>
    %cst_21 = arith.constant 1.000000e+00 : f32
    %cst_22 = arith.constant 0.000000e+00 : f32
    %64 = vector.broadcast %cst_21 : f32 to vector<1x128xf32>
    %65 = vector.broadcast %cst_22 : f32 to vector<1x128xf32>
    %66 = arith.select %63, %64, %65 : vector<1x128xi1>, vector<1x128xf32>
    %c0_23 = arith.constant 0 : index
    %c0_24 = arith.constant 0 : index
    %c0_25 = arith.constant 0 : index
    %67 = vector.load %arg6[%c0_23, %c0_24, %c0_25] : memref<1x1x128xf32, #tpu.memory_space<vmem>>, vector<1x1x128xf32>
    %68 = vector.shape_cast %67 : vector<1x1x128xf32> to vector<1x128xf32>
    %69 = vector.shape_cast %66 : vector<1x128xf32> to vector<1x1x128xf32>
    tpu.vector_store %arg6[%c0_23, %c0_24, %c0_25], %69 {strides = array<i32>} : memref<1x1x128xf32, #tpu.memory_space<vmem>>, vector<1x1x128xf32>,
    return
  }
  func.func @transform_0(%arg0: i32) -> (i32, i32) {
    %c0_i32 = arith.constant 0 : i32
    %c0_i32_0 = arith.constant 0 : i32
    %c0_i32_1 = arith.constant 0 : i32
    return %c0_i32, %c0_i32_0 : i32, i32
  }
  func.func @transform_1(%arg0: i32) -> (i32, i32, i32) {
    %c0_i32 = arith.constant 0 : i32
    %c0_i32_0 = arith.constant 0 : i32
    %c0_i32_1 = arith.constant 0 : i32
    return %arg0, %c0_i32, %c0_i32_0 : i32, i32, i32
  }
  func.func @transform_2(%arg0: i32) -> (i32, i32, i32) {
    %c0_i32 = arith.constant 0 : i32
    %c0_i32_0 = arith.constant 0 : i32
    %c0_i32_1 = arith.constant 0 : i32
    return %arg0, %c0_i32, %c0_i32_0 : i32, i32, i32
  }
  func.func @transform_3(%arg0: i32) -> (i32, i32, i32) {
    %c0_i32 = arith.constant 0 : i32
    %c0_i32_0 = arith.constant 0 : i32
    %c0_i32_1 = arith.constant 0 : i32
    return %arg0, %c0_i32, %c0_i32_0 : i32, i32, i32
  }
  func.func @transform_4(%arg0: i32) -> (i32, i32, i32) {
    %c0_i32 = arith.constant 0 : i32
    %c0_i32_0 = arith.constant 0 : i32
    %c0_i32_1 = arith.constant 0 : i32
    return %arg0, %c0_i32, %c0_i32_0 : i32, i32, i32
  }
  func.func @transform_5(%arg0: i32) -> (i32, i32, i32) {
    %c0_i32 = arith.constant 0 : i32
    %c0_i32_0 = arith.constant 0 : i32
    %c0_i32_1 = arith.constant 0 : i32
    return %arg0, %c0_i32, %c0_i32_0 : i32, i32, i32
  }
}

module attributes {stable_mosaic.version = 11 : i64} {
  func.func @_pairwise_iou_kernel(%arg0: i32, %arg1: i32, %arg2: memref<1x128x4xf32, #tpu.memory_space<vmem>>, %arg3: memref<1x4x128xf32, #tpu.memory_space<vmem>>, %arg4: memref<1x128x128xf32, #tpu.memory_space<vmem>>) attributes {dimension_semantics = [#tpu.dimension_semantics<parallel>, #tpu.dimension_semantics<parallel>], iteration_bounds = array<i64: 2, 1>, scalar_prefetch = 0 : i64, scratch_operands = 0 : i64, tpu.core_type = #tpu.core_type<tc>, window_params = [{transform_indices = @transform_0, window_bounds = array<i64: 1, 128, 4>}, {transform_indices = @transform_1, window_bounds = array<i64: 1, 4, 128>}, {transform_indices = @transform_2, window_bounds = array<i64: 1, 128, 128>}]} {
    %c0 = arith.constant 0 : index
    %c0_0 = arith.constant 0 : index
    %c0_1 = arith.constant 0 : index
    %0 = vector.load %arg2[%c0, %c0_0, %c0_1] : memref<1x128x4xf32, #tpu.memory_space<vmem>>, vector<1x128x4xf32>
    %1 = vector.shape_cast %0 : vector<1x128x4xf32> to vector<128x4xf32>
    %c0_2 = arith.constant 0 : index
    %c0_3 = arith.constant 0 : index
    %c0_4 = arith.constant 0 : index
    %2 = vector.load %arg3[%c0_2, %c0_3, %c0_4] : memref<1x4x128xf32, #tpu.memory_space<vmem>>, vector<1x4x128xf32>
    %3 = vector.shape_cast %2 : vector<1x4x128xf32> to vector<4x128xf32>
    %4 = vector.extract_strided_slice %1 {offsets = [0, 0], sizes = [128, 1], strides = [1, 1]} : vector<128x4xf32> to vector<128x1xf32>
    %5 = vector.extract_strided_slice %1 {offsets = [0, 1], sizes = [128, 1], strides = [1, 1]} : vector<128x4xf32> to vector<128x1xf32>
    %6 = vector.extract_strided_slice %1 {offsets = [0, 2], sizes = [128, 1], strides = [1, 1]} : vector<128x4xf32> to vector<128x1xf32>
    %7 = vector.extract_strided_slice %1 {offsets = [0, 3], sizes = [128, 1], strides = [1, 1]} : vector<128x4xf32> to vector<128x1xf32>
    %8 = vector.extract_strided_slice %3 {offsets = [0, 0], sizes = [1, 128], strides = [1, 1]} : vector<4x128xf32> to vector<1x128xf32>
    %9 = vector.extract_strided_slice %3 {offsets = [1, 0], sizes = [1, 128], strides = [1, 1]} : vector<4x128xf32> to vector<1x128xf32>
    %10 = vector.extract_strided_slice %3 {offsets = [2, 0], sizes = [1, 128], strides = [1, 1]} : vector<4x128xf32> to vector<1x128xf32>
    %11 = vector.extract_strided_slice %3 {offsets = [3, 0], sizes = [1, 128], strides = [1, 1]} : vector<4x128xf32> to vector<1x128xf32>
    %12 = vector.broadcast %4 : vector<128x1xf32> to vector<128x128xf32>
    %13 = vector.broadcast %8 : vector<1x128xf32> to vector<128x128xf32>
    %14 = arith.maximumf %12, %13 : vector<128x128xf32>
    %15 = vector.broadcast %5 : vector<128x1xf32> to vector<128x128xf32>
    %16 = vector.broadcast %9 : vector<1x128xf32> to vector<128x128xf32>
    %17 = arith.maximumf %15, %16 : vector<128x128xf32>
    %18 = vector.broadcast %6 : vector<128x1xf32> to vector<128x128xf32>
    %19 = vector.broadcast %10 : vector<1x128xf32> to vector<128x128xf32>
    %20 = arith.minimumf %18, %19 : vector<128x128xf32>
    %21 = vector.broadcast %7 : vector<128x1xf32> to vector<128x128xf32>
    %22 = vector.broadcast %11 : vector<1x128xf32> to vector<128x128xf32>
    %23 = arith.minimumf %21, %22 : vector<128x128xf32>
    %24 = arith.subf %20, %14 : vector<128x128xf32>
    %cst = arith.constant 0.000000e+00 : f32
    %25 = vector.broadcast %cst : f32 to vector<128x128xf32>
    %26 = arith.maximumf %24, %25 : vector<128x128xf32>
    %27 = arith.subf %23, %17 : vector<128x128xf32>
    %cst_5 = arith.constant 0.000000e+00 : f32
    %28 = vector.broadcast %cst_5 : f32 to vector<128x128xf32>
    %29 = arith.maximumf %27, %28 : vector<128x128xf32>
    %30 = arith.mulf %26, %29 : vector<128x128xf32>
    %31 = arith.subf %6, %4 : vector<128x1xf32>
    %32 = arith.subf %7, %5 : vector<128x1xf32>
    %33 = arith.mulf %31, %32 : vector<128x1xf32>
    %34 = arith.subf %10, %8 : vector<1x128xf32>
    %35 = arith.subf %11, %9 : vector<1x128xf32>
    %36 = arith.mulf %34, %35 : vector<1x128xf32>
    %37 = vector.broadcast %33 : vector<128x1xf32> to vector<128x128xf32>
    %38 = vector.broadcast %36 : vector<1x128xf32> to vector<128x128xf32>
    %39 = arith.addf %37, %38 : vector<128x128xf32>
    %40 = arith.subf %39, %30 : vector<128x128xf32>
    %cst_6 = arith.constant 9.99999971E-10 : f32
    %41 = vector.broadcast %cst_6 : f32 to vector<128x128xf32>
    %42 = arith.maximumf %40, %41 : vector<128x128xf32>
    %43 = tpu.reciprocal %42 {approx = true} : vector<128x128xf32> -> vector<128x128xf32>
    %44 = arith.mulf %30, %43 : vector<128x128xf32>
    %c0_7 = arith.constant 0 : index
    %c0_8 = arith.constant 0 : index
    %c0_9 = arith.constant 0 : index
    %45 = vector.load %arg4[%c0_7, %c0_8, %c0_9] : memref<1x128x128xf32, #tpu.memory_space<vmem>>, vector<1x128x128xf32>
    %46 = vector.shape_cast %45 : vector<1x128x128xf32> to vector<128x128xf32>
    %47 = vector.shape_cast %44 : vector<128x128xf32> to vector<1x128x128xf32>
    tpu.vector_store %arg4[%c0_7, %c0_8, %c0_9], %47 {strides = array<i32>} : memref<1x128x128xf32, #tpu.memory_space<vmem>>, vector<1x128x128xf32>,
    return
  }
  func.func @transform_0(%arg0: i32, %arg1: i32) -> (i32, i32, i32) {
    %c0_i32 = arith.constant 0 : i32
    %c0_i32_0 = arith.constant 0 : i32
    return %arg0, %arg1, %c0_i32 : i32, i32, i32
  }
  func.func @transform_1(%arg0: i32, %arg1: i32) -> (i32, i32, i32) {
    %c0_i32 = arith.constant 0 : i32
    %c0_i32_0 = arith.constant 0 : i32
    %c0_i32_1 = arith.constant 0 : i32
    return %arg0, %c0_i32, %c0_i32_0 : i32, i32, i32
  }
  func.func @transform_2(%arg0: i32, %arg1: i32) -> (i32, i32, i32) {
    %c0_i32 = arith.constant 0 : i32
    %c0_i32_0 = arith.constant 0 : i32
    return %arg0, %arg1, %c0_i32 : i32, i32, i32
  }
}

</mosaic_0001>

<llo_original>
// kernel: _forward_impl.7
$region0: #{_forward_impl.7}
  #allocation0 [shape = 'u32[]', space=smem, size = 0x4, offset = 0x4, fixed_abs, tag = 'smem constant byte address 0x4 - core index']
  #allocation1 [shape = 'u32[144,128]{1,0:T(1,128)}', space=vmem, size = 0x12000, scoped, tag = 'internal scratch']
  %s0 = inlined_call_operand.vmem [shape: f32[2,2], index: 0, kind: input, shape index: {}]
  %s1 = inlined_call_operand.vmem [shape: f32[2,4,4], index: 1, kind: input, shape index: {}]
  %s2 = inlined_call_operand.vmem [shape: f32[2,4,128], index: 2, kind: input, shape index: {}]
  %s3 = inlined_call_operand.vmem [shape: f32[2,4,1], index: 3, kind: output, shape index: {0}]
  %s4 = inlined_call_operand.vmem [shape: s32[2,4,1], index: 4, kind: output, shape index: {1}]
  %5 = xla_tuple %s3, %s4
  %s6 = sld [smem:[#allocation0]]
  $region61: #{_forward_impl.7} parent=0
    _
  %s8 = ssub.s32 1, %s6
  %s9 = scalar_select 0, %s8, %s6
  $region1: #{_forward_impl.7} parent=0
    #allocation2 [shape = 'u8[1024]{0}', space=smem, size = 0x400, scoped, tag = 'input window, operand 0, single buffered']
    #allocation3 [shape = 's32[2]{0}', space=sflag, size = 0x8, scoped, tag = 'scoped memory for _forward_impl.7']
    %10 = vsyncpa [#allocation3], 0
    loop: start=0, step=1, limit=4
    $region2: #{_forward_impl.7} parent=1 // loop_pre_header
      _
    $region3: #{_forward_impl.7} parent=1 // loop_header
      %s12 = sphi 0, %s16
      %p13 = scmp.ge.s32.totalorder %s12, 4
      %s19 = sphi 0, %s31
      %s20 = sphi 0, %s27
      %s21 = sphi 0, %s19
      %s22 = sphi 0, %s20
      %s23 = sphi 0, %s21
      %s24 = sphi 0, %s22
      %s32 = sphi 0, %s32
      %s34 = sphi 0, %s32
      %s35 = sphi 0, %s34
      %s49 = sphi 0, %s35
      %s55 = sphi 0, %s57
      %s58 = sphi 0, %s55
      %s59 = sphi 0, %s58
      %s75 = sphi 0, %s59
      %s83 = sphi 0, %s85
      %s86 = sphi 0, %s83
      %s87 = sphi 0, %s86
      %s103 = sphi 0, %s87
      %s109 = sphi 0, %s111
      %s112 = sphi 0, %s109
      %s113 = sphi 0, %s112
      %s129 = sphi 0, %s113
      %s135 = sphi 0, %s137
      %s138 = sphi 0, %s135
      %s139 = sphi 0, %s138
      %s155 = sphi 0, %s139
    $region4: #{_forward_impl.7} parent=1 // loop_header_branch
      %15 = sbr.rel (%p13) target = $region8
    $region5: #{_forward_impl.7} parent=1 // loop_body
      %s17 = ssub.s32 %s12, 1
      %s18 = ssub.s32 %s12, 2
      %s25 = sadd.s32 1, %s20
      %p26 = scmp.ge.s32.totalorder %s25, 1
      %s27 = scalar_select %p26, 0, %s25
      %s28 = sadd.s32 1, %s19
      %s29 = scalar_select %p26, %s28, %s19
      %p30 = scmp.ge.s32.totalorder %s29, 2
      %s31 = scalar_select %p30, 0, %s29
      %s33 = sadd.s32 %s32, 1
      %p36 = scmp.eq.s32.totalorder %s12, 1
      %p37 = scmp.ne.s32.totalorder %s32, %s34
      %p38 = scmp.eq.s32.totalorder %s12, 0
      %p39 = por %p37, %p38
      %p40 = scmp.ne.s32.totalorder %s32, %s34
      %p41 = scmp.eq.s32.totalorder %s17, 1
      %p42 = por %p40, %p41
      %p43 = scmp.ne.s32.totalorder %s34, %s35
      %p44 = scmp.eq.s32.totalorder %s17, 0
      %p45 = por %p43, %p44
      %p46 = scmp.ne.s32.totalorder %s34, %s35
      %p47 = scmp.eq.s32.totalorder %s18, 1
      %p48 = por %p46, %p47
      %p50 = scmp.ne.s32.totalorder %s35, %s49
      %p51 = scmp.eq.s32.totalorder %s18, 0
      %p52 = por %p50, %p51
      %s53 = ssub.s32 %s19, %s31
      %p54 = scmp.eq.s32.totalorder %s53, 0
      %s56 = sadd.s32 %s55, 1
      %s57 = scalar_select %p54, %s55, %s56
      %p60 = pneg %p54
      %p61 = scmp.eq.s32.totalorder %s12, 1
      %p62 = por %p60, %p61
      %p63 = scmp.ne.s32.totalorder %s55, %s58
      %p64 = scmp.eq.s32.totalorder %s12, 0
      %p65 = por %p63, %p64
      %p66 = scmp.ne.s32.totalorder %s55, %s58
      %p67 = scmp.eq.s32.totalorder %s17, 1
      %p68 = por %p66, %p67
      %p69 = scmp.ne.s32.totalorder %s58, %s59
      %p70 = scmp.eq.s32.totalorder %s17, 0
      %p71 = por %p69, %p70
      %p72 = scmp.ne.s32.totalorder %s58, %s59
      %p73 = scmp.eq.s32.totalorder %s18, 1
      %p74 = por %p72, %p73
      %p76 = scmp.ne.s32.totalorder %s59, %s75
      %p77 = scmp.eq.s32.totalorder %s18, 0
      %p78 = por %p76, %p77
      %s79 = ssub.s32 %s19, %s31
      %s80 = ssub.s32 %s20, %s27
      %s81 = sor.u32 %s79, %s80
      %p82 = scmp.eq.s32.totalorder %s81, 0
      %s84 = sadd.s32 %s83, 1
      %s85 = scalar_select %p82, %s83, %s84
      %p88 = pneg %p82
      %p89 = scmp.eq.s32.totalorder %s12, 1
      %p90 = por %p88, %p89
      %p91 = scmp.ne.s32.totalorder %s83, %s86
      %p92 = scmp.eq.s32.totalorder %s12, 0
      %p93 = por %p91, %p92
      %p94 = scmp.ne.s32.totalorder %s83, %s86
      %p95 = scmp.eq.s32.totalorder %s17, 1
      %p96 = por %p94, %p95
      %p97 = scmp.ne.s32.totalorder %s86, %s87
      %p98 = scmp.eq.s32.totalorder %s17, 0
      %p99 = por %p97, %p98
      %p100 = scmp.ne.s32.totalorder %s86, %s87
      %p101 = scmp.eq.s32.totalorder %s18, 1
      %p102 = por %p100, %p101
      %p104 = scmp.ne.s32.totalorder %s87, %s103
      %p105 = scmp.eq.s32.totalorder %s18, 0
      %p106 = por %p104, %p105
      %s107 = ssub.s32 %s19, %s31
      %p108 = scmp.eq.s32.totalorder %s107, 0
      %s110 = sadd.s32 %s109, 1
      %s111 = scalar_select %p108, %s109, %s110
      %p114 = pneg %p108
      %p115 = scmp.eq.s32.totalorder %s12, 1
      %p116 = por %p114, %p115
      %p117 = scmp.ne.s32.totalorder %s109, %s112
      %p118 = scmp.eq.s32.totalorder %s12, 0
      %p119 = por %p117, %p118
      %p120 = scmp.ne.s32.totalorder %s109, %s112
      %p121 = scmp.eq.s32.totalorder %s17, 1
      %p122 = por %p120, %p121
      %p123 = scmp.ne.s32.totalorder %s112, %s113
      %p124 = scmp.eq.s32.totalorder %s17, 0
      %p125 = por %p123, %p124
      %p126 = scmp.ne.s32.totalorder %s112, %s113
      %p127 = scmp.eq.s32.totalorder %s18, 1
      %p128 = por %p126, %p127
      %p130 = scmp.ne.s32.totalorder %s113, %s129
      %p131 = scmp.eq.s32.totalorder %s18, 0
      %p132 = por %p130, %p131
      %s133 = ssub.s32 %s19, %s31
      %p134 = scmp.eq.s32.totalorder %s133, 0
      %s136 = sadd.s32 %s135, 1
      %s137 = scalar_select %p134, %s135, %s136
      %p140 = pneg %p134
      %p141 = scmp.eq.s32.totalorder %s12, 1
      %p142 = por %p140, %p141
      %p143 = scmp.ne.s32.totalorder %s135, %s138
      %p144 = scmp.eq.s32.totalorder %s12, 0
      %p145 = por %p143, %p144
      %p146 = scmp.ne.s32.totalorder %s135, %s138
      %p147 = scmp.eq.s32.totalorder %s17, 1
      %p148 = por %p146, %p147
      %p149 = scmp.ne.s32.totalorder %s138, %s139
      %p150 = scmp.eq.s32.totalorder %s17, 0
      %p151 = por %p149, %p150
      %p152 = scmp.ne.s32.totalorder %s138, %s139
      %p153 = scmp.eq.s32.totalorder %s18, 1
      %p154 = por %p152, %p153
      %p156 = scmp.ne.s32.totalorder %s139, %s155
      %p157 = scmp.eq.s32.totalorder %s18, 0
      %p158 = por %p156, %p157
      %p159 = scmp.le.s32.totalorder 1, %s12
      %p160 = scmp.lt.s32.totalorder %s12, 3
      %p161 = pnand %p159, %p160
      %p162 = pneg %p161
      // Predicated region
      $region9: #{_forward_impl.7} parent=5 // pred_check
        _
      $region10: #{_forward_impl.7} parent=5 // pred_check_branch
        %164 = sbr.rel (%p161) target = $region12
      $region11: #{_forward_impl.7} parent=5 // pred_region
        %s165 = ssub.s32 %s12, 1
        // Predicated region
        $region13: #{_forward_impl.7} parent=11 // pred_check
          %p166 = pneg %p45
        $region14: #{_forward_impl.7} parent=11 // pred_check_branch
          %168 = sbr.rel (%p166) target = $region16
        $region15: #{_forward_impl.7} parent=11 // pred_region
          %s170 = ssub.s32 32, 32
          %171 = vsyncadd [#allocation3], %s170
          %s173 = sshll.u32 %s0, 4
          %s174 = int_to_ptr.vmem [resolvable:$true] %s173
          %176 = dma.vmem_to_smem %s174, 32, [#allocation2], [#allocation3]
        $region16: #{_forward_impl.7} parent=11 // pred_fallthru
          _
      $region12: #{_forward_impl.7} parent=5 // pred_fallthru
        _
      %p177 = scmp.lt.s32.totalorder %s12, 2
      // Predicated region
      $region17: #{_forward_impl.7} parent=5 // pred_check
        %p178 = pneg %p177
      $region18: #{_forward_impl.7} parent=5 // pred_check_branch
        %180 = sbr.rel (%p178) target = $region20
      $region19: #{_forward_impl.7} parent=5 // pred_region
        // Predicated region
        $region21: #{_forward_impl.7} parent=19 // pred_check
          %p181 = pneg %p65
        $region22: #{_forward_impl.7} parent=19 // pred_check_branch
          %183 = sbr.rel (%p181) target = $region24
        $region23: #{_forward_impl.7} parent=19 // pred_region
          %p184 = scmp.lt.s32.totalorder %s19, 1
          %s185 = scalar_select %p184, %s19, 1
          %s186 = smul.addr %s185, 4
          %s187 = scalar_lea.vmem %s1, %s186
        $region24: #{_forward_impl.7} parent=19 // pred_fallthru
          _
        // Predicated region
        $region25: #{_forward_impl.7} parent=19 // pred_check
          %p188 = pneg %p93
        $region26: #{_forward_impl.7} parent=19 // pred_check_branch
          %190 = sbr.rel (%p188) target = $region28
        $region27: #{_forward_impl.7} parent=19 // pred_region
          %p191 = scmp.lt.s32.totalorder %s19, 1
          %s192 = scalar_select %p191, %s19, 1
          %p193 = scmp.lt.s32.totalorder %s20, 0
          %s194 = scalar_select %p193, %s20, 0
          %s195 = sadd.s32 %s194, %s192
          %s196 = smul.addr %s195, 4
          %s197 = scalar_lea.vmem %s2, %s196
        $region28: #{_forward_impl.7} parent=19 // pred_fallthru
          _
      $region20: #{_forward_impl.7} parent=5 // pred_fallthru
        _
      %p198 = scmp.le.s32.totalorder 1, %s12
      %p199 = scmp.lt.s32.totalorder %s12, 3
      %p200 = pnand %p198, %p199
      %p201 = pneg %p200
      // Predicated region
      $region29: #{_forward_impl.7} parent=5 // pred_check
        _
      $region30: #{_forward_impl.7} parent=5 // pred_check_branch
        %203 = sbr.rel (%p200) target = $region32
      $region31: #{_forward_impl.7} parent=5 // pred_region
        %s204 = ssub.s32 %s12, 1
        // Predicated region
        $region33: #{_forward_impl.7} parent=31 // pred_check
          %p205 = pneg %p45
        $region34: #{_forward_impl.7} parent=31 // pred_check_branch
          %207 = sbr.rel (%p205) target = $region36
        $region35: #{_forward_impl.7} parent=31 // pred_region
          %208 = dma.done [#allocation3], 32
        $region36: #{_forward_impl.7} parent=31 // pred_fallthru
          _
        %209 = sfence
        %p210 = pneg %p45
        %p211 = pneg %p42
        %p212 = scmp.lt.s32.totalorder %s21, 1
        %s213 = scalar_select %p212, %s21, 1
        %s214 = smul.addr %s213, 4
        %s215 = scalar_lea.vmem %s1, %s214
        %p216 = pneg %p71
        %p217 = pneg %p68
        %p218 = scmp.lt.s32.totalorder %s21, 1
        %s219 = scalar_select %p218, %s21, 1
        %p220 = scmp.lt.s32.totalorder %s22, 0
        %s221 = scalar_select %p220, %s22, 0
        %s222 = sadd.s32 %s221, %s219
        %s223 = smul.addr %s222, 4
        %s224 = scalar_lea.vmem %s2, %s223
        %p225 = pneg %p99
        %p226 = pneg %p96
        %p227 = pneg %p125
        %p228 = pneg %p122
        %p229 = scmp.lt.s32.totalorder %s21, 1
        %s230 = scalar_select %p229, %s21, 1
        %s231 = smul.addr %s230, 4
        %s232 = scalar_lea.vmem %s3, %s231
        %p233 = pneg %p151
        %p234 = pneg %p148
        %p235 = scmp.lt.s32.totalorder %s21, 1
        %s236 = scalar_select %p235, %s21, 1
        %s237 = smul.addr %s236, 4
        %s238 = scalar_lea.vmem %s4, %s237
        %p239 = scmp.lt.s32.totalorder %s21, 1
        %s240 = scalar_select %p239, %s21, 1
        %s241 = smul.addr %s240, 4
        %s242 = scalar_lea.vmem %s1, %s241
        %p243 = scmp.lt.s32.totalorder %s21, 1
        %s244 = scalar_select %p243, %s21, 1
        %p245 = scmp.lt.s32.totalorder %s22, 0
        %s246 = scalar_select %p245, %s22, 0
        %s247 = sadd.s32 %s246, %s244
        %s248 = smul.addr %s247, 4
        %s249 = scalar_lea.vmem %s2, %s248
        %p250 = scmp.lt.s32.totalorder %s21, 1
        %s251 = scalar_select %p250, %s21, 1
        %s252 = smul.addr %s251, 4
        %s253 = scalar_lea.vmem %s3, %s252
        %p254 = scmp.lt.s32.totalorder %s21, 1
        %s255 = scalar_select %p254, %s21, 1
        %s256 = smul.addr %s255, 4
        %s257 = scalar_lea.vmem %s4, %s256
        %p258 = scmp.eq.s32.totalorder %s22, 0
        // Predicated region
        $region37: #{_forward_impl.7} parent=31 // pred_check
          %p259 = pneg %p258
        $region38: #{_forward_impl.7} parent=31 // pred_check_branch
          %261 = sbr.rel (%p259) target = $region40
        $region39: #{_forward_impl.7} parent=31 // pred_region
          %vm262 = vcmask 3072
          %263 = vst.msk [vmem:[%s253] sm:$0xf] %vm262, -1.0
          %264 = vst.msk [vmem:[%s257] sm:$0xf] %vm262, 0
        $region40: #{_forward_impl.7} parent=31 // pred_fallthru
          _
        %s265 = smul.u32 %s21, 128
        %s266 = sadd.s32 %s265, 1
        %s267 = sld [smem:[#allocation2 + %s266]]
        %s268 = sld [smem:[#allocation2 + %s265]]
        %v269 = vld [vmem:[%s249] sm:$0xf]
        %v270 = vmul.f32 %v269, 0.5
        %v272 = vrot.slane %v270, 2
        %v274 = vsub.f32 %v269, %v272
        %v275 = vstv %s267
        %v276 = vmul.f32 %v274, %v275
        %v277 = vstv %s268
        %v278 = vmul.f32 %v274, %v277
        %v279 = vadd.f32 %v269, %v272
        %v280 = vmul.f32 %v279, %v275
        %v281 = vmul.f32 %v279, %v277
        %v282 = vld [vmem:[%s242] sm:$0xf]
        %284 = vset.pattern.permute.xlu0 0
        %285 = vperm.xlu0 %284, %v282
        %v286 = vpop.permute.xlu0 %285
        %v288 = vlaneseq
        %v289 = vshrl.u32 %v288, 7
        %v290 = vsub.s32 0, %v289
        %v291 = vrot.slane %v276, %v290
        %v292 = vmax.f32 %v286, %v291
        %293 = vset.pattern.permute.xlu0 1
        %294 = vperm.xlu0 %293, %v282
        %v295 = vpop.permute.xlu0 %294
        %v297 = vlaneseq
        %v298 = vshrl.u32 %v297, 7
        %v299 = vsub.s32 1, %v298
        %v300 = vrot.slane %v278, %v299
        %v301 = vmax.f32 %v295, %v300
        %302 = vset.pattern.permute.xlu0 2
        %303 = vperm.xlu0 %302, %v282
        %v304 = vpop.permute.xlu0 %303
        %v306 = vlaneseq
        %v307 = vshrl.u32 %v306, 7
        %v308 = vsub.s32 0, %v307
        %v309 = vrot.slane %v280, %v308
        %v310 = vmin.f32 %v304, %v309
        %311 = vset.pattern.permute.xlu0 3
        %312 = vperm.xlu0 %311, %v282
        %v313 = vpop.permute.xlu0 %312
        %v315 = vlaneseq
        %v316 = vshrl.u32 %v315, 7
        %v317 = vsub.s32 1, %v316
        %v318 = vrot.slane %v281, %v317
        %v319 = vmin.f32 %v313, %v318
        %v320 = vsub.f32 %v310, %v292
        %v321 = vmax.f32 %v320, 0.0
        %v322 = vsub.f32 %v319, %v301
        %v323 = vmax.f32 %v322, 0.0
        %v324 = vmul.f32 %v321, %v323
        %325 = vrot.lane.b32.xlu0 %v282, 2
        %v326 = vpop.permute.xlu0 %325
        %v328 = vsub.f32 %v282, %v326
        %330 = vrot.lane.b32.xlu0 %v328, 127
        %v331 = vpop.permute.xlu0 %330
        %v333 = vmul.f32 %v328, %v331
        %v334 = vsub.f32 %v280, %v276
        %v335 = vsub.f32 %v281, %v278
        %v337 = vrot.slane %v335, 1
        %v339 = vmul.f32 %v334, %v337
        %341 = vset.pattern.permute.xlu0 2
        %342 = vperm.xlu0 %341, %v333
        %v343 = vpop.permute.xlu0 %342
        %v345 = vlaneseq
        %v346 = vshrl.u32 %v345, 7
        %v347 = vsub.s32 0, %v346
        %v348 = vrot.slane %v339, %v347
        %v349 = vadd.f32 %v343, %v348
        %v350 = vsub.f32 %v349, %v324
        %v351 = vmax.f32 %v350, 1e-09
        %v352 = vrcp.pop %v351
        %v353 = vmul.f32 %v324, %v352
        %v354 = vlaneseq
        %v355 = vand.u32 %v354, 127
        %s356 = smul.u32 %s22, 128
        %v357 = vstv %s356
        %v358 = vadd.s32 %v355, %v357
        %vm359 = vcmp.lt.s32.totalorder %v358, 128
        %v360 = vsel %vm359, %v353, -1.0
        %vm361 = vcmask 1043456
        %v362 = vsel %vm361, %v360, -inf
        %363 = vmax.xlane.f32.xlu0 %v362
        %v364 = vpop.xlane.xlu0 %363
        %vm365 = vcmp.eq.f32.partialorder %v360, %v364
        %v366 = vsel %vm365, %v358, 128
        %v367 = vsel %vm361, %v366, 2147483647
        %v368 = vand.u32 %v367, 65535
        %v369 = vshra.s32 %v367, 16
        %v370 = vcvt.s32.f32 %v368
        %v371 = vcvt.s32.f32 %v369
        %372 = vmin.xlane.f32.xlu0 %v371
        %v373 = vpop.xlane.xlu0 %372
        %vm374 = vcmp.eq.f32.partialorder %v371, %v373
        %v375 = vsel %vm374, %v370, inf
        %376 = vmin.xlane.f32.xlu0 %v375
        %v377 = vpop.xlane.xlu0 %376
        %v378 = vcvt.f32.s32 %v377
        %v379 = vcvt.f32.s32 %v373
        %v380 = vshll.u32 %v379, 16
        %v381 = vadd.s32 %v380, %v378
        %v382 = vld [vmem:[%s253] sm:$0xf]
        %vm383 = vcmp.gt.f32.partialorder %v364, %v382
        %v384 = vsel %vm383, %v364, %v382
        %vm385 = vcmask 3072
        %386 = vst.msk [vmem:[%s253] sm:$0xf] %vm385, %v384
        %v387 = vld [vmem:[%s257] sm:$0xf]
        %v388 = vsel %vm383, %v381, %v387
        %389 = vst.msk [vmem:[%s257] sm:$0xf] %vm385, %v388
        %p390 = scmp.lt.s32.totalorder %s21, 1
        %s391 = scalar_select %p390, %s21, 1
        %s392 = smul.addr %s391, 4
        %s393 = scalar_lea.vmem %s3, %s392
        %p394 = scmp.lt.s32.totalorder %s21, 1
        %s395 = scalar_select %p394, %s21, 1
        %s396 = smul.addr %s395, 4
        %s397 = scalar_lea.vmem %s4, %s396
        // Predicated region
        $region41: #{_forward_impl.7} parent=31 // pred_check
          %p398 = pneg %p122
        $region42: #{_forward_impl.7} parent=31 // pred_check_branch
          %400 = sbr.rel (%p398) target = $region44
        $region43: #{_forward_impl.7} parent=31 // pred_region
          _
        $region44: #{_forward_impl.7} parent=31 // pred_fallthru
          _
        // Predicated region
        $region45: #{_forward_impl.7} parent=31 // pred_check
          %p401 = pneg %p148
        $region46: #{_forward_impl.7} parent=31 // pred_check_branch
          %403 = sbr.rel (%p401) target = $region48
        $region47: #{_forward_impl.7} parent=31 // pred_region
          _
        $region48: #{_forward_impl.7} parent=31 // pred_fallthru
          _
      $region32: #{_forward_impl.7} parent=5 // pred_fallthru
        _
      %p404 = scmp.le.s32.totalorder 2, %s12
      // Predicated region
      $region49: #{_forward_impl.7} parent=5 // pred_check
        %p405 = pneg %p404
      $region50: #{_forward_impl.7} parent=5 // pred_check_branch
        %407 = sbr.rel (%p405) target = $region52
      $region51: #{_forward_impl.7} parent=5 // pred_region
        %s408 = ssub.s32 %s12, 2
        // Predicated region
        $region53: #{_forward_impl.7} parent=51 // pred_check
          %p409 = pneg %p128
        $region54: #{_forward_impl.7} parent=51 // pred_check_branch
          %411 = sbr.rel (%p409) target = $region56
        $region55: #{_forward_impl.7} parent=51 // pred_region
          %p412 = scmp.lt.s32.totalorder %s23, 1
          %s413 = scalar_select %p412, %s23, 1
          %s414 = smul.addr %s413, 4
          %s415 = scalar_lea.vmem %s3, %s414
        $region56: #{_forward_impl.7} parent=51 // pred_fallthru
          _
        // Predicated region
        $region57: #{_forward_impl.7} parent=51 // pred_check
          %p416 = pneg %p154
        $region58: #{_forward_impl.7} parent=51 // pred_check_branch
          %418 = sbr.rel (%p416) target = $region60
        $region59: #{_forward_impl.7} parent=51 // pred_region
          %p419 = scmp.lt.s32.totalorder %s23, 1
          %s420 = scalar_select %p419, %s23, 1
          %s421 = smul.addr %s420, 4
          %s422 = scalar_lea.vmem %s4, %s421
        $region60: #{_forward_impl.7} parent=51 // pred_fallthru
          _
      $region52: #{_forward_impl.7} parent=5 // pred_fallthru
        _
    $region6: #{_forward_impl.7} parent=1 // loop_footer
      %s16 = sadd.s32 1, %s12
    $region7: #{_forward_impl.7} parent=1 // loop_footer_branch
      %11 = sbr.rel target = $region3
    $region8: #{_forward_impl.7} parent=1 // loop_exit
      _
    %423 = vsyncpa [#allocation3], 1
    %s424 = scalar_lea.sflag [#allocation3], 1
    %425 = vsyncpa %s424, 1

// kernel: _forward_impl.6
$region0: #{_forward_impl.6}
  #allocation0 [shape = 'u32[]', space=smem, size = 0x4, offset = 0x4, fixed_abs, tag = 'smem constant byte address 0x4 - core index']
  #allocation1 [shape = 'u32[144,128]{1,0:T(1,128)}', space=vmem, size = 0x12000, scoped, tag = 'internal scratch']
  %s0 = inlined_call_operand.vmem [shape: f32[2,128,4], index: 0, kind: input, shape index: {}]
  %s1 = inlined_call_operand.vmem [shape: f32[2,128,1], index: 1, kind: output, shape index: {}]
  %s2 = sld [smem:[#allocation0]]
  $region37: #{_forward_impl.6} parent=0
    _
  %s4 = ssub.s32 1, %s2
  %s5 = scalar_select 0, %s4, %s2
  loop: start=0, step=1, limit=4
  $region2: #{_forward_impl.6} parent=0 // loop_pre_header
    _
  $region3: #{_forward_impl.6} parent=0 // loop_header
    %s7 = sphi 0, %s11
    %p8 = scmp.ge.s32.totalorder %s7, 4
    %s14 = sphi 0, %s26
    %s15 = sphi 0, %s22
    %s16 = sphi 0, %s14
    %s17 = sphi 0, %s15
    %s18 = sphi 0, %s16
    %s19 = sphi 0, %s17
    %s31 = sphi 0, %s33
    %s34 = sphi 0, %s31
    %s35 = sphi 0, %s34
    %s51 = sphi 0, %s35
    %s59 = sphi 0, %s61
    %s62 = sphi 0, %s59
    %s63 = sphi 0, %s62
    %s79 = sphi 0, %s63
  $region4: #{_forward_impl.6} parent=0 // loop_header_branch
    %10 = sbr.rel (%p8) target = $region8
  $region5: #{_forward_impl.6} parent=0 // loop_body
    %s12 = ssub.s32 %s7, 1
    %s13 = ssub.s32 %s7, 2
    %s20 = sadd.s32 1, %s15
    %p21 = scmp.ge.s32.totalorder %s20, 1
    %s22 = scalar_select %p21, 0, %s20
    %s23 = sadd.s32 1, %s14
    %s24 = scalar_select %p21, %s23, %s14
    %p25 = scmp.ge.s32.totalorder %s24, 2
    %s26 = scalar_select %p25, 0, %s24
    %s27 = ssub.s32 %s14, %s26
    %s28 = ssub.s32 %s15, %s22
    %s29 = sor.u32 %s27, %s28
    %p30 = scmp.eq.s32.totalorder %s29, 0
    %s32 = sadd.s32 %s31, 1
    %s33 = scalar_select %p30, %s31, %s32
    %p36 = pneg %p30
    %p37 = scmp.eq.s32.totalorder %s7, 1
    %p38 = por %p36, %p37
    %p39 = scmp.ne.s32.totalorder %s31, %s34
    %p40 = scmp.eq.s32.totalorder %s7, 0
    %p41 = por %p39, %p40
    %p42 = scmp.ne.s32.totalorder %s31, %s34
    %p43 = scmp.eq.s32.totalorder %s12, 1
    %p44 = por %p42, %p43
    %p45 = scmp.ne.s32.totalorder %s34, %s35
    %p46 = scmp.eq.s32.totalorder %s12, 0
    %p47 = por %p45, %p46
    %p48 = scmp.ne.s32.totalorder %s34, %s35
    %p49 = scmp.eq.s32.totalorder %s13, 1
    %p50 = por %p48, %p49
    %p52 = scmp.ne.s32.totalorder %s35, %s51
    %p53 = scmp.eq.s32.totalorder %s13, 0
    %p54 = por %p52, %p53
    %s55 = ssub.s32 %s14, %s26
    %s56 = ssub.s32 %s15, %s22
    %s57 = sor.u32 %s55, %s56
    %p58 = scmp.eq.s32.totalorder %s57, 0
    %s60 = sadd.s32 %s59, 1
    %s61 = scalar_select %p58, %s59, %s60
    %p64 = pneg %p58
    %p65 = scmp.eq.s32.totalorder %s7, 1
    %p66 = por %p64, %p65
    %p67 = scmp.ne.s32.totalorder %s59, %s62
    %p68 = scmp.eq.s32.totalorder %s7, 0
    %p69 = por %p67, %p68
    %p70 = scmp.ne.s32.totalorder %s59, %s62
    %p71 = scmp.eq.s32.totalorder %s12, 1
    %p72 = por %p70, %p71
    %p73 = scmp.ne.s32.totalorder %s62, %s63
    %p74 = scmp.eq.s32.totalorder %s12, 0
    %p75 = por %p73, %p74
    %p76 = scmp.ne.s32.totalorder %s62, %s63
    %p77 = scmp.eq.s32.totalorder %s13, 1
    %p78 = por %p76, %p77
    %p80 = scmp.ne.s32.totalorder %s63, %s79
    %p81 = scmp.eq.s32.totalorder %s13, 0
    %p82 = por %p80, %p81
    %p83 = scmp.le.s32.totalorder 1, %s7
    %p84 = scmp.lt.s32.totalorder %s7, 3
    %p85 = pnand %p83, %p84
    %p86 = pneg %p85
    // Predicated region
    $region9: #{_forward_impl.6} parent=5 // pred_check
      _
    $region10: #{_forward_impl.6} parent=5 // pred_check_branch
      %88 = sbr.rel (%p85) target = $region12
    $region11: #{_forward_impl.6} parent=5 // pred_region
      %s89 = ssub.s32 %s7, 1
    $region12: #{_forward_impl.6} parent=5 // pred_fallthru
      _
    %p90 = scmp.lt.s32.totalorder %s7, 2
    // Predicated region
    $region13: #{_forward_impl.6} parent=5 // pred_check
      %p91 = pneg %p90
    $region14: #{_forward_impl.6} parent=5 // pred_check_branch
      %93 = sbr.rel (%p91) target = $region16
    $region15: #{_forward_impl.6} parent=5 // pred_region
      // Predicated region
      $region17: #{_forward_impl.6} parent=15 // pred_check
        %p94 = pneg %p41
      $region18: #{_forward_impl.6} parent=15 // pred_check_branch
        %96 = sbr.rel (%p94) target = $region20
      $region19: #{_forward_impl.6} parent=15 // pred_region
        %s97 = smul.u32 16, %s15
        %p98 = scmp.lt.s32.totalorder %s14, 1
        %s99 = scalar_select %p98, %s14, 1
        %p100 = scmp.lt.s32.totalorder %s97, 15
        %s101 = scalar_select %p100, %s97, 15
        %s102 = smul.addr %s99, 16
        %s103 = sadd.s32 %s101, %s102
        %s104 = smul.addr %s103, 8
        %s105 = scalar_lea.vmem %s0, %s104
        %s106 = smul.u32 16, %s15
      $region20: #{_forward_impl.6} parent=15 // pred_fallthru
        _
    $region16: #{_forward_impl.6} parent=5 // pred_fallthru
      _
    %p107 = scmp.le.s32.totalorder 1, %s7
    %p108 = scmp.lt.s32.totalorder %s7, 3
    %p109 = pnand %p107, %p108
    %p110 = pneg %p109
    // Predicated region
    $region21: #{_forward_impl.6} parent=5 // pred_check
      _
    $region22: #{_forward_impl.6} parent=5 // pred_check_branch
      %112 = sbr.rel (%p109) target = $region24
    $region23: #{_forward_impl.6} parent=5 // pred_region
      %s113 = ssub.s32 %s7, 1
      %s114 = smul.u32 16, %s17
      %p115 = scmp.lt.s32.totalorder %s16, 1
      %s116 = scalar_select %p115, %s16, 1
      %p117 = scmp.lt.s32.totalorder %s114, 15
      %s118 = scalar_select %p117, %s114, 15
      %s119 = smul.addr %s116, 16
      %s120 = sadd.s32 %s118, %s119
      %s121 = smul.addr %s120, 8
      %s122 = scalar_lea.vmem %s0, %s121
      %p123 = pneg %p47
      %p124 = pneg %p44
      %p125 = pneg %p75
      %p126 = pneg %p72
      %s127 = smul.u32 16, %s17
      %p128 = scmp.lt.s32.totalorder %s16, 1
      %s129 = scalar_select %p128, %s16, 1
      %p130 = scmp.lt.s32.totalorder %s127, 15
      %s131 = scalar_select %p130, %s127, 15
      %s132 = smul.addr %s129, 16
      %s133 = sadd.s32 %s131, %s132
      %s134 = smul.addr %s133, 8
      %s135 = scalar_lea.vmem %s1, %s134
      %s136 = smul.u32 16, %s17
      %p137 = scmp.lt.s32.totalorder %s16, 1
      %s138 = scalar_select %p137, %s16, 1
      %p139 = scmp.lt.s32.totalorder %s136, 15
      %s140 = scalar_select %p139, %s136, 15
      %s141 = smul.addr %s138, 16
      %s142 = sadd.s32 %s140, %s141
      %s143 = smul.addr %s142, 8
      %s144 = scalar_lea.vmem %s0, %s143
      %s145 = smul.u32 16, %s17
      %s146 = smul.u32 16, %s17
      %p147 = scmp.lt.s32.totalorder %s16, 1
      %s148 = scalar_select %p147, %s16, 1
      %p149 = scmp.lt.s32.totalorder %s146, 15
      %s150 = scalar_select %p149, %s146, 15
      %s151 = smul.addr %s148, 16
      %s152 = sadd.s32 %s150, %s151
      %s153 = smul.addr %s152, 8
      %s154 = scalar_lea.vmem %s1, %s153
      %s155 = smul.u32 16, %s17
      %v156 = vld [vmem:[%s144] sm:$0xff]
      %v157 = vld [vmem:[%s144 + $0x8] sm:$0xff]
      %v158 = vld [vmem:[%s144 + $0x10] sm:$0xff]
      %v159 = vld [vmem:[%s144 + $0x18] sm:$0xff]
      %v160 = vld [vmem:[%s144 + $0x20] sm:$0xff]
      %v161 = vld [vmem:[%s144 + $0x28] sm:$0xff]
      %v162 = vld [vmem:[%s144 + $0x30] sm:$0xff]
      %v163 = vld [vmem:[%s144 + $0x38] sm:$0xff]
      %v164 = vld [vmem:[%s144 + $0x40] sm:$0xff]
      %v165 = vld [vmem:[%s144 + $0x48] sm:$0xff]
      %v166 = vld [vmem:[%s144 + $0x50] sm:$0xff]
      %v167 = vld [vmem:[%s144 + $0x58] sm:$0xff]
      %v168 = vld [vmem:[%s144 + $0x60] sm:$0xff]
      %v169 = vld [vmem:[%s144 + $0x68] sm:$0xff]
      %v170 = vld [vmem:[%s144 + $0x70] sm:$0xff]
      %v171 = vld [vmem:[%s144 + $0x78] sm:$0xff]
      %v172 = vxor.u32 %v156, 2147483648
      %v173 = vxor.u32 %v157, 2147483648
      %v174 = vxor.u32 %v158, 2147483648
      %v175 = vxor.u32 %v159, 2147483648
      %v176 = vxor.u32 %v160, 2147483648
      %v177 = vxor.u32 %v161, 2147483648
      %v178 = vxor.u32 %v162, 2147483648
      %v179 = vxor.u32 %v163, 2147483648
      %v180 = vxor.u32 %v164, 2147483648
      %v181 = vxor.u32 %v165, 2147483648
      %v182 = vxor.u32 %v166, 2147483648
      %v183 = vxor.u32 %v167, 2147483648
      %v184 = vxor.u32 %v168, 2147483648
      %v185 = vxor.u32 %v169, 2147483648
      %v186 = vxor.u32 %v170, 2147483648
      %v187 = vxor.u32 %v171, 2147483648
      %v188 = vmul.f32 %v172, 1.442695
      %v189 = vpow.pop %v188
      %v190 = vmul.f32 %v173, 1.442695
      %v191 = vpow.pop %v190
      %v192 = vmul.f32 %v174, 1.442695
      %v193 = vpow.pop %v192
      %v194 = vmul.f32 %v175, 1.442695
      %v195 = vpow.pop %v194
      %v196 = vmul.f32 %v176, 1.442695
      %v197 = vpow.pop %v196
      %v198 = vmul.f32 %v177, 1.442695
      %v199 = vpow.pop %v198
      %v200 = vmul.f32 %v178, 1.442695
      %v201 = vpow.pop %v200
      %v202 = vmul.f32 %v179, 1.442695
      %v203 = vpow.pop %v202
      %v204 = vmul.f32 %v180, 1.442695
      %v205 = vpow.pop %v204
      %v206 = vmul.f32 %v181, 1.442695
      %v207 = vpow.pop %v206
      %v208 = vmul.f32 %v182, 1.442695
      %v209 = vpow.pop %v208
      %v210 = vmul.f32 %v183, 1.442695
      %v211 = vpow.pop %v210
      %v212 = vmul.f32 %v184, 1.442695
      %v213 = vpow.pop %v212
      %v214 = vmul.f32 %v185, 1.442695
      %v215 = vpow.pop %v214
      %v216 = vmul.f32 %v186, 1.442695
      %v217 = vpow.pop %v216
      %v218 = vmul.f32 %v187, 1.442695
      %v219 = vpow.pop %v218
      %v220 = vadd.f32 %v189, 1.0
      %v221 = vadd.f32 %v191, 1.0
      %v222 = vadd.f32 %v193, 1.0
      %v223 = vadd.f32 %v195, 1.0
      %v224 = vadd.f32 %v197, 1.0
      %v225 = vadd.f32 %v199, 1.0
      %v226 = vadd.f32 %v201, 1.0
      %v227 = vadd.f32 %v203, 1.0
      %v228 = vadd.f32 %v205, 1.0
      %v229 = vadd.f32 %v207, 1.0
      %v230 = vadd.f32 %v209, 1.0
      %v231 = vadd.f32 %v211, 1.0
      %v232 = vadd.f32 %v213, 1.0
      %v233 = vadd.f32 %v215, 1.0
      %v234 = vadd.f32 %v217, 1.0
      %v235 = vadd.f32 %v219, 1.0
      %v236 = vrcp.pop %v220
      %v237 = vmul.f32 1.0, %v236
      %v238 = vrcp.pop %v221
      %v239 = vmul.f32 1.0, %v238
      %v240 = vrcp.pop %v222
      %v241 = vmul.f32 1.0, %v240
      %v242 = vrcp.pop %v223
      %v243 = vmul.f32 1.0, %v242
      %v244 = vrcp.pop %v224
      %v245 = vmul.f32 1.0, %v244
      %v246 = vrcp.pop %v225
      %v247 = vmul.f32 1.0, %v246
      %v248 = vrcp.pop %v226
      %v249 = vmul.f32 1.0, %v248
      %v250 = vrcp.pop %v227
      %v251 = vmul.f32 1.0, %v250
      %v252 = vrcp.pop %v228
      %v253 = vmul.f32 1.0, %v252
      %v254 = vrcp.pop %v229
      %v255 = vmul.f32 1.0, %v254
      %v256 = vrcp.pop %v230
      %v257 = vmul.f32 1.0, %v256
      %v258 = vrcp.pop %v231
      %v259 = vmul.f32 1.0, %v258
      %v260 = vrcp.pop %v232
      %v261 = vmul.f32 1.0, %v260
      %v262 = vrcp.pop %v233
      %v263 = vmul.f32 1.0, %v262
      %v264 = vrcp.pop %v234
      %v265 = vmul.f32 1.0, %v264
      %v266 = vrcp.pop %v235
      %v267 = vmul.f32 1.0, %v266
      %vm268 = vcmask 31744
      %v269 = vsel %vm268, %v237, 0.0
      %270 = vadd.xlane.f32.xlu0 %v269
      %v271 = vpop.xlane.xlu0 %270
      %v272 = vsel %vm268, %v239, 0.0
      %273 = vadd.xlane.f32.xlu0 %v272
      %v274 = vpop.xlane.xlu0 %273
      %v275 = vsel %vm268, %v241, 0.0
      %276 = vadd.xlane.f32.xlu0 %v275
      %v277 = vpop.xlane.xlu0 %276
      %v278 = vsel %vm268, %v243, 0.0
      %279 = vadd.xlane.f32.xlu0 %v278
      %v280 = vpop.xlane.xlu0 %279
      %v281 = vsel %vm268, %v245, 0.0
      %282 = vadd.xlane.f32.xlu0 %v281
      %v283 = vpop.xlane.xlu0 %282
      %v284 = vsel %vm268, %v247, 0.0
      %285 = vadd.xlane.f32.xlu0 %v284
      %v286 = vpop.xlane.xlu0 %285
      %v287 = vsel %vm268, %v249, 0.0
      %288 = vadd.xlane.f32.xlu0 %v287
      %v289 = vpop.xlane.xlu0 %288
      %v290 = vsel %vm268, %v251, 0.0
      %291 = vadd.xlane.f32.xlu0 %v290
      %v292 = vpop.xlane.xlu0 %291
      %v293 = vsel %vm268, %v253, 0.0
      %294 = vadd.xlane.f32.xlu0 %v293
      %v295 = vpop.xlane.xlu0 %294
      %v296 = vsel %vm268, %v255, 0.0
      %297 = vadd.xlane.f32.xlu0 %v296
      %v298 = vpop.xlane.xlu0 %297
      %v299 = vsel %vm268, %v257, 0.0
      %300 = vadd.xlane.f32.xlu0 %v299
      %v301 = vpop.xlane.xlu0 %300
      %v302 = vsel %vm268, %v259, 0.0
      %303 = vadd.xlane.f32.xlu0 %v302
      %v304 = vpop.xlane.xlu0 %303
      %v305 = vsel %vm268, %v261, 0.0
      %306 = vadd.xlane.f32.xlu0 %v305
      %v307 = vpop.xlane.xlu0 %306
      %v308 = vsel %vm268, %v263, 0.0
      %309 = vadd.xlane.f32.xlu0 %v308
      %v310 = vpop.xlane.xlu0 %309
      %v311 = vsel %vm268, %v265, 0.0
      %312 = vadd.xlane.f32.xlu0 %v311
      %v313 = vpop.xlane.xlu0 %312
      %v314 = vsel %vm268, %v267, 0.0
      %315 = vadd.xlane.f32.xlu0 %v314
      %v316 = vpop.xlane.xlu0 %315
      %v317 = vrcp.pop 4.0
      %v318 = vmul.f32 %v271, %v317
      %v319 = vmul.f32 %v274, %v317
      %v320 = vmul.f32 %v277, %v317
      %v321 = vmul.f32 %v280, %v317
      %v322 = vmul.f32 %v283, %v317
      %v323 = vmul.f32 %v286, %v317
      %v324 = vmul.f32 %v289, %v317
      %v325 = vmul.f32 %v292, %v317
      %v326 = vmul.f32 %v295, %v317
      %v327 = vmul.f32 %v298, %v317
      %v328 = vmul.f32 %v301, %v317
      %v329 = vmul.f32 %v304, %v317
      %v330 = vmul.f32 %v307, %v317
      %v331 = vmul.f32 %v310, %v317
      %v332 = vmul.f32 %v313, %v317
      %v333 = vmul.f32 %v316, %v317
      %vm334 = vcmask 7168
      %335 = vst.msk [vmem:[%s154] sm:$0xff] %vm334, %v318
      %336 = vst.msk [vmem:[%s154 + $0x8] sm:$0xff] %vm334, %v319
      %337 = vst.msk [vmem:[%s154 + $0x10] sm:$0xff] %vm334, %v320
      %338 = vst.msk [vmem:[%s154 + $0x18] sm:$0xff] %vm334, %v321
      %339 = vst.msk [vmem:[%s154 + $0x20] sm:$0xff] %vm334, %v322
      %340 = vst.msk [vmem:[%s154 + $0x28] sm:$0xff] %vm334, %v323
      %341 = vst.msk [vmem:[%s154 + $0x30] sm:$0xff] %vm334, %v324
      %342 = vst.msk [vmem:[%s154 + $0x38] sm:$0xff] %vm334, %v325
      %343 = vst.msk [vmem:[%s154 + $0x40] sm:$0xff] %vm334, %v326
      %344 = vst.msk [vmem:[%s154 + $0x48] sm:$0xff] %vm334, %v327
      %345 = vst.msk [vmem:[%s154 + $0x50] sm:$0xff] %vm334, %v328
      %346 = vst.msk [vmem:[%s154 + $0x58] sm:$0xff] %vm334, %v329
      %347 = vst.msk [vmem:[%s154 + $0x60] sm:$0xff] %vm334, %v330
      %348 = vst.msk [vmem:[%s154 + $0x68] sm:$0xff] %vm334, %v331
      %349 = vst.msk [vmem:[%s154 + $0x70] sm:$0xff] %vm334, %v332
      %350 = vst.msk [vmem:[%s154 + $0x78] sm:$0xff] %vm334, %v333
      %s351 = smul.u32 16, %s17
      %p352 = scmp.lt.s32.totalorder %s16, 1
      %s353 = scalar_select %p352, %s16, 1
      %p354 = scmp.lt.s32.totalorder %s351, 15
      %s355 = scalar_select %p354, %s351, 15
      %s356 = smul.addr %s353, 16
      %s357 = sadd.s32 %s355, %s356
      %s358 = smul.addr %s357, 8
      %s359 = scalar_lea.vmem %s1, %s358
      // Predicated region
      $region25: #{_forward_impl.6} parent=23 // pred_check
        %p360 = pneg %p72
      $region26: #{_forward_impl.6} parent=23 // pred_check_branch
        %362 = sbr.rel (%p360) target = $region28
      $region27: #{_forward_impl.6} parent=23 // pred_region
        %s363 = smul.u32 16, %s17
      $region28: #{_forward_impl.6} parent=23 // pred_fallthru
        _
    $region24: #{_forward_impl.6} parent=5 // pred_fallthru
      _
    %p364 = scmp.le.s32.totalorder 2, %s7
    // Predicated region
    $region29: #{_forward_impl.6} parent=5 // pred_check
      %p365 = pneg %p364
    $region30: #{_forward_impl.6} parent=5 // pred_check_branch
      %367 = sbr.rel (%p365) target = $region32
    $region31: #{_forward_impl.6} parent=5 // pred_region
      %s368 = ssub.s32 %s7, 2
      // Predicated region
      $region33: #{_forward_impl.6} parent=31 // pred_check
        %p369 = pneg %p78
      $region34: #{_forward_impl.6} parent=31 // pred_check_branch
        %371 = sbr.rel (%p369) target = $region36
      $region35: #{_forward_impl.6} parent=31 // pred_region
        %s372 = smul.u32 16, %s19
        %p373 = scmp.lt.s32.totalorder %s18, 1
        %s374 = scalar_select %p373, %s18, 1
        %p375 = scmp.lt.s32.totalorder %s372, 15
        %s376 = scalar_select %p375, %s372, 15
        %s377 = smul.addr %s374, 16
        %s378 = sadd.s32 %s376, %s377
        %s379 = smul.addr %s378, 8
        %s380 = scalar_lea.vmem %s1, %s379
      $region36: #{_forward_impl.6} parent=31 // pred_fallthru
        _
    $region32: #{_forward_impl.6} parent=5 // pred_fallthru
      _
  $region6: #{_forward_impl.6} parent=0 // loop_footer
    %s11 = sadd.s32 1, %s7
  $region7: #{_forward_impl.6} parent=0 // loop_footer_branch
    %6 = sbr.rel target = $region3
  $region8: #{_forward_impl.6} parent=0 // loop_exit
    _

// kernel: _forward_impl.5
$region0: #{_forward_impl.5}
  #allocation0 [shape = 'u32[]', space=smem, size = 0x4, offset = 0x4, fixed_abs, tag = 'smem constant byte address 0x4 - core index']
  #allocation1 [shape = 'u32[144,128]{1,0:T(1,128)}', space=vmem, size = 0x12000, scoped, tag = 'internal scratch']
  %s0 = inlined_call_operand.vmem [shape: f32[2,64,4], index: 0, kind: input, shape index: {}]
  %s1 = inlined_call_operand.vmem [shape: f32[2,64,1], index: 1, kind: output, shape index: {}]
  %s2 = sld [smem:[#allocation0]]
  $region37: #{_forward_impl.5} parent=0
    _
  %s4 = ssub.s32 1, %s2
  %s5 = scalar_select 0, %s4, %s2
  loop: start=0, step=1, limit=4
  $region2: #{_forward_impl.5} parent=0 // loop_pre_header
    _
  $region3: #{_forward_impl.5} parent=0 // loop_header
    %s7 = sphi 0, %s11
    %p8 = scmp.ge.s32.totalorder %s7, 4
    %s14 = sphi 0, %s26
    %s15 = sphi 0, %s22
    %s16 = sphi 0, %s14
    %s17 = sphi 0, %s15
    %s18 = sphi 0, %s16
    %s19 = sphi 0, %s17
    %s31 = sphi 0, %s33
    %s34 = sphi 0, %s31
    %s35 = sphi 0, %s34
    %s51 = sphi 0, %s35
    %s59 = sphi 0, %s61
    %s62 = sphi 0, %s59
    %s63 = sphi 0, %s62
    %s79 = sphi 0, %s63
  $region4: #{_forward_impl.5} parent=0 // loop_header_branch
    %10 = sbr.rel (%p8) target = $region8
  $region5: #{_forward_impl.5} parent=0 // loop_body
    %s12 = ssub.s32 %s7, 1
    %s13 = ssub.s32 %s7, 2
    %s20 = sadd.s32 1, %s15
    %p21 = scmp.ge.s32.totalorder %s20, 1
    %s22 = scalar_select %p21, 0, %s20
    %s23 = sadd.s32 1, %s14
    %s24 = scalar_select %p21, %s23, %s14
    %p25 = scmp.ge.s32.totalorder %s24, 2
    %s26 = scalar_select %p25, 0, %s24
    %s27 = ssub.s32 %s14, %s26
    %s28 = ssub.s32 %s15, %s22
    %s29 = sor.u32 %s27, %s28
    %p30 = scmp.eq.s32.totalorder %s29, 0
    %s32 = sadd.s32 %s31, 1
    %s33 = scalar_select %p30, %s31, %s32
    %p36 = pneg %p30
    %p37 = scmp.eq.s32.totalorder %s7, 1
    %p38 = por %p36, %p37
    %p39 = scmp.ne.s32.totalorder %s31, %s34
    %p40 = scmp.eq.s32.totalorder %s7, 0
    %p41 = por %p39, %p40
    %p42 = scmp.ne.s32.totalorder %s31, %s34
    %p43 = scmp.eq.s32.totalorder %s12, 1
    %p44 = por %p42, %p43
    %p45 = scmp.ne.s32.totalorder %s34, %s35
    %p46 = scmp.eq.s32.totalorder %s12, 0
    %p47 = por %p45, %p46
    %p48 = scmp.ne.s32.totalorder %s34, %s35
    %p49 = scmp.eq.s32.totalorder %s13, 1
    %p50 = por %p48, %p49
    %p52 = scmp.ne.s32.totalorder %s35, %s51
    %p53 = scmp.eq.s32.totalorder %s13, 0
    %p54 = por %p52, %p53
    %s55 = ssub.s32 %s14, %s26
    %s56 = ssub.s32 %s15, %s22
    %s57 = sor.u32 %s55, %s56
    %p58 = scmp.eq.s32.totalorder %s57, 0
    %s60 = sadd.s32 %s59, 1
    %s61 = scalar_select %p58, %s59, %s60
    %p64 = pneg %p58
    %p65 = scmp.eq.s32.totalorder %s7, 1
    %p66 = por %p64, %p65
    %p67 = scmp.ne.s32.totalorder %s59, %s62
    %p68 = scmp.eq.s32.totalorder %s7, 0
    %p69 = por %p67, %p68
    %p70 = scmp.ne.s32.totalorder %s59, %s62
    %p71 = scmp.eq.s32.totalorder %s12, 1
    %p72 = por %p70, %p71
    %p73 = scmp.ne.s32.totalorder %s62, %s63
    %p74 = scmp.eq.s32.totalorder %s12, 0
    %p75 = por %p73, %p74
    %p76 = scmp.ne.s32.totalorder %s62, %s63
    %p77 = scmp.eq.s32.totalorder %s13, 1
    %p78 = por %p76, %p77
    %p80 = scmp.ne.s32.totalorder %s63, %s79
    %p81 = scmp.eq.s32.totalorder %s13, 0
    %p82 = por %p80, %p81
    %p83 = scmp.le.s32.totalorder 1, %s7
    %p84 = scmp.lt.s32.totalorder %s7, 3
    %p85 = pnand %p83, %p84
    %p86 = pneg %p85
    // Predicated region
    $region9: #{_forward_impl.5} parent=5 // pred_check
      _
    $region10: #{_forward_impl.5} parent=5 // pred_check_branch
      %88 = sbr.rel (%p85) target = $region12
    $region11: #{_forward_impl.5} parent=5 // pred_region
      %s89 = ssub.s32 %s7, 1
    $region12: #{_forward_impl.5} parent=5 // pred_fallthru
      _
    %p90 = scmp.lt.s32.totalorder %s7, 2
    // Predicated region
    $region13: #{_forward_impl.5} parent=5 // pred_check
      %p91 = pneg %p90
    $region14: #{_forward_impl.5} parent=5 // pred_check_branch
      %93 = sbr.rel (%p91) target = $region16
    $region15: #{_forward_impl.5} parent=5 // pred_region
      // Predicated region
      $region17: #{_forward_impl.5} parent=15 // pred_check
        %p94 = pneg %p41
      $region18: #{_forward_impl.5} parent=15 // pred_check_branch
        %96 = sbr.rel (%p94) target = $region20
      $region19: #{_forward_impl.5} parent=15 // pred_region
        %s97 = smul.u32 8, %s15
        %p98 = scmp.lt.s32.totalorder %s14, 1
        %s99 = scalar_select %p98, %s14, 1
        %p100 = scmp.lt.s32.totalorder %s97, 7
        %s101 = scalar_select %p100, %s97, 7
        %s102 = smul.addr %s99, 8
        %s103 = sadd.s32 %s101, %s102
        %s104 = smul.addr %s103, 8
        %s105 = scalar_lea.vmem %s0, %s104
        %s106 = smul.u32 8, %s15
      $region20: #{_forward_impl.5} parent=15 // pred_fallthru
        _
    $region16: #{_forward_impl.5} parent=5 // pred_fallthru
      _
    %p107 = scmp.le.s32.totalorder 1, %s7
    %p108 = scmp.lt.s32.totalorder %s7, 3
    %p109 = pnand %p107, %p108
    %p110 = pneg %p109
    // Predicated region
    $region21: #{_forward_impl.5} parent=5 // pred_check
      _
    $region22: #{_forward_impl.5} parent=5 // pred_check_branch
      %112 = sbr.rel (%p109) target = $region24
    $region23: #{_forward_impl.5} parent=5 // pred_region
      %s113 = ssub.s32 %s7, 1
      %s114 = smul.u32 8, %s17
      %p115 = scmp.lt.s32.totalorder %s16, 1
      %s116 = scalar_select %p115, %s16, 1
      %p117 = scmp.lt.s32.totalorder %s114, 7
      %s118 = scalar_select %p117, %s114, 7
      %s119 = smul.addr %s116, 8
      %s120 = sadd.s32 %s118, %s119
      %s121 = smul.addr %s120, 8
      %s122 = scalar_lea.vmem %s0, %s121
      %p123 = pneg %p47
      %p124 = pneg %p44
      %p125 = pneg %p75
      %p126 = pneg %p72
      %s127 = smul.u32 8, %s17
      %p128 = scmp.lt.s32.totalorder %s16, 1
      %s129 = scalar_select %p128, %s16, 1
      %p130 = scmp.lt.s32.totalorder %s127, 7
      %s131 = scalar_select %p130, %s127, 7
      %s132 = smul.addr %s129, 8
      %s133 = sadd.s32 %s131, %s132
      %s134 = smul.addr %s133, 8
      %s135 = scalar_lea.vmem %s1, %s134
      %s136 = smul.u32 8, %s17
      %p137 = scmp.lt.s32.totalorder %s16, 1
      %s138 = scalar_select %p137, %s16, 1
      %p139 = scmp.lt.s32.totalorder %s136, 7
      %s140 = scalar_select %p139, %s136, 7
      %s141 = smul.addr %s138, 8
      %s142 = sadd.s32 %s140, %s141
      %s143 = smul.addr %s142, 8
      %s144 = scalar_lea.vmem %s0, %s143
      %s145 = smul.u32 8, %s17
      %s146 = smul.u32 8, %s17
      %p147 = scmp.lt.s32.totalorder %s16, 1
      %s148 = scalar_select %p147, %s16, 1
      %p149 = scmp.lt.s32.totalorder %s146, 7
      %s150 = scalar_select %p149, %s146, 7
      %s151 = smul.addr %s148, 8
      %s152 = sadd.s32 %s150, %s151
      %s153 = smul.addr %s152, 8
      %s154 = scalar_lea.vmem %s1, %s153
      %s155 = smul.u32 8, %s17
      %v156 = vld [vmem:[%s144] sm:$0xff]
      %v157 = vld [vmem:[%s144 + $0x8] sm:$0xff]
      %v158 = vld [vmem:[%s144 + $0x10] sm:$0xff]
      %v159 = vld [vmem:[%s144 + $0x18] sm:$0xff]
      %v160 = vld [vmem:[%s144 + $0x20] sm:$0xff]
      %v161 = vld [vmem:[%s144 + $0x28] sm:$0xff]
      %v162 = vld [vmem:[%s144 + $0x30] sm:$0xff]
      %v163 = vld [vmem:[%s144 + $0x38] sm:$0xff]
      %v164 = vxor.u32 %v156, 2147483648
      %v165 = vxor.u32 %v157, 2147483648
      %v166 = vxor.u32 %v158, 2147483648
      %v167 = vxor.u32 %v159, 2147483648
      %v168 = vxor.u32 %v160, 2147483648
      %v169 = vxor.u32 %v161, 2147483648
      %v170 = vxor.u32 %v162, 2147483648
      %v171 = vxor.u32 %v163, 2147483648
      %v172 = vmul.f32 %v164, 1.442695
      %v173 = vpow.pop %v172
      %v174 = vmul.f32 %v165, 1.442695
      %v175 = vpow.pop %v174
      %v176 = vmul.f32 %v166, 1.442695
      %v177 = vpow.pop %v176
      %v178 = vmul.f32 %v167, 1.442695
      %v179 = vpow.pop %v178
      %v180 = vmul.f32 %v168, 1.442695
      %v181 = vpow.pop %v180
      %v182 = vmul.f32 %v169, 1.442695
      %v183 = vpow.pop %v182
      %v184 = vmul.f32 %v170, 1.442695
      %v185 = vpow.pop %v184
      %v186 = vmul.f32 %v171, 1.442695
      %v187 = vpow.pop %v186
      %v188 = vadd.f32 %v173, 1.0
      %v189 = vadd.f32 %v175, 1.0
      %v190 = vadd.f32 %v177, 1.0
      %v191 = vadd.f32 %v179, 1.0
      %v192 = vadd.f32 %v181, 1.0
      %v193 = vadd.f32 %v183, 1.0
      %v194 = vadd.f32 %v185, 1.0
      %v195 = vadd.f32 %v187, 1.0
      %v196 = vrcp.pop %v188
      %v197 = vmul.f32 1.0, %v196
      %v198 = vrcp.pop %v189
      %v199 = vmul.f32 1.0, %v198
      %v200 = vrcp.pop %v190
      %v201 = vmul.f32 1.0, %v200
      %v202 = vrcp.pop %v191
      %v203 = vmul.f32 1.0, %v202
      %v204 = vrcp.pop %v192
      %v205 = vmul.f32 1.0, %v204
      %v206 = vrcp.pop %v193
      %v207 = vmul.f32 1.0, %v206
      %v208 = vrcp.pop %v194
      %v209 = vmul.f32 1.0, %v208
      %v210 = vrcp.pop %v195
      %v211 = vmul.f32 1.0, %v210
      %vm212 = vcmask 31744
      %v213 = vsel %vm212, %v197, 0.0
      %214 = vadd.xlane.f32.xlu0 %v213
      %v215 = vpop.xlane.xlu0 %214
      %v216 = vsel %vm212, %v199, 0.0
      %217 = vadd.xlane.f32.xlu0 %v216
      %v218 = vpop.xlane.xlu0 %217
      %v219 = vsel %vm212, %v201, 0.0
      %220 = vadd.xlane.f32.xlu0 %v219
      %v221 = vpop.xlane.xlu0 %220
      %v222 = vsel %vm212, %v203, 0.0
      %223 = vadd.xlane.f32.xlu0 %v222
      %v224 = vpop.xlane.xlu0 %223
      %v225 = vsel %vm212, %v205, 0.0
      %226 = vadd.xlane.f32.xlu0 %v225
      %v227 = vpop.xlane.xlu0 %226
      %v228 = vsel %vm212, %v207, 0.0
      %229 = vadd.xlane.f32.xlu0 %v228
      %v230 = vpop.xlane.xlu0 %229
      %v231 = vsel %vm212, %v209, 0.0
      %232 = vadd.xlane.f32.xlu0 %v231
      %v233 = vpop.xlane.xlu0 %232
      %v234 = vsel %vm212, %v211, 0.0
      %235 = vadd.xlane.f32.xlu0 %v234
      %v236 = vpop.xlane.xlu0 %235
      %v237 = vrcp.pop 4.0
      %v238 = vmul.f32 %v215, %v237
      %v239 = vmul.f32 %v218, %v237
      %v240 = vmul.f32 %v221, %v237
      %v241 = vmul.f32 %v224, %v237
      %v242 = vmul.f32 %v227, %v237
      %v243 = vmul.f32 %v230, %v237
      %v244 = vmul.f32 %v233, %v237
      %v245 = vmul.f32 %v236, %v237
      %vm246 = vcmask 7168
      %247 = vst.msk [vmem:[%s154] sm:$0xff] %vm246, %v238
      %248 = vst.msk [vmem:[%s154 + $0x8] sm:$0xff] %vm246, %v239
      %249 = vst.msk [vmem:[%s154 + $0x10] sm:$0xff] %vm246, %v240
      %250 = vst.msk [vmem:[%s154 + $0x18] sm:$0xff] %vm246, %v241
      %251 = vst.msk [vmem:[%s154 + $0x20] sm:$0xff] %vm246, %v242
      %252 = vst.msk [vmem:[%s154 + $0x28] sm:$0xff] %vm246, %v243
      %253 = vst.msk [vmem:[%s154 + $0x30] sm:$0xff] %vm246, %v244
      %254 = vst.msk [vmem:[%s154 + $0x38] sm:$0xff] %vm246, %v245
      %s255 = smul.u32 8, %s17
      %p256 = scmp.lt.s32.totalorder %s16, 1
      %s257 = scalar_select %p256, %s16, 1
      %p258 = scmp.lt.s32.totalorder %s255, 7
      %s259 = scalar_select %p258, %s255, 7
      %s260 = smul.addr %s257, 8
      %s261 = sadd.s32 %s259, %s260
      %s262 = smul.addr %s261, 8
      %s263 = scalar_lea.vmem %s1, %s262
      // Predicated region
      $region25: #{_forward_impl.5} parent=23 // pred_check
        %p264 = pneg %p72
      $region26: #{_forward_impl.5} parent=23 // pred_check_branch
        %266 = sbr.rel (%p264) target = $region28
      $region27: #{_forward_impl.5} parent=23 // pred_region
        %s267 = smul.u32 8, %s17
      $region28: #{_forward_impl.5} parent=23 // pred_fallthru
        _
    $region24: #{_forward_impl.5} parent=5 // pred_fallthru
      _
    %p268 = scmp.le.s32.totalorder 2, %s7
    // Predicated region
    $region29: #{_forward_impl.5} parent=5 // pred_check
      %p269 = pneg %p268
    $region30: #{_forward_impl.5} parent=5 // pred_check_branch
      %271 = sbr.rel (%p269) target = $region32
    $region31: #{_forward_impl.5} parent=5 // pred_region
      %s272 = ssub.s32 %s7, 2
      // Predicated region
      $region33: #{_forward_impl.5} parent=31 // pred_check
        %p273 = pneg %p78
      $region34: #{_forward_impl.5} parent=31 // pred_check_branch
        %275 = sbr.rel (%p273) target = $region36
      $region35: #{_forward_impl.5} parent=31 // pred_region
        %s276 = smul.u32 8, %s19
        %p277 = scmp.lt.s32.totalorder %s18, 1
        %s278 = scalar_select %p277, %s18, 1
        %p279 = scmp.lt.s32.totalorder %s276, 7
        %s280 = scalar_select %p279, %s276, 7
        %s281 = smul.addr %s278, 8
        %s282 = sadd.s32 %s280, %s281
        %s283 = smul.addr %s282, 8
        %s284 = scalar_lea.vmem %s1, %s283
      $region36: #{_forward_impl.5} parent=31 // pred_fallthru
        _
    $region32: #{_forward_impl.5} parent=5 // pred_fallthru
      _
  $region6: #{_forward_impl.5} parent=0 // loop_footer
    %s11 = sadd.s32 1, %s7
  $region7: #{_forward_impl.5} parent=0 // loop_footer_branch
    %6 = sbr.rel target = $region3
  $region8: #{_forward_impl.5} parent=0 // loop_exit
    _

// kernel: _forward_impl.8
$region0: #{_forward_impl.8}
  #allocation0 [shape = 'u32[]', space=smem, size = 0x4, offset = 0x4, fixed_abs, tag = 'smem constant byte address 0x4 - core index']
  #allocation1 [shape = 'u32[144,128]{1,0:T(1,128)}', space=vmem, size = 0x12000, scoped, tag = 'internal scratch']
  %s0 = inlined_call_operand.vmem [shape: f32[2,2], index: 0, kind: input, shape index: {}]
  %s1 = inlined_call_operand.vmem [shape: f32[2,4,128], index: 1, kind: input, shape index: {}]
  %s2 = inlined_call_operand.vmem [shape: f32[2,1,128], index: 2, kind: input, shape index: {}]
  %s3 = inlined_call_operand.vmem [shape: f32[2,4,128], index: 3, kind: output, shape index: {0}]
  %s4 = inlined_call_operand.vmem [shape: f32[2,4,128], index: 4, kind: output, shape index: {1}]
  %s5 = inlined_call_operand.vmem [shape: f32[2,1,128], index: 5, kind: output, shape index: {2}]
  %6 = xla_tuple %s3, %s4, %s5
  %s7 = sld [smem:[#allocation0]]
  $region65: #{_forward_impl.8} parent=0
    _
  %s9 = ssub.s32 1, %s7
  %s10 = scalar_select 0, %s9, %s7
  $region1: #{_forward_impl.8} parent=0
    #allocation2 [shape = 'u8[1024]{0}', space=smem, size = 0x400, scoped, tag = 'input window, operand 0, single buffered']
    #allocation3 [shape = 's32[2]{0}', space=sflag, size = 0x8, scoped, tag = 'scoped memory for _forward_impl.8']
    %11 = vsyncpa [#allocation3], 0
    loop: start=0, step=1, limit=4
    $region2: #{_forward_impl.8} parent=1 // loop_pre_header
      _
    $region3: #{_forward_impl.8} parent=1 // loop_header
      %s13 = sphi 0, %s17
      %p14 = scmp.ge.s32.totalorder %s13, 4
      %s21 = sphi 0, %s21
      %s23 = sphi 0, %s21
      %s24 = sphi 0, %s23
      %s38 = sphi 0, %s24
      %s44 = sphi 0, %s46
      %s47 = sphi 0, %s44
      %s48 = sphi 0, %s47
      %s64 = sphi 0, %s48
      %s70 = sphi 0, %s72
      %s73 = sphi 0, %s70
      %s74 = sphi 0, %s73
      %s90 = sphi 0, %s74
      %s96 = sphi 0, %s98
      %s99 = sphi 0, %s96
      %s100 = sphi 0, %s99
      %s116 = sphi 0, %s100
      %s122 = sphi 0, %s124
      %s125 = sphi 0, %s122
      %s126 = sphi 0, %s125
      %s142 = sphi 0, %s126
      %s148 = sphi 0, %s150
      %s151 = sphi 0, %s148
      %s152 = sphi 0, %s151
      %s168 = sphi 0, %s152
    $region4: #{_forward_impl.8} parent=1 // loop_header_branch
      %16 = sbr.rel (%p14) target = $region8
    $region5: #{_forward_impl.8} parent=1 // loop_body
      %s18 = ssub.s32 %s13, 1
      %s19 = ssub.s32 %s13, 2
      %s20 = sadd.s32 %s13, 1
      %s22 = sadd.s32 %s21, 1
      %p25 = scmp.eq.s32.totalorder %s13, 1
      %p26 = scmp.ne.s32.totalorder %s21, %s23
      %p27 = scmp.eq.s32.totalorder %s13, 0
      %p28 = por %p26, %p27
      %p29 = scmp.ne.s32.totalorder %s21, %s23
      %p30 = scmp.eq.s32.totalorder %s18, 1
      %p31 = por %p29, %p30
      %p32 = scmp.ne.s32.totalorder %s23, %s24
      %p33 = scmp.eq.s32.totalorder %s18, 0
      %p34 = por %p32, %p33
      %p35 = scmp.ne.s32.totalorder %s23, %s24
      %p36 = scmp.eq.s32.totalorder %s19, 1
      %p37 = por %p35, %p36
      %p39 = scmp.ne.s32.totalorder %s24, %s38
      %p40 = scmp.eq.s32.totalorder %s19, 0
      %p41 = por %p39, %p40
      %s42 = ssub.s32 %s13, %s20
      %p43 = scmp.eq.s32.totalorder %s42, 0
      %s45 = sadd.s32 %s44, 1
      %s46 = scalar_select %p43, %s44, %s45
      %p49 = pneg %p43
      %p50 = scmp.eq.s32.totalorder %s13, 1
      %p51 = por %p49, %p50
      %p52 = scmp.ne.s32.totalorder %s44, %s47
      %p53 = scmp.eq.s32.totalorder %s13, 0
      %p54 = por %p52, %p53
      %p55 = scmp.ne.s32.totalorder %s44, %s47
      %p56 = scmp.eq.s32.totalorder %s18, 1
      %p57 = por %p55, %p56
      %p58 = scmp.ne.s32.totalorder %s47, %s48
      %p59 = scmp.eq.s32.totalorder %s18, 0
      %p60 = por %p58, %p59
      %p61 = scmp.ne.s32.totalorder %s47, %s48
      %p62 = scmp.eq.s32.totalorder %s19, 1
      %p63 = por %p61, %p62
      %p65 = scmp.ne.s32.totalorder %s48, %s64
      %p66 = scmp.eq.s32.totalorder %s19, 0
      %p67 = por %p65, %p66
      %s68 = ssub.s32 %s13, %s20
      %p69 = scmp.eq.s32.totalorder %s68, 0
      %s71 = sadd.s32 %s70, 1
      %s72 = scalar_select %p69, %s70, %s71
      %p75 = pneg %p69
      %p76 = scmp.eq.s32.totalorder %s13, 1
      %p77 = por %p75, %p76
      %p78 = scmp.ne.s32.totalorder %s70, %s73
      %p79 = scmp.eq.s32.totalorder %s13, 0
      %p80 = por %p78, %p79
      %p81 = scmp.ne.s32.totalorder %s70, %s73
      %p82 = scmp.eq.s32.totalorder %s18, 1
      %p83 = por %p81, %p82
      %p84 = scmp.ne.s32.totalorder %s73, %s74
      %p85 = scmp.eq.s32.totalorder %s18, 0
      %p86 = por %p84, %p85
      %p87 = scmp.ne.s32.totalorder %s73, %s74
      %p88 = scmp.eq.s32.totalorder %s19, 1
      %p89 = por %p87, %p88
      %p91 = scmp.ne.s32.totalorder %s74, %s90
      %p92 = scmp.eq.s32.totalorder %s19, 0
      %p93 = por %p91, %p92
      %s94 = ssub.s32 %s13, %s20
      %p95 = scmp.eq.s32.totalorder %s94, 0
      %s97 = sadd.s32 %s96, 1
      %s98 = scalar_select %p95, %s96, %s97
      %p101 = pneg %p95
      %p102 = scmp.eq.s32.totalorder %s13, 1
      %p103 = por %p101, %p102
      %p104 = scmp.ne.s32.totalorder %s96, %s99
      %p105 = scmp.eq.s32.totalorder %s13, 0
      %p106 = por %p104, %p105
      %p107 = scmp.ne.s32.totalorder %s96, %s99
      %p108 = scmp.eq.s32.totalorder %s18, 1
      %p109 = por %p107, %p108
      %p110 = scmp.ne.s32.totalorder %s99, %s100
      %p111 = scmp.eq.s32.totalorder %s18, 0
      %p112 = por %p110, %p111
      %p113 = scmp.ne.s32.totalorder %s99, %s100
      %p114 = scmp.eq.s32.totalorder %s19, 1
      %p115 = por %p113, %p114
      %p117 = scmp.ne.s32.totalorder %s100, %s116
      %p118 = scmp.eq.s32.totalorder %s19, 0
      %p119 = por %p117, %p118
      %s120 = ssub.s32 %s13, %s20
      %p121 = scmp.eq.s32.totalorder %s120, 0
      %s123 = sadd.s32 %s122, 1
      %s124 = scalar_select %p121, %s122, %s123
      %p127 = pneg %p121
      %p128 = scmp.eq.s32.totalorder %s13, 1
      %p129 = por %p127, %p128
      %p130 = scmp.ne.s32.totalorder %s122, %s125
      %p131 = scmp.eq.s32.totalorder %s13, 0
      %p132 = por %p130, %p131
      %p133 = scmp.ne.s32.totalorder %s122, %s125
      %p134 = scmp.eq.s32.totalorder %s18, 1
      %p135 = por %p133, %p134
      %p136 = scmp.ne.s32.totalorder %s125, %s126
      %p137 = scmp.eq.s32.totalorder %s18, 0
      %p138 = por %p136, %p137
      %p139 = scmp.ne.s32.totalorder %s125, %s126
      %p140 = scmp.eq.s32.totalorder %s19, 1
      %p141 = por %p139, %p140
      %p143 = scmp.ne.s32.totalorder %s126, %s142
      %p144 = scmp.eq.s32.totalorder %s19, 0
      %p145 = por %p143, %p144
      %s146 = ssub.s32 %s13, %s20
      %p147 = scmp.eq.s32.totalorder %s146, 0
      %s149 = sadd.s32 %s148, 1
      %s150 = scalar_select %p147, %s148, %s149
      %p153 = pneg %p147
      %p154 = scmp.eq.s32.totalorder %s13, 1
      %p155 = por %p153, %p154
      %p156 = scmp.ne.s32.totalorder %s148, %s151
      %p157 = scmp.eq.s32.totalorder %s13, 0
      %p158 = por %p156, %p157
      %p159 = scmp.ne.s32.totalorder %s148, %s151
      %p160 = scmp.eq.s32.totalorder %s18, 1
      %p161 = por %p159, %p160
      %p162 = scmp.ne.s32.totalorder %s151, %s152
      %p163 = scmp.eq.s32.totalorder %s18, 0
      %p164 = por %p162, %p163
      %p165 = scmp.ne.s32.totalorder %s151, %s152
      %p166 = scmp.eq.s32.totalorder %s19, 1
      %p167 = por %p165, %p166
      %p169 = scmp.ne.s32.totalorder %s152, %s168
      %p170 = scmp.eq.s32.totalorder %s19, 0
      %p171 = por %p169, %p170
      %p172 = scmp.le.s32.totalorder 1, %s13
      %p173 = scmp.lt.s32.totalorder %s13, 3
      %p174 = pnand %p172, %p173
      %p175 = pneg %p174
      // Predicated region
      $region9: #{_forward_impl.8} parent=5 // pred_check
        _
      $region10: #{_forward_impl.8} parent=5 // pred_check_branch
        %177 = sbr.rel (%p174) target = $region12
      $region11: #{_forward_impl.8} parent=5 // pred_region
        %s178 = ssub.s32 %s13, 1
        // Predicated region
        $region13: #{_forward_impl.8} parent=11 // pred_check
          %p179 = pneg %p34
        $region14: #{_forward_impl.8} parent=11 // pred_check_branch
          %181 = sbr.rel (%p179) target = $region16
        $region15: #{_forward_impl.8} parent=11 // pred_region
          %s183 = ssub.s32 32, 32
          %184 = vsyncadd [#allocation3], %s183
          %s186 = sshll.u32 %s0, 4
          %s187 = int_to_ptr.vmem [resolvable:$true] %s186
          %189 = dma.vmem_to_smem %s187, 32, [#allocation2], [#allocation3]
        $region16: #{_forward_impl.8} parent=11 // pred_fallthru
          _
      $region12: #{_forward_impl.8} parent=5 // pred_fallthru
        _
      %p190 = scmp.lt.s32.totalorder %s13, 2
      // Predicated region
      $region17: #{_forward_impl.8} parent=5 // pred_check
        %p191 = pneg %p190
      $region18: #{_forward_impl.8} parent=5 // pred_check_branch
        %193 = sbr.rel (%p191) target = $region20
      $region19: #{_forward_impl.8} parent=5 // pred_region
        // Predicated region
        $region21: #{_forward_impl.8} parent=19 // pred_check
          %p194 = pneg %p54
        $region22: #{_forward_impl.8} parent=19 // pred_check_branch
          %196 = sbr.rel (%p194) target = $region24
        $region23: #{_forward_impl.8} parent=19 // pred_region
          %p197 = scmp.lt.s32.totalorder %s13, 1
          %s198 = scalar_select %p197, %s13, 1
          %s199 = smul.addr %s198, 4
          %s200 = scalar_lea.vmem %s1, %s199
        $region24: #{_forward_impl.8} parent=19 // pred_fallthru
          _
        // Predicated region
        $region25: #{_forward_impl.8} parent=19 // pred_check
          %p201 = pneg %p80
        $region26: #{_forward_impl.8} parent=19 // pred_check_branch
          %203 = sbr.rel (%p201) target = $region28
        $region27: #{_forward_impl.8} parent=19 // pred_region
          %p204 = scmp.lt.s32.totalorder %s13, 1
          %s205 = scalar_select %p204, %s13, 1
          %s206 = scalar_lea.vmem %s2, %s205
        $region28: #{_forward_impl.8} parent=19 // pred_fallthru
          _
      $region20: #{_forward_impl.8} parent=5 // pred_fallthru
        _
      %p207 = scmp.le.s32.totalorder 1, %s13
      %p208 = scmp.lt.s32.totalorder %s13, 3
      %p209 = pnand %p207, %p208
      %p210 = pneg %p209
      // Predicated region
      $region29: #{_forward_impl.8} parent=5 // pred_check
        _
      $region30: #{_forward_impl.8} parent=5 // pred_check_branch
        %212 = sbr.rel (%p209) target = $region32
      $region31: #{_forward_impl.8} parent=5 // pred_region
        %s213 = ssub.s32 %s13, 1
        // Predicated region
        $region33: #{_forward_impl.8} parent=31 // pred_check
          %p214 = pneg %p34
        $region34: #{_forward_impl.8} parent=31 // pred_check_branch
          %216 = sbr.rel (%p214) target = $region36
        $region35: #{_forward_impl.8} parent=31 // pred_region
          %217 = dma.done [#allocation3], 32
        $region36: #{_forward_impl.8} parent=31 // pred_fallthru
          _
        %218 = sfence
        %p219 = pneg %p34
        %p220 = pneg %p31
        %p221 = scmp.lt.s32.totalorder %s18, 1
        %s222 = scalar_select %p221, %s18, 1
        %s223 = smul.addr %s222, 4
        %s224 = scalar_lea.vmem %s1, %s223
        %p225 = pneg %p60
        %p226 = pneg %p57
        %p227 = scmp.lt.s32.totalorder %s18, 1
        %s228 = scalar_select %p227, %s18, 1
        %s229 = scalar_lea.vmem %s2, %s228
        %p230 = pneg %p86
        %p231 = pneg %p83
        %p232 = pneg %p112
        %p233 = pneg %p109
        %p234 = scmp.lt.s32.totalorder %s18, 1
        %s235 = scalar_select %p234, %s18, 1
        %s236 = smul.addr %s235, 4
        %s237 = scalar_lea.vmem %s3, %s236
        %p238 = pneg %p138
        %p239 = pneg %p135
        %p240 = scmp.lt.s32.totalorder %s18, 1
        %s241 = scalar_select %p240, %s18, 1
        %s242 = smul.addr %s241, 4
        %s243 = scalar_lea.vmem %s4, %s242
        %p244 = pneg %p164
        %p245 = pneg %p161
        %p246 = scmp.lt.s32.totalorder %s18, 1
        %s247 = scalar_select %p246, %s18, 1
        %s248 = scalar_lea.vmem %s5, %s247
        %p249 = scmp.lt.s32.totalorder %s18, 1
        %s250 = scalar_select %p249, %s18, 1
        %s251 = smul.addr %s250, 4
        %s252 = scalar_lea.vmem %s1, %s251
        %p253 = scmp.lt.s32.totalorder %s18, 1
        %s254 = scalar_select %p253, %s18, 1
        %s255 = scalar_lea.vmem %s2, %s254
        %p256 = scmp.lt.s32.totalorder %s18, 1
        %s257 = scalar_select %p256, %s18, 1
        %s258 = smul.addr %s257, 4
        %s259 = scalar_lea.vmem %s3, %s258
        %p260 = scmp.lt.s32.totalorder %s18, 1
        %s261 = scalar_select %p260, %s18, 1
        %s262 = smul.addr %s261, 4
        %s263 = scalar_lea.vmem %s4, %s262
        %p264 = scmp.lt.s32.totalorder %s18, 1
        %s265 = scalar_select %p264, %s18, 1
        %s266 = scalar_lea.vmem %s5, %s265
        %s267 = smul.u32 %s18, 128
        %s268 = sld [smem:[#allocation2 + %s267]]
        %s269 = sadd.s32 %s267, 1
        %s270 = sld [smem:[#allocation2 + %s269]]
        %v271 = vld [vmem:[%s252] sm:$0xf]
        %v272 = vmul.f32 %v271, 0.5
        %v274 = vrot.slane %v272, 2
        %v276 = vsub.f32 %v271, %v274
        %v277 = vstv %s270
        %v278 = vmul.f32 %v276, %v277
        %v279 = vmax.f32 %v278, 0.0
        %v280 = vmin.f32 %v277, %v279
        %v281 = vstv %s268
        %v282 = vmul.f32 %v276, %v281
        %v283 = vmax.f32 %v282, 0.0
        %v284 = vmin.f32 %v281, %v283
        %v285 = vadd.f32 %v271, %v274
        %v286 = vmul.f32 %v285, %v277
        %v287 = vmax.f32 %v286, 0.0
        %v288 = vmin.f32 %v277, %v287
        %v289 = vmul.f32 %v285, %v281
        %v290 = vmax.f32 %v289, 0.0
        %v291 = vmin.f32 %v281, %v290
        %v293 = vrot.slane %v288, 6
        %v296 = vrot.slane %v291, 6
        %vm298 = vcmask 1040384
        %v299 = vsel %vm298, %v280, %v284
        %vm300 = vcmask 1041408
        %v301 = vsel %vm300, %v299, %v293
        %vm302 = vcmask 1042432
        %v303 = vsel %vm302, %v301, %v296
        %304 = vst [vmem:[%s259] sm:$0xf] %v303
        %v305 = vld [vmem:[%s255] sm:$0x1]
        %v307 = vlaneseq
        %v308 = vshrl.u32 %v307, 7
        %v309 = vsub.s32 0, %v308
        %v310 = vrot.slane %v305, %v309
        %v312 = vadd.f32 %v303, %v310
        %313 = vst [vmem:[%s263] sm:$0xf] %v312
        %v314 = vsub.f32 %v288, %v280
        %vm315 = vcmp.gt.f32.partialorder %v314, 2.0
        %v316 = vsub.f32 %v291, %v284
        %vm317 = vcmp.gt.f32.partialorder %v316, 2.0
        %v318 = vsel %vm317, 1, 0
        %v319 = vrot.slane %v318, 1
        %vm320 = vcmp.ne.s32.totalorder %v319, 0
        %vm321 = vmand %vm315, %vm320
        %v322 = vsel %vm321, 1.0, 0.0
        %323 = vst [vmem:[%s266] sm:$0x1] %v322
        %p324 = scmp.lt.s32.totalorder %s18, 1
        %s325 = scalar_select %p324, %s18, 1
        %s326 = smul.addr %s325, 4
        %s327 = scalar_lea.vmem %s3, %s326
        %p328 = scmp.lt.s32.totalorder %s18, 1
        %s329 = scalar_select %p328, %s18, 1
        %s330 = smul.addr %s329, 4
        %s331 = scalar_lea.vmem %s4, %s330
        %p332 = scmp.lt.s32.totalorder %s18, 1
        %s333 = scalar_select %p332, %s18, 1
        %s334 = scalar_lea.vmem %s5, %s333
        // Predicated region
        $region37: #{_forward_impl.8} parent=31 // pred_check
          %p335 = pneg %p109
        $region38: #{_forward_impl.8} parent=31 // pred_check_branch
          %337 = sbr.rel (%p335) target = $region40
        $region39: #{_forward_impl.8} parent=31 // pred_region
          _
        $region40: #{_forward_impl.8} parent=31 // pred_fallthru
          _
        // Predicated region
        $region41: #{_forward_impl.8} parent=31 // pred_check
          %p338 = pneg %p135
        $region42: #{_forward_impl.8} parent=31 // pred_check_branch
          %340 = sbr.rel (%p338) target = $region44
        $region43: #{_forward_impl.8} parent=31 // pred_region
          _
        $region44: #{_forward_impl.8} parent=31 // pred_fallthru
          _
        // Predicated region
        $region45: #{_forward_impl.8} parent=31 // pred_check
          %p341 = pneg %p161
        $region46: #{_forward_impl.8} parent=31 // pred_check_branch
          %343 = sbr.rel (%p341) target = $region48
        $region47: #{_forward_impl.8} parent=31 // pred_region
          _
        $region48: #{_forward_impl.8} parent=31 // pred_fallthru
          _
      $region32: #{_forward_impl.8} parent=5 // pred_fallthru
        _
      %p344 = scmp.le.s32.totalorder 2, %s13
      // Predicated region
      $region49: #{_forward_impl.8} parent=5 // pred_check
        %p345 = pneg %p344
      $region50: #{_forward_impl.8} parent=5 // pred_check_branch
        %347 = sbr.rel (%p345) target = $region52
      $region51: #{_forward_impl.8} parent=5 // pred_region
        %s348 = ssub.s32 %s13, 2
        // Predicated region
        $region53: #{_forward_impl.8} parent=51 // pred_check
          %p349 = pneg %p115
        $region54: #{_forward_impl.8} parent=51 // pred_check_branch
          %351 = sbr.rel (%p349) target = $region56
        $region55: #{_forward_impl.8} parent=51 // pred_region
          %p352 = scmp.lt.s32.totalorder %s19, 1
          %s353 = scalar_select %p352, %s19, 1
          %s354 = smul.addr %s353, 4
          %s355 = scalar_lea.vmem %s3, %s354
        $region56: #{_forward_impl.8} parent=51 // pred_fallthru
          _
        // Predicated region
        $region57: #{_forward_impl.8} parent=51 // pred_check
          %p356 = pneg %p141
        $region58: #{_forward_impl.8} parent=51 // pred_check_branch
          %358 = sbr.rel (%p356) target = $region60
        $region59: #{_forward_impl.8} parent=51 // pred_region
          %p359 = scmp.lt.s32.totalorder %s19, 1
          %s360 = scalar_select %p359, %s19, 1
          %s361 = smul.addr %s360, 4
          %s362 = scalar_lea.vmem %s4, %s361
        $region60: #{_forward_impl.8} parent=51 // pred_fallthru
          _
        // Predicated region
        $region61: #{_forward_impl.8} parent=51 // pred_check
          %p363 = pneg %p167
        $region62: #{_forward_impl.8} parent=51 // pred_check_branch
          %365 = sbr.rel (%p363) target = $region64
        $region63: #{_forward_impl.8} parent=51 // pred_region
          %p366 = scmp.lt.s32.totalorder %s19, 1
          %s367 = scalar_select %p366, %s19, 1
          %s368 = scalar_lea.vmem %s5, %s367
        $region64: #{_forward_impl.8} parent=51 // pred_fallthru
          _
      $region52: #{_forward_impl.8} parent=5 // pred_fallthru
        _
    $region6: #{_forward_impl.8} parent=1 // loop_footer
      %s17 = sadd.s32 1, %s13
    $region7: #{_forward_impl.8} parent=1 // loop_footer_branch
      %12 = sbr.rel target = $region3
    $region8: #{_forward_impl.8} parent=1 // loop_exit
      _
    %369 = vsyncpa [#allocation3], 1
    %s370 = scalar_lea.sflag [#allocation3], 1
    %371 = vsyncpa %s370, 1

// kernel: _forward_impl.9
$region0: #{_forward_impl.9}
  #allocation0 [shape = 'u32[]', space=smem, size = 0x4, offset = 0x4, fixed_abs, tag = 'smem constant byte address 0x4 - core index']
  #allocation1 [shape = 'u32[144,128]{1,0:T(1,128)}', space=vmem, size = 0x12000, scoped, tag = 'internal scratch']
  %s0 = inlined_call_operand.vmem [shape: f32[2,128,4], index: 0, kind: input, shape index: {}]
  %s1 = inlined_call_operand.vmem [shape: f32[2,4,128], index: 1, kind: input, shape index: {}]
  %s2 = inlined_call_operand.vmem [shape: f32[2,128,128], index: 2, kind: output, shape index: {}]
  %s3 = sld [smem:[#allocation0]]
  $region41: #{_forward_impl.9} parent=0
    _
  %s5 = ssub.s32 1, %s3
  %s6 = scalar_select 0, %s5, %s3
  loop: start=0, step=1, limit=4
  $region2: #{_forward_impl.9} parent=0 // loop_pre_header
    _
  $region3: #{_forward_impl.9} parent=0 // loop_header
    %s8 = sphi 0, %s12
    %p9 = scmp.ge.s32.totalorder %s8, 4
    %s15 = sphi 0, %s27
    %s16 = sphi 0, %s23
    %s17 = sphi 0, %s15
    %s18 = sphi 0, %s16
    %s19 = sphi 0, %s17
    %s20 = sphi 0, %s18
    %s32 = sphi 0, %s34
    %s35 = sphi 0, %s32
    %s36 = sphi 0, %s35
    %s52 = sphi 0, %s36
    %s58 = sphi 0, %s60
    %s61 = sphi 0, %s58
    %s62 = sphi 0, %s61
    %s78 = sphi 0, %s62
    %s86 = sphi 0, %s88
    %s89 = sphi 0, %s86
    %s90 = sphi 0, %s89
    %s106 = sphi 0, %s90
  $region4: #{_forward_impl.9} parent=0 // loop_header_branch
    %11 = sbr.rel (%p9) target = $region8
  $region5: #{_forward_impl.9} parent=0 // loop_body
    %s13 = ssub.s32 %s8, 1
    %s14 = ssub.s32 %s8, 2
    %s21 = sadd.s32 1, %s16
    %p22 = scmp.ge.s32.totalorder %s21, 1
    %s23 = scalar_select %p22, 0, %s21
    %s24 = sadd.s32 1, %s15
    %s25 = scalar_select %p22, %s24, %s15
    %p26 = scmp.ge.s32.totalorder %s25, 2
    %s27 = scalar_select %p26, 0, %s25
    %s28 = ssub.s32 %s15, %s27
    %s29 = ssub.s32 %s16, %s23
    %s30 = sor.u32 %s28, %s29
    %p31 = scmp.eq.s32.totalorder %s30, 0
    %s33 = sadd.s32 %s32, 1
    %s34 = scalar_select %p31, %s32, %s33
    %p37 = pneg %p31
    %p38 = scmp.eq.s32.totalorder %s8, 1
    %p39 = por %p37, %p38
    %p40 = scmp.ne.s32.totalorder %s32, %s35
    %p41 = scmp.eq.s32.totalorder %s8, 0
    %p42 = por %p40, %p41
    %p43 = scmp.ne.s32.totalorder %s32, %s35
    %p44 = scmp.eq.s32.totalorder %s13, 1
    %p45 = por %p43, %p44
    %p46 = scmp.ne.s32.totalorder %s35, %s36
    %p47 = scmp.eq.s32.totalorder %s13, 0
    %p48 = por %p46, %p47
    %p49 = scmp.ne.s32.totalorder %s35, %s36
    %p50 = scmp.eq.s32.totalorder %s14, 1
    %p51 = por %p49, %p50
    %p53 = scmp.ne.s32.totalorder %s36, %s52
    %p54 = scmp.eq.s32.totalorder %s14, 0
    %p55 = por %p53, %p54
    %s56 = ssub.s32 %s15, %s27
    %p57 = scmp.eq.s32.totalorder %s56, 0
    %s59 = sadd.s32 %s58, 1
    %s60 = scalar_select %p57, %s58, %s59
    %p63 = pneg %p57
    %p64 = scmp.eq.s32.totalorder %s8, 1
    %p65 = por %p63, %p64
    %p66 = scmp.ne.s32.totalorder %s58, %s61
    %p67 = scmp.eq.s32.totalorder %s8, 0
    %p68 = por %p66, %p67
    %p69 = scmp.ne.s32.totalorder %s58, %s61
    %p70 = scmp.eq.s32.totalorder %s13, 1
    %p71 = por %p69, %p70
    %p72 = scmp.ne.s32.totalorder %s61, %s62
    %p73 = scmp.eq.s32.totalorder %s13, 0
    %p74 = por %p72, %p73
    %p75 = scmp.ne.s32.totalorder %s61, %s62
    %p76 = scmp.eq.s32.totalorder %s14, 1
    %p77 = por %p75, %p76
    %p79 = scmp.ne.s32.totalorder %s62, %s78
    %p80 = scmp.eq.s32.totalorder %s14, 0
    %p81 = por %p79, %p80
    %s82 = ssub.s32 %s15, %s27
    %s83 = ssub.s32 %s16, %s23
    %s84 = sor.u32 %s82, %s83
    %p85 = scmp.eq.s32.totalorder %s84, 0
    %s87 = sadd.s32 %s86, 1
    %s88 = scalar_select %p85, %s86, %s87
    %p91 = pneg %p85
    %p92 = scmp.eq.s32.totalorder %s8, 1
    %p93 = por %p91, %p92
    %p94 = scmp.ne.s32.totalorder %s86, %s89
    %p95 = scmp.eq.s32.totalorder %s8, 0
    %p96 = por %p94, %p95
    %p97 = scmp.ne.s32.totalorder %s86, %s89
    %p98 = scmp.eq.s32.totalorder %s13, 1
    %p99 = por %p97, %p98
    %p100 = scmp.ne.s32.totalorder %s89, %s90
    %p101 = scmp.eq.s32.totalorder %s13, 0
    %p102 = por %p100, %p101
    %p103 = scmp.ne.s32.totalorder %s89, %s90
    %p104 = scmp.eq.s32.totalorder %s14, 1
    %p105 = por %p103, %p104
    %p107 = scmp.ne.s32.totalorder %s90, %s106
    %p108 = scmp.eq.s32.totalorder %s14, 0
    %p109 = por %p107, %p108
    %p110 = scmp.le.s32.totalorder 1, %s8
    %p111 = scmp.lt.s32.totalorder %s8, 3
    %p112 = pnand %p110, %p111
    %p113 = pneg %p112
    // Predicated region
    $region9: #{_forward_impl.9} parent=5 // pred_check
      _
    $region10: #{_forward_impl.9} parent=5 // pred_check_branch
      %115 = sbr.rel (%p112) target = $region12
    $region11: #{_forward_impl.9} parent=5 // pred_region
      %s116 = ssub.s32 %s8, 1
    $region12: #{_forward_impl.9} parent=5 // pred_fallthru
      _
    %p117 = scmp.lt.s32.totalorder %s8, 2
    // Predicated region
    $region13: #{_forward_impl.9} parent=5 // pred_check
      %p118 = pneg %p117
    $region14: #{_forward_impl.9} parent=5 // pred_check_branch
      %120 = sbr.rel (%p118) target = $region16
    $region15: #{_forward_impl.9} parent=5 // pred_region
      // Predicated region
      $region17: #{_forward_impl.9} parent=15 // pred_check
        %p121 = pneg %p42
      $region18: #{_forward_impl.9} parent=15 // pred_check_branch
        %123 = sbr.rel (%p121) target = $region20
      $region19: #{_forward_impl.9} parent=15 // pred_region
        %s124 = smul.u32 16, %s16
        %p125 = scmp.lt.s32.totalorder %s15, 1
        %s126 = scalar_select %p125, %s15, 1
        %p127 = scmp.lt.s32.totalorder %s124, 15
        %s128 = scalar_select %p127, %s124, 15
        %s129 = smul.addr %s126, 16
        %s130 = sadd.s32 %s128, %s129
        %s131 = smul.addr %s130, 8
        %s132 = scalar_lea.vmem %s0, %s131
        %s133 = smul.u32 16, %s16
      $region20: #{_forward_impl.9} parent=15 // pred_fallthru
        _
      // Predicated region
      $region21: #{_forward_impl.9} parent=15 // pred_check
        %p134 = pneg %p68
      $region22: #{_forward_impl.9} parent=15 // pred_check_branch
        %136 = sbr.rel (%p134) target = $region24
      $region23: #{_forward_impl.9} parent=15 // pred_region
        %p137 = scmp.lt.s32.totalorder %s15, 1
        %s138 = scalar_select %p137, %s15, 1
        %s139 = smul.addr %s138, 4
        %s140 = scalar_lea.vmem %s1, %s139
      $region24: #{_forward_impl.9} parent=15 // pred_fallthru
        _
    $region16: #{_forward_impl.9} parent=5 // pred_fallthru
      _
    %p141 = scmp.le.s32.totalorder 1, %s8
    %p142 = scmp.lt.s32.totalorder %s8, 3
    %p143 = pnand %p141, %p142
    %p144 = pneg %p143
    // Predicated region
    $region25: #{_forward_impl.9} parent=5 // pred_check
      _
    $region26: #{_forward_impl.9} parent=5 // pred_check_branch
      %146 = sbr.rel (%p143) target = $region28
    $region27: #{_forward_impl.9} parent=5 // pred_region
      %s147 = ssub.s32 %s8, 1
      %s148 = smul.u32 16, %s18
      %p149 = scmp.lt.s32.totalorder %s17, 1
      %s150 = scalar_select %p149, %s17, 1
      %p151 = scmp.lt.s32.totalorder %s148, 15
      %s152 = scalar_select %p151, %s148, 15
      %s153 = smul.addr %s150, 16
      %s154 = sadd.s32 %s152, %s153
      %s155 = smul.addr %s154, 8
      %s156 = scalar_lea.vmem %s0, %s155
      %p157 = pneg %p48
      %p158 = pneg %p45
      %p159 = scmp.lt.s32.totalorder %s17, 1
      %s160 = scalar_select %p159, %s17, 1
      %s161 = smul.addr %s160, 4
      %s162 = scalar_lea.vmem %s1, %s161
      %p163 = pneg %p74
      %p164 = pneg %p71
      %p165 = pneg %p102
      %p166 = pneg %p99
      %s167 = smul.u32 16, %s18
      %p168 = scmp.lt.s32.totalorder %s17, 1
      %s169 = scalar_select %p168, %s17, 1
      %p170 = scmp.lt.s32.totalorder %s167, 15
      %s171 = scalar_select %p170, %s167, 15
      %s172 = smul.addr %s169, 16
      %s173 = sadd.s32 %s171, %s172
      %s174 = smul.addr %s173, 8
      %s175 = scalar_lea.vmem %s2, %s174
      %s176 = smul.u32 16, %s18
      %p177 = scmp.lt.s32.totalorder %s17, 1
      %s178 = scalar_select %p177, %s17, 1
      %p179 = scmp.lt.s32.totalorder %s176, 15
      %s180 = scalar_select %p179, %s176, 15
      %s181 = smul.addr %s178, 16
      %s182 = sadd.s32 %s180, %s181
      %s183 = smul.addr %s182, 8
      %s184 = scalar_lea.vmem %s0, %s183
      %s185 = smul.u32 16, %s18
      %p186 = scmp.lt.s32.totalorder %s17, 1
      %s187 = scalar_select %p186, %s17, 1
      %s188 = smul.addr %s187, 4
      %s189 = scalar_lea.vmem %s1, %s188
      %s190 = smul.u32 16, %s18
      %p191 = scmp.lt.s32.totalorder %s17, 1
      %s192 = scalar_select %p191, %s17, 1
      %p193 = scmp.lt.s32.totalorder %s190, 15
      %s194 = scalar_select %p193, %s190, 15
      %s195 = smul.addr %s192, 16
      %s196 = sadd.s32 %s194, %s195
      %s197 = smul.addr %s196, 8
      %s198 = scalar_lea.vmem %s2, %s197
      %s199 = smul.u32 16, %s18
      %v200 = vld [vmem:[%s184] sm:$0xff]
      %v201 = vld [vmem:[%s184 + $0x8] sm:$0xff]
      %v202 = vld [vmem:[%s184 + $0x10] sm:$0xff]
      %v203 = vld [vmem:[%s184 + $0x18] sm:$0xff]
      %v204 = vld [vmem:[%s184 + $0x20] sm:$0xff]
      %v205 = vld [vmem:[%s184 + $0x28] sm:$0xff]
      %v206 = vld [vmem:[%s184 + $0x30] sm:$0xff]
      %v207 = vld [vmem:[%s184 + $0x38] sm:$0xff]
      %v208 = vld [vmem:[%s184 + $0x40] sm:$0xff]
      %v209 = vld [vmem:[%s184 + $0x48] sm:$0xff]
      %v210 = vld [vmem:[%s184 + $0x50] sm:$0xff]
      %v211 = vld [vmem:[%s184 + $0x58] sm:$0xff]
      %v212 = vld [vmem:[%s184 + $0x60] sm:$0xff]
      %v213 = vld [vmem:[%s184 + $0x68] sm:$0xff]
      %v214 = vld [vmem:[%s184 + $0x70] sm:$0xff]
      %v215 = vld [vmem:[%s184 + $0x78] sm:$0xff]
      %v216 = vld [vmem:[%s189] sm:$0xf]
      %218 = vset.pattern.permute.xlu0 0
      %219 = vperm.xlu0 %218, %v200
      %v220 = vpop.permute.xlu0 %219
      %223 = vset.pattern.permute.xlu0 0
      %224 = vperm.xlu0 %223, %v201
      %v225 = vpop.permute.xlu0 %224
      %228 = vset.pattern.permute.xlu0 0
      %229 = vperm.xlu0 %228, %v202
      %v230 = vpop.permute.xlu0 %229
      %233 = vset.pattern.permute.xlu0 0
      %234 = vperm.xlu0 %233, %v203
      %v235 = vpop.permute.xlu0 %234
      %238 = vset.pattern.permute.xlu0 0
      %239 = vperm.xlu0 %238, %v204
      %v240 = vpop.permute.xlu0 %239
      %243 = vset.pattern.permute.xlu0 0
      %244 = vperm.xlu0 %243, %v205
      %v245 = vpop.permute.xlu0 %244
      %248 = vset.pattern.permute.xlu0 0
      %249 = vperm.xlu0 %248, %v206
      %v250 = vpop.permute.xlu0 %249
      %253 = vset.pattern.permute.xlu0 0
      %254 = vperm.xlu0 %253, %v207
      %v255 = vpop.permute.xlu0 %254
      %258 = vset.pattern.permute.xlu0 0
      %259 = vperm.xlu0 %258, %v208
      %v260 = vpop.permute.xlu0 %259
      %263 = vset.pattern.permute.xlu0 0
      %264 = vperm.xlu0 %263, %v209
      %v265 = vpop.permute.xlu0 %264
      %268 = vset.pattern.permute.xlu0 0
      %269 = vperm.xlu0 %268, %v210
      %v270 = vpop.permute.xlu0 %269
      %273 = vset.pattern.permute.xlu0 0
      %274 = vperm.xlu0 %273, %v211
      %v275 = vpop.permute.xlu0 %274
      %278 = vset.pattern.permute.xlu0 0
      %279 = vperm.xlu0 %278, %v212
      %v280 = vpop.permute.xlu0 %279
      %283 = vset.pattern.permute.xlu0 0
      %284 = vperm.xlu0 %283, %v213
      %v285 = vpop.permute.xlu0 %284
      %288 = vset.pattern.permute.xlu0 0
      %289 = vperm.xlu0 %288, %v214
      %v290 = vpop.permute.xlu0 %289
      %293 = vset.pattern.permute.xlu0 0
      %294 = vperm.xlu0 %293, %v215
      %v295 = vpop.permute.xlu0 %294
      %v297 = vlaneseq
      %v298 = vshrl.u32 %v297, 7
      %v299 = vsub.s32 0, %v298
      %v300 = vrot.slane %v216, %v299
      %v301 = vmax.f32 %v220, %v300
      %v302 = vmax.f32 %v225, %v300
      %v303 = vmax.f32 %v230, %v300
      %v304 = vmax.f32 %v235, %v300
      %v305 = vmax.f32 %v240, %v300
      %v306 = vmax.f32 %v245, %v300
      %v307 = vmax.f32 %v250, %v300
      %v308 = vmax.f32 %v255, %v300
      %v309 = vmax.f32 %v260, %v300
      %v310 = vmax.f32 %v265, %v300
      %v311 = vmax.f32 %v270, %v300
      %v312 = vmax.f32 %v275, %v300
      %v313 = vmax.f32 %v280, %v300
      %v314 = vmax.f32 %v285, %v300
      %v315 = vmax.f32 %v290, %v300
      %v316 = vmax.f32 %v295, %v300
      %317 = vset.pattern.permute.xlu0 1
      %318 = vperm.xlu0 %317, %v200
      %v319 = vpop.permute.xlu0 %318
      %321 = vset.pattern.permute.xlu0 1
      %322 = vperm.xlu0 %321, %v201
      %v323 = vpop.permute.xlu0 %322
      %325 = vset.pattern.permute.xlu0 1
      %326 = vperm.xlu0 %325, %v202
      %v327 = vpop.permute.xlu0 %326
      %329 = vset.pattern.permute.xlu0 1
      %330 = vperm.xlu0 %329, %v203
      %v331 = vpop.permute.xlu0 %330
      %333 = vset.pattern.permute.xlu0 1
      %334 = vperm.xlu0 %333, %v204
      %v335 = vpop.permute.xlu0 %334
      %337 = vset.pattern.permute.xlu0 1
      %338 = vperm.xlu0 %337, %v205
      %v339 = vpop.permute.xlu0 %338
      %341 = vset.pattern.permute.xlu0 1
      %342 = vperm.xlu0 %341, %v206
      %v343 = vpop.permute.xlu0 %342
      %345 = vset.pattern.permute.xlu0 1
      %346 = vperm.xlu0 %345, %v207
      %v347 = vpop.permute.xlu0 %346
      %349 = vset.pattern.permute.xlu0 1
      %350 = vperm.xlu0 %349, %v208
      %v351 = vpop.permute.xlu0 %350
      %353 = vset.pattern.permute.xlu0 1
      %354 = vperm.xlu0 %353, %v209
      %v355 = vpop.permute.xlu0 %354
      %357 = vset.pattern.permute.xlu0 1
      %358 = vperm.xlu0 %357, %v210
      %v359 = vpop.permute.xlu0 %358
      %361 = vset.pattern.permute.xlu0 1
      %362 = vperm.xlu0 %361, %v211
      %v363 = vpop.permute.xlu0 %362
      %365 = vset.pattern.permute.xlu0 1
      %366 = vperm.xlu0 %365, %v212
      %v367 = vpop.permute.xlu0 %366
      %369 = vset.pattern.permute.xlu0 1
      %370 = vperm.xlu0 %369, %v213
      %v371 = vpop.permute.xlu0 %370
      %373 = vset.pattern.permute.xlu0 1
      %374 = vperm.xlu0 %373, %v214
      %v375 = vpop.permute.xlu0 %374
      %377 = vset.pattern.permute.xlu0 1
      %378 = vperm.xlu0 %377, %v215
      %v379 = vpop.permute.xlu0 %378
      %v381 = vlaneseq
      %v382 = vshrl.u32 %v381, 7
      %v383 = vsub.s32 1, %v382
      %v384 = vrot.slane %v216, %v383
      %v385 = vmax.f32 %v319, %v384
      %v386 = vmax.f32 %v323, %v384
      %v387 = vmax.f32 %v327, %v384
      %v388 = vmax.f32 %v331, %v384
      %v389 = vmax.f32 %v335, %v384
      %v390 = vmax.f32 %v339, %v384
      %v391 = vmax.f32 %v343, %v384
      %v392 = vmax.f32 %v347, %v384
      %v393 = vmax.f32 %v351, %v384
      %v394 = vmax.f32 %v355, %v384
      %v395 = vmax.f32 %v359, %v384
      %v396 = vmax.f32 %v363, %v384
      %v397 = vmax.f32 %v367, %v384
      %v398 = vmax.f32 %v371, %v384
      %v399 = vmax.f32 %v375, %v384
      %v400 = vmax.f32 %v379, %v384
      %401 = vset.pattern.permute.xlu0 2
      %402 = vperm.xlu0 %401, %v200
      %v403 = vpop.permute.xlu0 %402
      %405 = vset.pattern.permute.xlu0 2
      %406 = vperm.xlu0 %405, %v201
      %v407 = vpop.permute.xlu0 %406
      %409 = vset.pattern.permute.xlu0 2
      %410 = vperm.xlu0 %409, %v202
      %v411 = vpop.permute.xlu0 %410
      %413 = vset.pattern.permute.xlu0 2
      %414 = vperm.xlu0 %413, %v203
      %v415 = vpop.permute.xlu0 %414
      %417 = vset.pattern.permute.xlu0 2
      %418 = vperm.xlu0 %417, %v204
      %v419 = vpop.permute.xlu0 %418
      %421 = vset.pattern.permute.xlu0 2
      %422 = vperm.xlu0 %421, %v205
      %v423 = vpop.permute.xlu0 %422
      %425 = vset.pattern.permute.xlu0 2
      %426 = vperm.xlu0 %425, %v206
      %v427 = vpop.permute.xlu0 %426
      %429 = vset.pattern.permute.xlu0 2
      %430 = vperm.xlu0 %429, %v207
      %v431 = vpop.permute.xlu0 %430
      %433 = vset.pattern.permute.xlu0 2
      %434 = vperm.xlu0 %433, %v208
      %v435 = vpop.permute.xlu0 %434
      %437 = vset.pattern.permute.xlu0 2
      %438 = vperm.xlu0 %437, %v209
      %v439 = vpop.permute.xlu0 %438
      %441 = vset.pattern.permute.xlu0 2
      %442 = vperm.xlu0 %441, %v210
      %v443 = vpop.permute.xlu0 %442
      %445 = vset.pattern.permute.xlu0 2
      %446 = vperm.xlu0 %445, %v211
      %v447 = vpop.permute.xlu0 %446
      %449 = vset.pattern.permute.xlu0 2
      %450 = vperm.xlu0 %449, %v212
      %v451 = vpop.permute.xlu0 %450
      %453 = vset.pattern.permute.xlu0 2
      %454 = vperm.xlu0 %453, %v213
      %v455 = vpop.permute.xlu0 %454
      %457 = vset.pattern.permute.xlu0 2
      %458 = vperm.xlu0 %457, %v214
      %v459 = vpop.permute.xlu0 %458
      %461 = vset.pattern.permute.xlu0 2
      %462 = vperm.xlu0 %461, %v215
      %v463 = vpop.permute.xlu0 %462
      %v465 = vlaneseq
      %v466 = vshrl.u32 %v465, 7
      %v467 = vsub.s32 2, %v466
      %v468 = vrot.slane %v216, %v467
      %v469 = vmin.f32 %v403, %v468
      %v470 = vmin.f32 %v407, %v468
      %v471 = vmin.f32 %v411, %v468
      %v472 = vmin.f32 %v415, %v468
      %v473 = vmin.f32 %v419, %v468
      %v474 = vmin.f32 %v423, %v468
      %v475 = vmin.f32 %v427, %v468
      %v476 = vmin.f32 %v431, %v468
      %v477 = vmin.f32 %v435, %v468
      %v478 = vmin.f32 %v439, %v468
      %v479 = vmin.f32 %v443, %v468
      %v480 = vmin.f32 %v447, %v468
      %v481 = vmin.f32 %v451, %v468
      %v482 = vmin.f32 %v455, %v468
      %v483 = vmin.f32 %v459, %v468
      %v484 = vmin.f32 %v463, %v468
      %485 = vset.pattern.permute.xlu0 3
      %486 = vperm.xlu0 %485, %v200
      %v487 = vpop.permute.xlu0 %486
      %489 = vset.pattern.permute.xlu0 3
      %490 = vperm.xlu0 %489, %v201
      %v491 = vpop.permute.xlu0 %490
      %493 = vset.pattern.permute.xlu0 3
      %494 = vperm.xlu0 %493, %v202
      %v495 = vpop.permute.xlu0 %494
      %497 = vset.pattern.permute.xlu0 3
      %498 = vperm.xlu0 %497, %v203
      %v499 = vpop.permute.xlu0 %498
      %501 = vset.pattern.permute.xlu0 3
      %502 = vperm.xlu0 %501, %v204
      %v503 = vpop.permute.xlu0 %502
      %505 = vset.pattern.permute.xlu0 3
      %506 = vperm.xlu0 %505, %v205
      %v507 = vpop.permute.xlu0 %506
      %509 = vset.pattern.permute.xlu0 3
      %510 = vperm.xlu0 %509, %v206
      %v511 = vpop.permute.xlu0 %510
      %513 = vset.pattern.permute.xlu0 3
      %514 = vperm.xlu0 %513, %v207
      %v515 = vpop.permute.xlu0 %514
      %517 = vset.pattern.permute.xlu0 3
      %518 = vperm.xlu0 %517, %v208
      %v519 = vpop.permute.xlu0 %518
      %521 = vset.pattern.permute.xlu0 3
      %522 = vperm.xlu0 %521, %v209
      %v523 = vpop.permute.xlu0 %522
      %525 = vset.pattern.permute.xlu0 3
      %526 = vperm.xlu0 %525, %v210
      %v527 = vpop.permute.xlu0 %526
      %529 = vset.pattern.permute.xlu0 3
      %530 = vperm.xlu0 %529, %v211
      %v531 = vpop.permute.xlu0 %530
      %533 = vset.pattern.permute.xlu0 3
      %534 = vperm.xlu0 %533, %v212
      %v535 = vpop.permute.xlu0 %534
      %537 = vset.pattern.permute.xlu0 3
      %538 = vperm.xlu0 %537, %v213
      %v539 = vpop.permute.xlu0 %538
      %541 = vset.pattern.permute.xlu0 3
      %542 = vperm.xlu0 %541, %v214
      %v543 = vpop.permute.xlu0 %542
      %545 = vset.pattern.permute.xlu0 3
      %546 = vperm.xlu0 %545, %v215
      %v547 = vpop.permute.xlu0 %546
      %v549 = vlaneseq
      %v550 = vshrl.u32 %v549, 7
      %v551 = vsub.s32 3, %v550
      %v552 = vrot.slane %v216, %v551
      %v553 = vmin.f32 %v487, %v552
      %v554 = vmin.f32 %v491, %v552
      %v555 = vmin.f32 %v495, %v552
      %v556 = vmin.f32 %v499, %v552
      %v557 = vmin.f32 %v503, %v552
      %v558 = vmin.f32 %v507, %v552
      %v559 = vmin.f32 %v511, %v552
      %v560 = vmin.f32 %v515, %v552
      %v561 = vmin.f32 %v519, %v552
      %v562 = vmin.f32 %v523, %v552
      %v563 = vmin.f32 %v527, %v552
      %v564 = vmin.f32 %v531, %v552
      %v565 = vmin.f32 %v535, %v552
      %v566 = vmin.f32 %v539, %v552
      %v567 = vmin.f32 %v543, %v552
      %v568 = vmin.f32 %v547, %v552
      %v569 = vsub.f32 %v469, %v301
      %v570 = vsub.f32 %v470, %v302
      %v571 = vsub.f32 %v471, %v303
      %v572 = vsub.f32 %v472, %v304
      %v573 = vsub.f32 %v473, %v305
      %v574 = vsub.f32 %v474, %v306
      %v575 = vsub.f32 %v475, %v307
      %v576 = vsub.f32 %v476, %v308
      %v577 = vsub.f32 %v477, %v309
      %v578 = vsub.f32 %v478, %v310
      %v579 = vsub.f32 %v479, %v311
      %v580 = vsub.f32 %v480, %v312
      %v581 = vsub.f32 %v481, %v313
      %v582 = vsub.f32 %v482, %v314
      %v583 = vsub.f32 %v483, %v315
      %v584 = vsub.f32 %v484, %v316
      %v585 = vmax.f32 %v569, 0.0
      %v586 = vmax.f32 %v570, 0.0
      %v587 = vmax.f32 %v571, 0.0
      %v588 = vmax.f32 %v572, 0.0
      %v589 = vmax.f32 %v573, 0.0
      %v590 = vmax.f32 %v574, 0.0
      %v591 = vmax.f32 %v575, 0.0
      %v592 = vmax.f32 %v576, 0.0
      %v593 = vmax.f32 %v577, 0.0
      %v594 = vmax.f32 %v578, 0.0
      %v595 = vmax.f32 %v579, 0.0
      %v596 = vmax.f32 %v580, 0.0
      %v597 = vmax.f32 %v581, 0.0
      %v598 = vmax.f32 %v582, 0.0
      %v599 = vmax.f32 %v583, 0.0
      %v600 = vmax.f32 %v584, 0.0
      %v601 = vsub.f32 %v553, %v385
      %v602 = vsub.f32 %v554, %v386
      %v603 = vsub.f32 %v555, %v387
      %v604 = vsub.f32 %v556, %v388
      %v605 = vsub.f32 %v557, %v389
      %v606 = vsub.f32 %v558, %v390
      %v607 = vsub.f32 %v559, %v391
      %v608 = vsub.f32 %v560, %v392
      %v609 = vsub.f32 %v561, %v393
      %v610 = vsub.f32 %v562, %v394
      %v611 = vsub.f32 %v563, %v395
      %v612 = vsub.f32 %v564, %v396
      %v613 = vsub.f32 %v565, %v397
      %v614 = vsub.f32 %v566, %v398
      %v615 = vsub.f32 %v567, %v399
      %v616 = vsub.f32 %v568, %v400
      %v617 = vmax.f32 %v601, 0.0
      %v618 = vmax.f32 %v602, 0.0
      %v619 = vmax.f32 %v603, 0.0
      %v620 = vmax.f32 %v604, 0.0
      %v621 = vmax.f32 %v605, 0.0
      %v622 = vmax.f32 %v606, 0.0
      %v623 = vmax.f32 %v607, 0.0
      %v624 = vmax.f32 %v608, 0.0
      %v625 = vmax.f32 %v609, 0.0
      %v626 = vmax.f32 %v610, 0.0
      %v627 = vmax.f32 %v611, 0.0
      %v628 = vmax.f32 %v612, 0.0
      %v629 = vmax.f32 %v613, 0.0
      %v630 = vmax.f32 %v614, 0.0
      %v631 = vmax.f32 %v615, 0.0
      %v632 = vmax.f32 %v616, 0.0
      %v633 = vmul.f32 %v585, %v617
      %v634 = vmul.f32 %v586, %v618
      %v635 = vmul.f32 %v587, %v619
      %v636 = vmul.f32 %v588, %v620
      %v637 = vmul.f32 %v589, %v621
      %v638 = vmul.f32 %v590, %v622
      %v639 = vmul.f32 %v591, %v623
      %v640 = vmul.f32 %v592, %v624
      %v641 = vmul.f32 %v593, %v625
      %v642 = vmul.f32 %v594, %v626
      %v643 = vmul.f32 %v595, %v627
      %v644 = vmul.f32 %v596, %v628
      %v645 = vmul.f32 %v597, %v629
      %v646 = vmul.f32 %v598, %v630
      %v647 = vmul.f32 %v599, %v631
      %v648 = vmul.f32 %v600, %v632
      %649 = vrot.lane.b32.xlu0 %v200, 2
      %v650 = vpop.permute.xlu0 %649
      %651 = vrot.lane.b32.xlu0 %v201, 2
      %v652 = vpop.permute.xlu0 %651
      %653 = vrot.lane.b32.xlu0 %v202, 2
      %v654 = vpop.permute.xlu0 %653
      %655 = vrot.lane.b32.xlu0 %v203, 2
      %v656 = vpop.permute.xlu0 %655
      %657 = vrot.lane.b32.xlu0 %v204, 2
      %v658 = vpop.permute.xlu0 %657
      %659 = vrot.lane.b32.xlu0 %v205, 2
      %v660 = vpop.permute.xlu0 %659
      %661 = vrot.lane.b32.xlu0 %v206, 2
      %v662 = vpop.permute.xlu0 %661
      %663 = vrot.lane.b32.xlu0 %v207, 2
      %v664 = vpop.permute.xlu0 %663
      %665 = vrot.lane.b32.xlu0 %v208, 2
      %v666 = vpop.permute.xlu0 %665
      %667 = vrot.lane.b32.xlu0 %v209, 2
      %v668 = vpop.permute.xlu0 %667
      %669 = vrot.lane.b32.xlu0 %v210, 2
      %v670 = vpop.permute.xlu0 %669
      %671 = vrot.lane.b32.xlu0 %v211, 2
      %v672 = vpop.permute.xlu0 %671
      %673 = vrot.lane.b32.xlu0 %v212, 2
      %v674 = vpop.permute.xlu0 %673
      %675 = vrot.lane.b32.xlu0 %v213, 2
      %v676 = vpop.permute.xlu0 %675
      %677 = vrot.lane.b32.xlu0 %v214, 2
      %v678 = vpop.permute.xlu0 %677
      %679 = vrot.lane.b32.xlu0 %v215, 2
      %v680 = vpop.permute.xlu0 %679
      %v697 = vsub.f32 %v200, %v650
      %v698 = vsub.f32 %v201, %v652
      %v699 = vsub.f32 %v202, %v654
      %v700 = vsub.f32 %v203, %v656
      %v701 = vsub.f32 %v204, %v658
      %v702 = vsub.f32 %v205, %v660
      %v703 = vsub.f32 %v206, %v662
      %v704 = vsub.f32 %v207, %v664
      %v705 = vsub.f32 %v208, %v666
      %v706 = vsub.f32 %v209, %v668
      %v707 = vsub.f32 %v210, %v670
      %v708 = vsub.f32 %v211, %v672
      %v709 = vsub.f32 %v212, %v674
      %v710 = vsub.f32 %v213, %v676
      %v711 = vsub.f32 %v214, %v678
      %v712 = vsub.f32 %v215, %v680
      %729 = vrot.lane.b32.xlu0 %v697, 127
      %v730 = vpop.permute.xlu0 %729
      %731 = vrot.lane.b32.xlu0 %v698, 127
      %v732 = vpop.permute.xlu0 %731
      %733 = vrot.lane.b32.xlu0 %v699, 127
      %v734 = vpop.permute.xlu0 %733
      %735 = vrot.lane.b32.xlu0 %v700, 127
      %v736 = vpop.permute.xlu0 %735
      %737 = vrot.lane.b32.xlu0 %v701, 127
      %v738 = vpop.permute.xlu0 %737
      %739 = vrot.lane.b32.xlu0 %v702, 127
      %v740 = vpop.permute.xlu0 %739
      %741 = vrot.lane.b32.xlu0 %v703, 127
      %v742 = vpop.permute.xlu0 %741
      %743 = vrot.lane.b32.xlu0 %v704, 127
      %v744 = vpop.permute.xlu0 %743
      %745 = vrot.lane.b32.xlu0 %v705, 127
      %v746 = vpop.permute.xlu0 %745
      %747 = vrot.lane.b32.xlu0 %v706, 127
      %v748 = vpop.permute.xlu0 %747
      %749 = vrot.lane.b32.xlu0 %v707, 127
      %v750 = vpop.permute.xlu0 %749
      %751 = vrot.lane.b32.xlu0 %v708, 127
      %v752 = vpop.permute.xlu0 %751
      %753 = vrot.lane.b32.xlu0 %v709, 127
      %v754 = vpop.permute.xlu0 %753
      %755 = vrot.lane.b32.xlu0 %v710, 127
      %v756 = vpop.permute.xlu0 %755
      %757 = vrot.lane.b32.xlu0 %v711, 127
      %v758 = vpop.permute.xlu0 %757
      %759 = vrot.lane.b32.xlu0 %v712, 127
      %v760 = vpop.permute.xlu0 %759
      %v777 = vmul.f32 %v697, %v730
      %v778 = vmul.f32 %v698, %v732
      %v779 = vmul.f32 %v699, %v734
      %v780 = vmul.f32 %v700, %v736
      %v781 = vmul.f32 %v701, %v738
      %v782 = vmul.f32 %v702, %v740
      %v783 = vmul.f32 %v703, %v742
      %v784 = vmul.f32 %v704, %v744
      %v785 = vmul.f32 %v705, %v746
      %v786 = vmul.f32 %v706, %v748
      %v787 = vmul.f32 %v707, %v750
      %v788 = vmul.f32 %v708, %v752
      %v789 = vmul.f32 %v709, %v754
      %v790 = vmul.f32 %v710, %v756
      %v791 = vmul.f32 %v711, %v758
      %v792 = vmul.f32 %v712, %v760
      %v794 = vrot.slane %v216, 6
      %v796 = vsub.f32 %v216, %v794
      %v798 = vrot.slane %v796, 1
      %v800 = vmul.f32 %v796, %v798
      %802 = vset.pattern.permute.xlu0 2
      %803 = vperm.xlu0 %802, %v777
      %v804 = vpop.permute.xlu0 %803
      %807 = vset.pattern.permute.xlu0 2
      %808 = vperm.xlu0 %807, %v778
      %v809 = vpop.permute.xlu0 %808
      %812 = vset.pattern.permute.xlu0 2
      %813 = vperm.xlu0 %812, %v779
      %v814 = vpop.permute.xlu0 %813
      %817 = vset.pattern.permute.xlu0 2
      %818 = vperm.xlu0 %817, %v780
      %v819 = vpop.permute.xlu0 %818
      %822 = vset.pattern.permute.xlu0 2
      %823 = vperm.xlu0 %822, %v781
      %v824 = vpop.permute.xlu0 %823
      %827 = vset.pattern.permute.xlu0 2
      %828 = vperm.xlu0 %827, %v782
      %v829 = vpop.permute.xlu0 %828
      %832 = vset.pattern.permute.xlu0 2
      %833 = vperm.xlu0 %832, %v783
      %v834 = vpop.permute.xlu0 %833
      %837 = vset.pattern.permute.xlu0 2
      %838 = vperm.xlu0 %837, %v784
      %v839 = vpop.permute.xlu0 %838
      %842 = vset.pattern.permute.xlu0 2
      %843 = vperm.xlu0 %842, %v785
      %v844 = vpop.permute.xlu0 %843
      %847 = vset.pattern.permute.xlu0 2
      %848 = vperm.xlu0 %847, %v786
      %v849 = vpop.permute.xlu0 %848
      %852 = vset.pattern.permute.xlu0 2
      %853 = vperm.xlu0 %852, %v787
      %v854 = vpop.permute.xlu0 %853
      %857 = vset.pattern.permute.xlu0 2
      %858 = vperm.xlu0 %857, %v788
      %v859 = vpop.permute.xlu0 %858
      %862 = vset.pattern.permute.xlu0 2
      %863 = vperm.xlu0 %862, %v789
      %v864 = vpop.permute.xlu0 %863
      %867 = vset.pattern.permute.xlu0 2
      %868 = vperm.xlu0 %867, %v790
      %v869 = vpop.permute.xlu0 %868
      %872 = vset.pattern.permute.xlu0 2
      %873 = vperm.xlu0 %872, %v791
      %v874 = vpop.permute.xlu0 %873
      %877 = vset.pattern.permute.xlu0 2
      %878 = vperm.xlu0 %877, %v792
      %v879 = vpop.permute.xlu0 %878
      %v881 = vlaneseq
      %v882 = vshrl.u32 %v881, 7
      %v883 = vsub.s32 2, %v882
      %v884 = vrot.slane %v800, %v883
      %v885 = vadd.f32 %v804, %v884
      %v886 = vadd.f32 %v809, %v884
      %v887 = vadd.f32 %v814, %v884
      %v888 = vadd.f32 %v819, %v884
      %v889 = vadd.f32 %v824, %v884
      %v890 = vadd.f32 %v829, %v884
      %v891 = vadd.f32 %v834, %v884
      %v892 = vadd.f32 %v839, %v884
      %v893 = vadd.f32 %v844, %v884
      %v894 = vadd.f32 %v849, %v884
      %v895 = vadd.f32 %v854, %v884
      %v896 = vadd.f32 %v859, %v884
      %v897 = vadd.f32 %v864, %v884
      %v898 = vadd.f32 %v869, %v884
      %v899 = vadd.f32 %v874, %v884
      %v900 = vadd.f32 %v879, %v884
      %v901 = vsub.f32 %v885, %v633
      %v902 = vsub.f32 %v886, %v634
      %v903 = vsub.f32 %v887, %v635
      %v904 = vsub.f32 %v888, %v636
      %v905 = vsub.f32 %v889, %v637
      %v906 = vsub.f32 %v890, %v638
      %v907 = vsub.f32 %v891, %v639
      %v908 = vsub.f32 %v892, %v640
      %v909 = vsub.f32 %v893, %v641
      %v910 = vsub.f32 %v894, %v642
      %v911 = vsub.f32 %v895, %v643
      %v912 = vsub.f32 %v896, %v644
      %v913 = vsub.f32 %v897, %v645
      %v914 = vsub.f32 %v898, %v646
      %v915 = vsub.f32 %v899, %v647
      %v916 = vsub.f32 %v900, %v648
      %v917 = vmax.f32 %v901, 1e-09
      %v918 = vmax.f32 %v902, 1e-09
      %v919 = vmax.f32 %v903, 1e-09
      %v920 = vmax.f32 %v904, 1e-09
      %v921 = vmax.f32 %v905, 1e-09
      %v922 = vmax.f32 %v906, 1e-09
      %v923 = vmax.f32 %v907, 1e-09
      %v924 = vmax.f32 %v908, 1e-09
      %v925 = vmax.f32 %v909, 1e-09
      %v926 = vmax.f32 %v910, 1e-09
      %v927 = vmax.f32 %v911, 1e-09
      %v928 = vmax.f32 %v912, 1e-09
      %v929 = vmax.f32 %v913, 1e-09
      %v930 = vmax.f32 %v914, 1e-09
      %v931 = vmax.f32 %v915, 1e-09
      %v932 = vmax.f32 %v916, 1e-09
      %v933 = vrcp.pop %v917
      %v934 = vrcp.pop %v918
      %v935 = vrcp.pop %v919
      %v936 = vrcp.pop %v920
      %v937 = vrcp.pop %v921
      %v938 = vrcp.pop %v922
      %v939 = vrcp.pop %v923
      %v940 = vrcp.pop %v924
      %v941 = vrcp.pop %v925
      %v942 = vrcp.pop %v926
      %v943 = vrcp.pop %v927
      %v944 = vrcp.pop %v928
      %v945 = vrcp.pop %v929
      %v946 = vrcp.pop %v930
      %v947 = vrcp.pop %v931
      %v948 = vrcp.pop %v932
      %v949 = vmul.f32 %v633, %v933
      %v950 = vmul.f32 %v634, %v934
      %v951 = vmul.f32 %v635, %v935
      %v952 = vmul.f32 %v636, %v936
      %v953 = vmul.f32 %v637, %v937
      %v954 = vmul.f32 %v638, %v938
      %v955 = vmul.f32 %v639, %v939
      %v956 = vmul.f32 %v640, %v940
      %v957 = vmul.f32 %v641, %v941
      %v958 = vmul.f32 %v642, %v942
      %v959 = vmul.f32 %v643, %v943
      %v960 = vmul.f32 %v644, %v944
      %v961 = vmul.f32 %v645, %v945
      %v962 = vmul.f32 %v646, %v946
      %v963 = vmul.f32 %v647, %v947
      %v964 = vmul.f32 %v648, %v948
      %965 = vst [vmem:[%s198] sm:$0xff] %v949
      %966 = vst [vmem:[%s198 + $0x8] sm:$0xff] %v950
      %967 = vst [vmem:[%s198 + $0x10] sm:$0xff] %v951
      %968 = vst [vmem:[%s198 + $0x18] sm:$0xff] %v952
      %969 = vst [vmem:[%s198 + $0x20] sm:$0xff] %v953
      %970 = vst [vmem:[%s198 + $0x28] sm:$0xff] %v954
      %971 = vst [vmem:[%s198 + $0x30] sm:$0xff] %v955
      %972 = vst [vmem:[%s198 + $0x38] sm:$0xff] %v956
      %973 = vst [vmem:[%s198 + $0x40] sm:$0xff] %v957
      %974 = vst [vmem:[%s198 + $0x48] sm:$0xff] %v958
      %975 = vst [vmem:[%s198 + $0x50] sm:$0xff] %v959
      %976 = vst [vmem:[%s198 + $0x58] sm:$0xff] %v960
      %977 = vst [vmem:[%s198 + $0x60] sm:$0xff] %v961
      %978 = vst [vmem:[%s198 + $0x68] sm:$0xff] %v962
      %979 = vst [vmem:[%s198 + $0x70] sm:$0xff] %v963
      %980 = vst [vmem:[%s198 + $0x78] sm:$0xff] %v964
      %s981 = smul.u32 16, %s18
      %p982 = scmp.lt.s32.totalorder %s17, 1
      %s983 = scalar_select %p982, %s17, 1
      %p984 = scmp.lt.s32.totalorder %s981, 15
      %s985 = scalar_select %p984, %s981, 15
      %s986 = smul.addr %s983, 16
      %s987 = sadd.s32 %s985, %s986
      %s988 = smul.addr %s987, 8
      %s989 = scalar_lea.vmem %s2, %s988
      // Predicated region
      $region29: #{_forward_impl.9} parent=27 // pred_check
        %p990 = pneg %p99
      $region30: #{_forward_impl.9} parent=27 // pred_check_branch
        %992 = sbr.rel (%p990) target = $region32
      $region31: #{_forward_impl.9} parent=27 // pred_region
        %s993 = smul.u32 16, %s18
      $region32: #{_forward_impl.9} parent=27 // pred_fallthru
        _
    $region28: #{_forward_impl.9} parent=5 // pred_fallthru
      _
    %p994 = scmp.le.s32.totalorder 2, %s8
    // Predicated region
    $region33: #{_forward_impl.9} parent=5 // pred_check
      %p995 = pneg %p994
    $region34: #{_forward_impl.9} parent=5 // pred_check_branch
      %997 = sbr.rel (%p995) target = $region36
    $region35: #{_forward_impl.9} parent=5 // pred_region
      %s998 = ssub.s32 %s8, 2
      // Predicated region
      $region37: #{_forward_impl.9} parent=35 // pred_check
        %p999 = pneg %p105
      $region38: #{_forward_impl.9} parent=35 // pred_check_branch
        %1001 = sbr.rel (%p999) target = $region40
      $region39: #{_forward_impl.9} parent=35 // pred_region
        %s1002 = smul.u32 16, %s20
        %p1003 = scmp.lt.s32.totalorder %s19, 1
        %s1004 = scalar_select %p1003, %s19, 1
        %p1005 = scmp.lt.s32.totalorder %s1002, 15
        %s1006 = scalar_select %p1005, %s1002, 15
        %s1007 = smul.addr %s1004, 16
        %s1008 = sadd.s32 %s1006, %s1007
        %s1009 = smul.addr %s1008, 8
        %s1010 = scalar_lea.vmem %s2, %s1009
      $region40: #{_forward_impl.9} parent=35 // pred_fallthru
        _
    $region36: #{_forward_impl.9} parent=5 // pred_fallthru
      _
  $region6: #{_forward_impl.9} parent=0 // loop_footer
    %s12 = sadd.s32 1, %s8
  $region7: #{_forward_impl.9} parent=0 // loop_footer_branch
    %7 = sbr.rel target = $region3
  $region8: #{_forward_impl.9} parent=0 // loop_exit
    _

</llo_original>
